<compile_context>
chip_gen: v7x
topology: tpu7x:2x2x1
jax: 0.10.0
libtpu: 0.0.40
codegen_flags: <defaults>
</compile_context>

<pallas_src>
import functools
import math

import jax
import jax.numpy as jnp
import numpy as np
from jax.experimental import pallas as pl
from jax.experimental.pallas import tpu as pltpu


# ----------------------------- small model config ---------------------------
PARAMS = {
    "batch_size": 2,
    "seq_len": 8,
    "vocab_size": 64,
    "embed_size": 32,
    "n_heads": 4,
    "hidden_size": 64,
    "num_transformers": 2,
}

_LN_EPS = 1e-5
_NEG_INF = -1e30

# Row order of the per-block "vec" tile (one row vector per row, zero-padded
# to 128 lanes).  Must match build_slab().
_VEC_ORDER = ("bo", "ln_w", "ln_b", "ffln1_w", "ffln1_b",
              "b1", "ffln2_w", "ffln2_b", "b2", "ln2_w", "ln2_b")


# ------------------------------ in-kernel helpers ---------------------------
def _erf(x):
    # Abramowitz & Stegun 7.1.26 rational approximation (|err| < 1.5e-7).
    a1, a2, a3, a4, a5 = 0.254829592, -0.284496736, 1.421413741, -1.453152027, 1.061405429
    p = 0.3275911
    sgn = jnp.where(x >= 0.0, 1.0, -1.0)
    ax = jnp.abs(x)
    t = 1.0 / (1.0 + p * ax)
    poly = ((((a5 * t + a4) * t + a3) * t + a2) * t + a1) * t
    return sgn * (1.0 - poly * jnp.exp(-ax * ax))


def _gelu(x):
    # PyTorch nn.GELU() default = exact (erf) GELU.
    return 0.5 * x * (1.0 + _erf(x * (1.0 / math.sqrt(2.0))))


def _layernorm(x, w, b):
    mu = jnp.mean(x, axis=-1, keepdims=True)
    var = jnp.mean((x - mu) * (x - mu), axis=-1, keepdims=True)
    return (x - mu) * jax.lax.rsqrt(var + _LN_EPS) * w + b


# ------------------------------ fused forward kernel ------------------------
def make_kernel(layout, p):
    B, S = p["batch_size"], p["seq_len"]
    E, HID, V = p["embed_size"], p["hidden_size"], p["vocab_size"]
    H = p["n_heads"]
    D = E // H
    M = B * S
    NBLK = p["num_transformers"]

    def seg(slab_ref, name):
        off, r, c = layout[name]
        return slab_ref[off:off + r, 0:c]          # static slice -> single load

    def kernel(ids_ref, slab_ref, o_ref):
        # ---- embedding gather (exact one-hot matmul) + positional encodings ----
        ids = ids_ref[...]                                          # (M, 1) int32
        vocab_iota = jax.lax.broadcasted_iota(jnp.int32, (M, V), 1)
        onehot = jnp.where(ids == vocab_iota, 1.0, 0.0).astype(jnp.float32)
        emb = seg(slab_ref, "emb")                                  # (V, E)
        x = jnp.dot(onehot, emb, preferred_element_type=jnp.float32)
        x = x + seg(slab_ref, "pe")                                 # (M, E)

        # Precomputed additive mask: 0 for same-batch (row//S == col//S), else -1e30.
        mask_add = seg(slab_ref, "mask")                            # (M, M)

        for blk in range(NBLK):
            pfx = f"b{blk}_"
            wqkv = seg(slab_ref, pfx + "wqkv")                      # (E, 3E)
            wo = seg(slab_ref, pfx + "wo")                          # (E, E)
            w1 = seg(slab_ref, pfx + "w1")                          # (E, HID)
            w2 = seg(slab_ref, pfx + "w2")                          # (HID, E)
            vecs = seg(slab_ref, pfx + "vec")                       # (16, 128)

            def vrow(name, width):
                i = _VEC_ORDER.index(name)
                return vecs[i:i + 1, 0:width]                       # (1, width)

            bo = vrow("bo", E)
            ln_w, ln_b = vrow("ln_w", E), vrow("ln_b", E)
            f1_w, f1_b = vrow("ffln1_w", E), vrow("ffln1_b", E)
            b1 = vrow("b1", HID)
            f2_w, f2_b = vrow("ffln2_w", HID), vrow("ffln2_b", HID)
            b2 = vrow("b2", E)
            ln2_w, ln2_b = vrow("ln2_w", E), vrow("ln2_b", E)

            x_in = x

            # ---- fused QKV projection: one (M,E)@(E,3E) MXU push ----
            qkv = jnp.dot(x_in, wqkv, preferred_element_type=jnp.float32)  # (M, 3E)

            # ---- per-head attention (NO 1/sqrt(d) scaling, as in the reference) ----
            heads = []
            for h in range(H):
                qh = qkv[:, h * D:(h + 1) * D]                      # (M, D)
                kh = qkv[:, E + h * D:E + (h + 1) * D]              # (M, D)
                vh = qkv[:, 2 * E + h * D:2 * E + (h + 1) * D]      # (M, D)
                s = jax.lax.dot_general(qh, kh, (((1,), (1,)), ((), ())),
                                        preferred_element_type=jnp.float32)  # (M, M)
                s = s + mask_add
                m_row = jnp.max(s, axis=-1, keepdims=True)
                e_ = jnp.exp(s - m_row)
                denom = jnp.sum(e_, axis=-1, keepdims=True)
                probs = e_ * pl.reciprocal(denom, approx=True)
                heads.append(jnp.dot(probs, vh,
                                     preferred_element_type=jnp.float32))   # (M, D)

            # ---- lane-concat heads + single Wo matmul ----
            attn = jnp.concatenate(heads, axis=-1)                  # (M, E)
            out = jnp.dot(attn, wo, preferred_element_type=jnp.float32) + bo + x_in
            out = _layernorm(out, ln_w, ln_b)

            # ff = GELU -> LN(E) -> Linear(E,HID) -> GELU -> LN(HID) -> Linear(HID,E)
            h1 = _gelu(out)
            h1 = _layernorm(h1, f1_w, f1_b)
            h1 = jnp.dot(h1, w1, preferred_element_type=jnp.float32) + b1
            h1 = _gelu(h1)
            h1 = _layernorm(h1, f2_w, f2_b)
            h1 = jnp.dot(h1, w2, preferred_element_type=jnp.float32) + b2

            # Second residual from the BLOCK INPUT (matches the PyTorch reference).
            x = _layernorm(h1 + x_in, ln2_w, ln2_b)

        # ---- vocab head + mean over the sequence (exact pooling matmul) ----
        wf = seg(slab_ref, "wf")                                    # (E, V)
        bf = seg(slab_ref, "bf")                                    # (1, V)
        logits = jnp.dot(x, wf, preferred_element_type=jnp.float32) + bf    # (M, V)

        pool = seg(slab_ref, "pool")                                # (B, M)
        o_ref[...] = jnp.dot(pool, logits,
                             preferred_element_type=jnp.float32).astype(o_ref.dtype)

    return kernel


# ------------------------------ wrapper (jit-able) ---------------------------
def make_forward(p, layout):
    kernel = make_kernel(layout, p)
    B, S, V = p["batch_size"], p["seq_len"], p["vocab_size"]
    M = B * S
    vmem = pl.BlockSpec(memory_space=pltpu.MemorySpace.VMEM)

    @jax.jit
    def forward(token_ids, slab):
        ids_flat = token_ids.reshape(M, 1).astype(jnp.int32)
        return pl.pallas_call(
            kernel,
            out_shape=jax.ShapeDtypeStruct((B, V), jnp.float32),
            in_specs=[vmem, vmem],
            out_specs=vmem,
        )(ids_flat, slab)

    return forward


# ------------------------------ slab packing ---------------------------------
def build_slab(weights, p):
    """Pack every constant into one (rows, 128) f32 slab, 8-row aligned segments."""
    B, S = p["batch_size"], p["seq_len"]
    E, HID, V = p["embed_size"], p["hidden_size"], p["vocab_size"]
    M = B * S

    rows = np.arange(M)
    mask = np.where((rows[:, None] // S) == (rows[None, :] // S),
                    0.0, _NEG_INF).astype(np.float32)                       # (M, M)
    pool = np.where((rows[None, :] // S) == np.arange(B)[:, None],
                    1.0 / S, 0.0).astype(np.float32)                        # (B, M)

    segs = [
        ("emb", np.asarray(weights["emb"], np.float32)),                    # (V, E)
        ("pe", np.asarray(weights["pe_flat"], np.float32)),                 # (M, E)
        ("mask", mask),
        ("pool", pool),
        ("wf", np.asarray(weights["wf_t"], np.float32)),                    # (E, V)
        ("bf", np.asarray(weights["bf"], np.float32)),                      # (1, V)
    ]

    for i, blk in enumerate(weights["blocks"]):
        wqkv = np.concatenate([np.asarray(blk["wq_t"], np.float32),
                               np.asarray(blk["wk_t"], np.float32),
                               np.asarray(blk["wv_t"], np.float32)], axis=1)  # (E, 3E)
        vec = np.zeros((16, 128), np.float32)
        for r, name in enumerate(_VEC_ORDER):
            v = np.asarray(blk[name], np.float32).reshape(-1)
            vec[r, :v.shape[0]] = v
        segs += [
            (f"b{i}_wqkv", wqkv),
            (f"b{i}_wo", np.asarray(blk["wo_t"], np.float32)),
            (f"b{i}_w1", np.asarray(blk["w1_t"], np.float32)),
            (f"b{i}_w2", np.asarray(blk["w2_t"], np.float32)),
            (f"b{i}_vec", vec),
        ]

    layout, parts, off = {}, [], 0
    for name, arr in segs:
        r, c = arr.shape
        pr = ((r + 7) // 8) * 8
        buf = np.zeros((pr, 128), np.float32)
        buf[:r, :c] = arr
        layout[name] = (off, r, c)
        parts.append(buf)
        off += pr
    slab = jnp.asarray(np.concatenate(parts, axis=0))
    return slab, layout


# ------------------------------ parameter init ------------------------------
def positional_encodings(seq_len, embed_size):
    # Matches MyModel._generate_positional_encodings: exponent i/embed_size per
    # index (odd j -> cos(pos / 10000^(j/E))).
    pos = np.arange(seq_len, dtype=np.float64)[:, None]
    i = np.arange(embed_size, dtype=np.float64)[None, :]
    angle = pos / np.power(10000.0, i / embed_size)
    pe = np.where((np.arange(embed_size) % 2) == 0, np.sin(angle), np.cos(angle))
    return jnp.asarray(pe, dtype=jnp.float32)


def init_params(key, p):
    e, hid, vocab = p["embed_size"], p["hidden_size"], p["vocab_size"]

    def normal(k, shape, scale=0.02):
        return (scale * jax.random.normal(k, shape)).astype(jnp.float32)

    keys = jax.random.split(key, 2 + p["num_transformers"])
    weights = {"emb": normal(keys[0], (vocab, e), 1.0)}

    pe = positional_encodings(p["seq_len"], e)
    weights["pe"] = pe                                            # (S, E)
    weights["pe_flat"] = jnp.tile(pe, (p["batch_size"], 1))       # (B*S, E)

    blocks = []
    for t in range(p["num_transformers"]):
        ks = jax.random.split(keys[2 + t], 8)
        # Linear weights in (in, out) layout (lane-dense 2-D).
        blocks.append({
            "wq_t": normal(ks[0], (e, e)),
            "wk_t": normal(ks[1], (e, e)),
            "wv_t": normal(ks[2], (e, e)),
            "wo_t": normal(ks[3], (e, e)),
            "bo": normal(ks[4], (1, e)),
            "ln_w": jnp.ones((1, e), jnp.float32),
            "ln_b": jnp.zeros((1, e), jnp.float32),
            "ffln1_w": jnp.ones((1, e), jnp.float32),
            "ffln1_b": jnp.zeros((1, e), jnp.float32),
            "w1_t": normal(ks[5], (e, hid)),
            "b1": normal(ks[6], (1, hid)),
            "ffln2_w": jnp.ones((1, hid), jnp.float32),
            "ffln2_b": jnp.zeros((1, hid), jnp.float32),
            "w2_t": normal(ks[7], (hid, e)),
            "b2": jnp.zeros((1, e), jnp.float32),
            "ln2_w": jnp.ones((1, e), jnp.float32),
            "ln2_b": jnp.zeros((1, e), jnp.float32),
        })
    weights["blocks"] = blocks

    kf1, kf2 = jax.random.split(keys[1])
    weights["wf_t"] = normal(kf1, (e, vocab))
    weights["bf"] = normal(kf2, (1, vocab))
    return weights


# ------------------------------ pure-JAX reference ---------------------------
def _ln_ref(x, w, b):
    mu = jnp.mean(x, axis=-1, keepdims=True)
    var = jnp.mean((x - mu) ** 2, axis=-1, keepdims=True)
    return (x - mu) / jnp.sqrt(var + _LN_EPS) * w + b


def reference_forward(token_ids, weights, p):
    e, h = p["embed_size"], p["n_heads"]
    d = e // h
    x = weights["emb"][token_ids] + weights["pe"][None, :, :]
    B, S, _ = x.shape
    for blk in weights["blocks"]:
        q = (x @ blk["wq_t"]).reshape(B, S, h, d)
        k = (x @ blk["wk_t"]).reshape(B, S, h, d)
        v = (x @ blk["wv_t"]).reshape(B, S, h, d)
        scores = jnp.einsum("bqhd,bkhd->bhqk", q, k)          # no 1/sqrt(d)
        probs = jax.nn.softmax(scores, axis=-1)
        attn = jnp.einsum("bhqk,bkhd->bqhd", probs, v).reshape(B, S, e)
        out = attn @ blk["wo_t"] + blk["bo"]
        out = out + x
        out = _ln_ref(out, blk["ln_w"], blk["ln_b"])
        h1 = jax.nn.gelu(out, approximate=False)
        h1 = _ln_ref(h1, blk["ffln1_w"], blk["ffln1_b"])
        h1 = h1 @ blk["w1_t"] + blk["b1"]
        h1 = jax.nn.gelu(h1, approximate=False)
        h1 = _ln_ref(h1, blk["ffln2_w"], blk["ffln2_b"])
        h1 = h1 @ blk["w2_t"] + blk["b2"]
        x = _ln_ref(h1 + x, blk["ln2_w"], blk["ln2_b"])        # residual from block input
    logits = x @ weights["wf_t"] + weights["bf"]
    return jnp.mean(logits, axis=1)


# ----------------------------------- main ------------------------------------
if __name__ == "__main__":
    p = PARAMS
    key = jax.random.PRNGKey(0)
    k_w, k_x = jax.random.split(key)

    weights = init_params(k_w, p)
    slab, layout = build_slab(weights, p)

    token_ids = jax.random.randint(
        k_x, (p["batch_size"], p["seq_len"]), 0, p["vocab_size"], dtype=jnp.int32
    )

    forward = make_forward(p, layout)
    out = jax.block_until_ready(forward(token_ids, slab))

    assert out.shape == (p["batch_size"], p["vocab_size"]), out.shape
    assert bool(jnp.all(jnp.isfinite(out)))

    # Tolerance-based check against a pure-JAX reference of the PyTorch module
    # (erf approximation + approx reciprocal + fp32 ordering differences ~1e-5).
    ref = jax.block_until_ready(reference_forward(token_ids, weights, p))
    np.testing.assert_allclose(np.asarray(out), np.asarray(ref), atol=1e-3, rtol=1e-2)

    print("KERNEL_OK")
</pallas_src>

<mosaic_0001>
module attributes {stable_mosaic.version = 11 : i64} {
  func.func @kernel(%arg0: memref<16x1xi32, #tpu.memory_space<vmem>>, %arg1: memref<496x128xf32, #tpu.memory_space<vmem>>, %arg2: memref<2x64xf32, #tpu.memory_space<vmem>>) attributes {dimension_semantics = [], scalar_prefetch = 0 : i64, scratch_operands = 0 : i64, tpu.core_type = #tpu.core_type<tc>} {
    %c0 = arith.constant 0 : index
    %c0_0 = arith.constant 0 : index
    %0 = vector.load %arg0[%c0, %c0_0] : memref<16x1xi32, #tpu.memory_space<vmem>>, vector<16x1xi32>
    %1 = tpu.iota {dimensions = array<i32: 1>} : vector<16x64xi32>
    %2 = vector.broadcast %0 : vector<16x1xi32> to vector<16x64xi32>
    %3 = arith.cmpi eq, %2, %1 : vector<16x64xi32>
    %cst = arith.constant 1.000000e+00 : f32
    %cst_1 = arith.constant 0.000000e+00 : f32
    %4 = vector.broadcast %cst : f32 to vector<16x64xf32>
    %5 = vector.broadcast %cst_1 : f32 to vector<16x64xf32>
    %6 = arith.select %3, %4, %5 : vector<16x64xi1>, vector<16x64xf32>
    %c0_2 = arith.constant 0 : index
    %c0_3 = arith.constant 0 : index
    %7 = vector.load %arg1[%c0_2, %c0_3] : memref<496x128xf32, #tpu.memory_space<vmem>>, vector<64x32xf32>
    %cst_4 = arith.constant dense<0.000000e+00> : vector<16x32xf32>
    %8 = tpu.matmul %6, %7, %cst_4 {dimension_numbers = #tpu.dot_dimension_numbers<[1], [0], [0], [1], [0, 0, 1, 1], [], []>} : vector<16x64xf32>, vector<64x32xf32>, vector<16x32xf32> -> vector<16x32xf32>
    %c64 = arith.constant 64 : index
    %c0_5 = arith.constant 0 : index
    %9 = vector.load %arg1[%c64, %c0_5] : memref<496x128xf32, #tpu.memory_space<vmem>>, vector<16x32xf32>
    %10 = arith.addf %8, %9 : vector<16x32xf32>
    %c80 = arith.constant 80 : index
    %c0_6 = arith.constant 0 : index
    %11 = vector.load %arg1[%c80, %c0_6] : memref<496x128xf32, #tpu.memory_space<vmem>>, vector<16x16xf32>
    %c144 = arith.constant 144 : index
    %c0_7 = arith.constant 0 : index
    %12 = vector.load %arg1[%c144, %c0_7] : memref<496x128xf32, #tpu.memory_space<vmem>>, vector<32x96xf32>
    %c176 = arith.constant 176 : index
    %c0_8 = arith.constant 0 : index
    %13 = vector.load %arg1[%c176, %c0_8] : memref<496x128xf32, #tpu.memory_space<vmem>>, vector<32x32xf32>
    %c208 = arith.constant 208 : index
    %c0_9 = arith.constant 0 : index
    %14 = vector.load %arg1[%c208, %c0_9] : memref<496x128xf32, #tpu.memory_space<vmem>>, vector<32x64xf32>
    %c240 = arith.constant 240 : index
    %c0_10 = arith.constant 0 : index
    %15 = vector.load %arg1[%c240, %c0_10] : memref<496x128xf32, #tpu.memory_space<vmem>>, vector<64x32xf32>
    %c304 = arith.constant 304 : index
    %c0_11 = arith.constant 0 : index
    %16 = vector.load %arg1[%c304, %c0_11] : memref<496x128xf32, #tpu.memory_space<vmem>>, vector<16x128xf32>
    %17 = vector.extract_strided_slice %16 {offsets = [0, 0], sizes = [1, 32], strides = [1, 1]} : vector<16x128xf32> to vector<1x32xf32>
    %18 = vector.extract_strided_slice %16 {offsets = [1, 0], sizes = [1, 32], strides = [1, 1]} : vector<16x128xf32> to vector<1x32xf32>
    %19 = vector.extract_strided_slice %16 {offsets = [2, 0], sizes = [1, 32], strides = [1, 1]} : vector<16x128xf32> to vector<1x32xf32>
    %20 = vector.extract_strided_slice %16 {offsets = [3, 0], sizes = [1, 32], strides = [1, 1]} : vector<16x128xf32> to vector<1x32xf32>
    %21 = vector.extract_strided_slice %16 {offsets = [4, 0], sizes = [1, 32], strides = [1, 1]} : vector<16x128xf32> to vector<1x32xf32>
    %22 = vector.extract_strided_slice %16 {offsets = [5, 0], sizes = [1, 64], strides = [1, 1]} : vector<16x128xf32> to vector<1x64xf32>
    %23 = vector.extract_strided_slice %16 {offsets = [6, 0], sizes = [1, 64], strides = [1, 1]} : vector<16x128xf32> to vector<1x64xf32>
    %24 = vector.extract_strided_slice %16 {offsets = [7, 0], sizes = [1, 64], strides = [1, 1]} : vector<16x128xf32> to vector<1x64xf32>
    %25 = vector.extract_strided_slice %16 {offsets = [8, 0], sizes = [1, 32], strides = [1, 1]} : vector<16x128xf32> to vector<1x32xf32>
    %26 = vector.extract_strided_slice %16 {offsets = [9, 0], sizes = [1, 32], strides = [1, 1]} : vector<16x128xf32> to vector<1x32xf32>
    %27 = vector.extract_strided_slice %16 {offsets = [10, 0], sizes = [1, 32], strides = [1, 1]} : vector<16x128xf32> to vector<1x32xf32>
    %cst_12 = arith.constant dense<0.000000e+00> : vector<16x96xf32>
    %28 = tpu.matmul %10, %12, %cst_12 {dimension_numbers = #tpu.dot_dimension_numbers<[1], [0], [0], [1], [0, 0, 1, 1], [], []>} : vector<16x32xf32>, vector<32x96xf32>, vector<16x96xf32> -> vector<16x96xf32>
    %29 = vector.extract_strided_slice %28 {offsets = [0, 0], sizes = [16, 8], strides = [1, 1]} : vector<16x96xf32> to vector<16x8xf32>
    %30 = vector.extract_strided_slice %28 {offsets = [0, 32], sizes = [16, 8], strides = [1, 1]} : vector<16x96xf32> to vector<16x8xf32>
    %31 = vector.extract_strided_slice %28 {offsets = [0, 64], sizes = [16, 8], strides = [1, 1]} : vector<16x96xf32> to vector<16x8xf32>
    %cst_13 = arith.constant dense<0.000000e+00> : vector<16x16xf32>
    %32 = tpu.matmul %29, %30, %cst_13 {dimension_numbers = #tpu.dot_dimension_numbers<[1], [1], [0], [0], [0, 0, 1, 0], [], []>} : vector<16x8xf32>, vector<16x8xf32>, vector<16x16xf32> -> vector<16x16xf32>
    %33 = arith.addf %32, %11 : vector<16x16xf32>
    %cst_14 = arith.constant dense<0xFF800000> : vector<16xf32>
    %34 = vector.multi_reduction <maximumf>, %33, %cst_14 [1] : vector<16x16xf32> to vector<16xf32>
    %35 = vector.shape_cast %34 : vector<16xf32> to vector<16x1xf32>
    %36 = vector.broadcast %35 : vector<16x1xf32> to vector<16x16xf32>
    %37 = arith.subf %33, %36 : vector<16x16xf32>
    %38 = math.exp %37 : vector<16x16xf32>
    %cst_15 = arith.constant dense<0.000000e+00> : vector<16xf32>
    %39 = vector.multi_reduction <add>, %38, %cst_15 [1] : vector<16x16xf32> to vector<16xf32>
    %40 = vector.shape_cast %39 : vector<16xf32> to vector<16x1xf32>
    %41 = tpu.reciprocal %40 {approx = true} : vector<16x1xf32> -> vector<16x1xf32>
    %42 = vector.broadcast %41 : vector<16x1xf32> to vector<16x16xf32>
    %43 = arith.mulf %38, %42 : vector<16x16xf32>
    %cst_16 = arith.constant dense<0.000000e+00> : vector<16x8xf32>
    %44 = tpu.matmul %43, %31, %cst_16 {dimension_numbers = #tpu.dot_dimension_numbers<[1], [0], [0], [1], [0, 0, 1, 1], [], []>} : vector<16x16xf32>, vector<16x8xf32>, vector<16x8xf32> -> vector<16x8xf32>
    %45 = vector.extract_strided_slice %28 {offsets = [0, 8], sizes = [16, 8], strides = [1, 1]} : vector<16x96xf32> to vector<16x8xf32>
    %46 = vector.extract_strided_slice %28 {offsets = [0, 40], sizes = [16, 8], strides = [1, 1]} : vector<16x96xf32> to vector<16x8xf32>
    %47 = vector.extract_strided_slice %28 {offsets = [0, 72], sizes = [16, 8], strides = [1, 1]} : vector<16x96xf32> to vector<16x8xf32>
    %cst_17 = arith.constant dense<0.000000e+00> : vector<16x16xf32>
    %48 = tpu.matmul %45, %46, %cst_17 {dimension_numbers = #tpu.dot_dimension_numbers<[1], [1], [0], [0], [0, 0, 1, 0], [], []>} : vector<16x8xf32>, vector<16x8xf32>, vector<16x16xf32> -> vector<16x16xf32>
    %49 = arith.addf %48, %11 : vector<16x16xf32>
    %cst_18 = arith.constant dense<0xFF800000> : vector<16xf32>
    %50 = vector.multi_reduction <maximumf>, %49, %cst_18 [1] : vector<16x16xf32> to vector<16xf32>
    %51 = vector.shape_cast %50 : vector<16xf32> to vector<16x1xf32>
    %52 = vector.broadcast %51 : vector<16x1xf32> to vector<16x16xf32>
    %53 = arith.subf %49, %52 : vector<16x16xf32>
    %54 = math.exp %53 : vector<16x16xf32>
    %cst_19 = arith.constant dense<0.000000e+00> : vector<16xf32>
    %55 = vector.multi_reduction <add>, %54, %cst_19 [1] : vector<16x16xf32> to vector<16xf32>
    %56 = vector.shape_cast %55 : vector<16xf32> to vector<16x1xf32>
    %57 = tpu.reciprocal %56 {approx = true} : vector<16x1xf32> -> vector<16x1xf32>
    %58 = vector.broadcast %57 : vector<16x1xf32> to vector<16x16xf32>
    %59 = arith.mulf %54, %58 : vector<16x16xf32>
    %cst_20 = arith.constant dense<0.000000e+00> : vector<16x8xf32>
    %60 = tpu.matmul %59, %47, %cst_20 {dimension_numbers = #tpu.dot_dimension_numbers<[1], [0], [0], [1], [0, 0, 1, 1], [], []>} : vector<16x16xf32>, vector<16x8xf32>, vector<16x8xf32> -> vector<16x8xf32>
    %61 = vector.extract_strided_slice %28 {offsets = [0, 16], sizes = [16, 8], strides = [1, 1]} : vector<16x96xf32> to vector<16x8xf32>
    %62 = vector.extract_strided_slice %28 {offsets = [0, 48], sizes = [16, 8], strides = [1, 1]} : vector<16x96xf32> to vector<16x8xf32>
    %63 = vector.extract_strided_slice %28 {offsets = [0, 80], sizes = [16, 8], strides = [1, 1]} : vector<16x96xf32> to vector<16x8xf32>
    %cst_21 = arith.constant dense<0.000000e+00> : vector<16x16xf32>
    %64 = tpu.matmul %61, %62, %cst_21 {dimension_numbers = #tpu.dot_dimension_numbers<[1], [1], [0], [0], [0, 0, 1, 0], [], []>} : vector<16x8xf32>, vector<16x8xf32>, vector<16x16xf32> -> vector<16x16xf32>
    %65 = arith.addf %64, %11 : vector<16x16xf32>
    %cst_22 = arith.constant dense<0xFF800000> : vector<16xf32>
    %66 = vector.multi_reduction <maximumf>, %65, %cst_22 [1] : vector<16x16xf32> to vector<16xf32>
    %67 = vector.shape_cast %66 : vector<16xf32> to vector<16x1xf32>
    %68 = vector.broadcast %67 : vector<16x1xf32> to vector<16x16xf32>
    %69 = arith.subf %65, %68 : vector<16x16xf32>
    %70 = math.exp %69 : vector<16x16xf32>
    %cst_23 = arith.constant dense<0.000000e+00> : vector<16xf32>
    %71 = vector.multi_reduction <add>, %70, %cst_23 [1] : vector<16x16xf32> to vector<16xf32>
    %72 = vector.shape_cast %71 : vector<16xf32> to vector<16x1xf32>
    %73 = tpu.reciprocal %72 {approx = true} : vector<16x1xf32> -> vector<16x1xf32>
    %74 = vector.broadcast %73 : vector<16x1xf32> to vector<16x16xf32>
    %75 = arith.mulf %70, %74 : vector<16x16xf32>
    %cst_24 = arith.constant dense<0.000000e+00> : vector<16x8xf32>
    %76 = tpu.matmul %75, %63, %cst_24 {dimension_numbers = #tpu.dot_dimension_numbers<[1], [0], [0], [1], [0, 0, 1, 1], [], []>} : vector<16x16xf32>, vector<16x8xf32>, vector<16x8xf32> -> vector<16x8xf32>
    %77 = vector.extract_strided_slice %28 {offsets = [0, 24], sizes = [16, 8], strides = [1, 1]} : vector<16x96xf32> to vector<16x8xf32>
    %78 = vector.extract_strided_slice %28 {offsets = [0, 56], sizes = [16, 8], strides = [1, 1]} : vector<16x96xf32> to vector<16x8xf32>
    %79 = vector.extract_strided_slice %28 {offsets = [0, 88], sizes = [16, 8], strides = [1, 1]} : vector<16x96xf32> to vector<16x8xf32>
    %cst_25 = arith.constant dense<0.000000e+00> : vector<16x16xf32>
    %80 = tpu.matmul %77, %78, %cst_25 {dimension_numbers = #tpu.dot_dimension_numbers<[1], [1], [0], [0], [0, 0, 1, 0], [], []>} : vector<16x8xf32>, vector<16x8xf32>, vector<16x16xf32> -> vector<16x16xf32>
    %81 = arith.addf %80, %11 : vector<16x16xf32>
    %cst_26 = arith.constant dense<0xFF800000> : vector<16xf32>
    %82 = vector.multi_reduction <maximumf>, %81, %cst_26 [1] : vector<16x16xf32> to vector<16xf32>
    %83 = vector.shape_cast %82 : vector<16xf32> to vector<16x1xf32>
    %84 = vector.broadcast %83 : vector<16x1xf32> to vector<16x16xf32>
    %85 = arith.subf %81, %84 : vector<16x16xf32>
    %86 = math.exp %85 : vector<16x16xf32>
    %cst_27 = arith.constant dense<0.000000e+00> : vector<16xf32>
    %87 = vector.multi_reduction <add>, %86, %cst_27 [1] : vector<16x16xf32> to vector<16xf32>
    %88 = vector.shape_cast %87 : vector<16xf32> to vector<16x1xf32>
    %89 = tpu.reciprocal %88 {approx = true} : vector<16x1xf32> -> vector<16x1xf32>
    %90 = vector.broadcast %89 : vector<16x1xf32> to vector<16x16xf32>
    %91 = arith.mulf %86, %90 : vector<16x16xf32>
    %cst_28 = arith.constant dense<0.000000e+00> : vector<16x8xf32>
    %92 = tpu.matmul %91, %79, %cst_28 {dimension_numbers = #tpu.dot_dimension_numbers<[1], [0], [0], [1], [0, 0, 1, 1], [], []>} : vector<16x16xf32>, vector<16x8xf32>, vector<16x8xf32> -> vector<16x8xf32>
    %93 = tpu.concatenate %44, %60, %76, %92 in 1 : vector<16x8xf32>, vector<16x8xf32>, vector<16x8xf32>, vector<16x8xf32> -> vector<16x32xf32>
    %cst_29 = arith.constant dense<0.000000e+00> : vector<16x32xf32>
    %94 = tpu.matmul %93, %13, %cst_29 {dimension_numbers = #tpu.dot_dimension_numbers<[1], [0], [0], [1], [0, 0, 1, 1], [], []>} : vector<16x32xf32>, vector<32x32xf32>, vector<16x32xf32> -> vector<16x32xf32>
    %95 = vector.broadcast %17 : vector<1x32xf32> to vector<16x32xf32>
    %96 = arith.addf %94, %95 : vector<16x32xf32>
    %97 = arith.addf %96, %10 : vector<16x32xf32>
    %cst_30 = arith.constant dense<0.000000e+00> : vector<16xf32>
    %98 = vector.multi_reduction <add>, %97, %cst_30 [1] : vector<16x32xf32> to vector<16xf32>
    %99 = vector.shape_cast %98 : vector<16xf32> to vector<16x1xf32>
    %cst_31 = arith.constant 3.200000e+01 : f32
    %100 = vector.broadcast %cst_31 : f32 to vector<16x1xf32>
    %101 = arith.divf %99, %100 : vector<16x1xf32>
    %102 = vector.broadcast %101 : vector<16x1xf32> to vector<16x32xf32>
    %103 = arith.subf %97, %102 : vector<16x32xf32>
    %104 = vector.broadcast %101 : vector<16x1xf32> to vector<16x32xf32>
    %105 = arith.subf %97, %104 : vector<16x32xf32>
    %106 = arith.mulf %103, %105 : vector<16x32xf32>
    %cst_32 = arith.constant dense<0.000000e+00> : vector<16xf32>
    %107 = vector.multi_reduction <add>, %106, %cst_32 [1] : vector<16x32xf32> to vector<16xf32>
    %108 = vector.shape_cast %107 : vector<16xf32> to vector<16x1xf32>
    %cst_33 = arith.constant 3.200000e+01 : f32
    %109 = vector.broadcast %cst_33 : f32 to vector<16x1xf32>
    %110 = arith.divf %108, %109 : vector<16x1xf32>
    %111 = vector.broadcast %101 : vector<16x1xf32> to vector<16x32xf32>
    %112 = arith.subf %97, %111 : vector<16x32xf32>
    %cst_34 = arith.constant 9.99999974E-6 : f32
    %113 = vector.broadcast %cst_34 : f32 to vector<16x1xf32>
    %114 = arith.addf %110, %113 : vector<16x1xf32>
    %115 = math.rsqrt %114 : vector<16x1xf32>
    %116 = vector.broadcast %115 : vector<16x1xf32> to vector<16x32xf32>
    %117 = arith.mulf %112, %116 : vector<16x32xf32>
    %118 = vector.broadcast %18 : vector<1x32xf32> to vector<16x32xf32>
    %119 = arith.mulf %117, %118 : vector<16x32xf32>
    %120 = vector.broadcast %19 : vector<1x32xf32> to vector<16x32xf32>
    %121 = arith.addf %119, %120 : vector<16x32xf32>
    %cst_35 = arith.constant 5.000000e-01 : f32
    %122 = vector.broadcast %cst_35 : f32 to vector<16x32xf32>
    %123 = arith.mulf %122, %121 : vector<16x32xf32>
    %cst_36 = arith.constant 0.707106769 : f32
    %124 = vector.broadcast %cst_36 : f32 to vector<16x32xf32>
    %125 = arith.mulf %121, %124 : vector<16x32xf32>
    %cst_37 = arith.constant 0.000000e+00 : f32
    %126 = vector.broadcast %cst_37 : f32 to vector<16x32xf32>
    %127 = arith.cmpf oge, %125, %126 : vector<16x32xf32>
    %cst_38 = arith.constant 1.000000e+00 : f32
    %cst_39 = arith.constant -1.000000e+00 : f32
    %128 = vector.broadcast %cst_38 : f32 to vector<16x32xf32>
    %129 = vector.broadcast %cst_39 : f32 to vector<16x32xf32>
    %130 = arith.select %127, %128, %129 : vector<16x32xi1>, vector<16x32xf32>
    %131 = math.absf %125 : vector<16x32xf32>
    %cst_40 = arith.constant 0.327591091 : f32
    %132 = vector.broadcast %cst_40 : f32 to vector<16x32xf32>
    %133 = arith.mulf %132, %131 : vector<16x32xf32>
    %cst_41 = arith.constant 1.000000e+00 : f32
    %134 = vector.broadcast %cst_41 : f32 to vector<16x32xf32>
    %135 = arith.addf %134, %133 : vector<16x32xf32>
    %cst_42 = arith.constant 1.000000e+00 : f32
    %136 = vector.broadcast %cst_42 : f32 to vector<16x32xf32>
    %137 = arith.divf %136, %135 : vector<16x32xf32>
    %cst_43 = arith.constant 1.06140542 : f32
    %138 = vector.broadcast %cst_43 : f32 to vector<16x32xf32>
    %139 = arith.mulf %138, %137 : vector<16x32xf32>
    %cst_44 = arith.constant -1.45315206 : f32
    %140 = vector.broadcast %cst_44 : f32 to vector<16x32xf32>
    %141 = arith.addf %139, %140 : vector<16x32xf32>
    %142 = arith.mulf %141, %137 : vector<16x32xf32>
    %cst_45 = arith.constant 1.42141378 : f32
    %143 = vector.broadcast %cst_45 : f32 to vector<16x32xf32>
    %144 = arith.addf %142, %143 : vector<16x32xf32>
    %145 = arith.mulf %144, %137 : vector<16x32xf32>
    %cst_46 = arith.constant -0.284496725 : f32
    %146 = vector.broadcast %cst_46 : f32 to vector<16x32xf32>
    %147 = arith.addf %145, %146 : vector<16x32xf32>
    %148 = arith.mulf %147, %137 : vector<16x32xf32>
    %cst_47 = arith.constant 0.254829586 : f32
    %149 = vector.broadcast %cst_47 : f32 to vector<16x32xf32>
    %150 = arith.addf %148, %149 : vector<16x32xf32>
    %151 = arith.mulf %150, %137 : vector<16x32xf32>
    %cst_48 = arith.constant 0.000000e+00 : f32
    %152 = vector.broadcast %cst_48 : f32 to vector<16x32xf32>
    %153 = arith.subf %152, %131 : vector<16x32xf32>
    %154 = arith.mulf %153, %131 : vector<16x32xf32>
    %155 = math.exp %154 : vector<16x32xf32>
    %156 = arith.mulf %151, %155 : vector<16x32xf32>
    %cst_49 = arith.constant 1.000000e+00 : f32
    %157 = vector.broadcast %cst_49 : f32 to vector<16x32xf32>
    %158 = arith.subf %157, %156 : vector<16x32xf32>
    %159 = arith.mulf %130, %158 : vector<16x32xf32>
    %cst_50 = arith.constant 1.000000e+00 : f32
    %160 = vector.broadcast %cst_50 : f32 to vector<16x32xf32>
    %161 = arith.addf %160, %159 : vector<16x32xf32>
    %162 = arith.mulf %123, %161 : vector<16x32xf32>
    %cst_51 = arith.constant dense<0.000000e+00> : vector<16xf32>
    %163 = vector.multi_reduction <add>, %162, %cst_51 [1] : vector<16x32xf32> to vector<16xf32>
    %164 = vector.shape_cast %163 : vector<16xf32> to vector<16x1xf32>
    %cst_52 = arith.constant 3.200000e+01 : f32
    %165 = vector.broadcast %cst_52 : f32 to vector<16x1xf32>
    %166 = arith.divf %164, %165 : vector<16x1xf32>
    %167 = vector.broadcast %166 : vector<16x1xf32> to vector<16x32xf32>
    %168 = arith.subf %162, %167 : vector<16x32xf32>
    %169 = vector.broadcast %166 : vector<16x1xf32> to vector<16x32xf32>
    %170 = arith.subf %162, %169 : vector<16x32xf32>
    %171 = arith.mulf %168, %170 : vector<16x32xf32>
    %cst_53 = arith.constant dense<0.000000e+00> : vector<16xf32>
    %172 = vector.multi_reduction <add>, %171, %cst_53 [1] : vector<16x32xf32> to vector<16xf32>
    %173 = vector.shape_cast %172 : vector<16xf32> to vector<16x1xf32>
    %cst_54 = arith.constant 3.200000e+01 : f32
    %174 = vector.broadcast %cst_54 : f32 to vector<16x1xf32>
    %175 = arith.divf %173, %174 : vector<16x1xf32>
    %176 = vector.broadcast %166 : vector<16x1xf32> to vector<16x32xf32>
    %177 = arith.subf %162, %176 : vector<16x32xf32>
    %cst_55 = arith.constant 9.99999974E-6 : f32
    %178 = vector.broadcast %cst_55 : f32 to vector<16x1xf32>
    %179 = arith.addf %175, %178 : vector<16x1xf32>
    %180 = math.rsqrt %179 : vector<16x1xf32>
    %181 = vector.broadcast %180 : vector<16x1xf32> to vector<16x32xf32>
    %182 = arith.mulf %177, %181 : vector<16x32xf32>
    %183 = vector.broadcast %20 : vector<1x32xf32> to vector<16x32xf32>
    %184 = arith.mulf %182, %183 : vector<16x32xf32>
    %185 = vector.broadcast %21 : vector<1x32xf32> to vector<16x32xf32>
    %186 = arith.addf %184, %185 : vector<16x32xf32>
    %cst_56 = arith.constant dense<0.000000e+00> : vector<16x64xf32>
    %187 = tpu.matmul %186, %14, %cst_56 {dimension_numbers = #tpu.dot_dimension_numbers<[1], [0], [0], [1], [0, 0, 1, 1], [], []>} : vector<16x32xf32>, vector<32x64xf32>, vector<16x64xf32> -> vector<16x64xf32>
    %188 = vector.broadcast %22 : vector<1x64xf32> to vector<16x64xf32>
    %189 = arith.addf %187, %188 : vector<16x64xf32>
    %cst_57 = arith.constant 5.000000e-01 : f32
    %190 = vector.broadcast %cst_57 : f32 to vector<16x64xf32>
    %191 = arith.mulf %190, %189 : vector<16x64xf32>
    %cst_58 = arith.constant 0.707106769 : f32
    %192 = vector.broadcast %cst_58 : f32 to vector<16x64xf32>
    %193 = arith.mulf %189, %192 : vector<16x64xf32>
    %cst_59 = arith.constant 0.000000e+00 : f32
    %194 = vector.broadcast %cst_59 : f32 to vector<16x64xf32>
    %195 = arith.cmpf oge, %193, %194 : vector<16x64xf32>
    %cst_60 = arith.constant 1.000000e+00 : f32
    %cst_61 = arith.constant -1.000000e+00 : f32
    %196 = vector.broadcast %cst_60 : f32 to vector<16x64xf32>
    %197 = vector.broadcast %cst_61 : f32 to vector<16x64xf32>
    %198 = arith.select %195, %196, %197 : vector<16x64xi1>, vector<16x64xf32>
    %199 = math.absf %193 : vector<16x64xf32>
    %cst_62 = arith.constant 0.327591091 : f32
    %200 = vector.broadcast %cst_62 : f32 to vector<16x64xf32>
    %201 = arith.mulf %200, %199 : vector<16x64xf32>
    %cst_63 = arith.constant 1.000000e+00 : f32
    %202 = vector.broadcast %cst_63 : f32 to vector<16x64xf32>
    %203 = arith.addf %202, %201 : vector<16x64xf32>
    %cst_64 = arith.constant 1.000000e+00 : f32
    %204 = vector.broadcast %cst_64 : f32 to vector<16x64xf32>
    %205 = arith.divf %204, %203 : vector<16x64xf32>
    %cst_65 = arith.constant 1.06140542 : f32
    %206 = vector.broadcast %cst_65 : f32 to vector<16x64xf32>
    %207 = arith.mulf %206, %205 : vector<16x64xf32>
    %cst_66 = arith.constant -1.45315206 : f32
    %208 = vector.broadcast %cst_66 : f32 to vector<16x64xf32>
    %209 = arith.addf %207, %208 : vector<16x64xf32>
    %210 = arith.mulf %209, %205 : vector<16x64xf32>
    %cst_67 = arith.constant 1.42141378 : f32
    %211 = vector.broadcast %cst_67 : f32 to vector<16x64xf32>
    %212 = arith.addf %210, %211 : vector<16x64xf32>
    %213 = arith.mulf %212, %205 : vector<16x64xf32>
    %cst_68 = arith.constant -0.284496725 : f32
    %214 = vector.broadcast %cst_68 : f32 to vector<16x64xf32>
    %215 = arith.addf %213, %214 : vector<16x64xf32>
    %216 = arith.mulf %215, %205 : vector<16x64xf32>
    %cst_69 = arith.constant 0.254829586 : f32
    %217 = vector.broadcast %cst_69 : f32 to vector<16x64xf32>
    %218 = arith.addf %216, %217 : vector<16x64xf32>
    %219 = arith.mulf %218, %205 : vector<16x64xf32>
    %cst_70 = arith.constant 0.000000e+00 : f32
    %220 = vector.broadcast %cst_70 : f32 to vector<16x64xf32>
    %221 = arith.subf %220, %199 : vector<16x64xf32>
    %222 = arith.mulf %221, %199 : vector<16x64xf32>
    %223 = math.exp %222 : vector<16x64xf32>
    %224 = arith.mulf %219, %223 : vector<16x64xf32>
    %cst_71 = arith.constant 1.000000e+00 : f32
    %225 = vector.broadcast %cst_71 : f32 to vector<16x64xf32>
    %226 = arith.subf %225, %224 : vector<16x64xf32>
    %227 = arith.mulf %198, %226 : vector<16x64xf32>
    %cst_72 = arith.constant 1.000000e+00 : f32
    %228 = vector.broadcast %cst_72 : f32 to vector<16x64xf32>
    %229 = arith.addf %228, %227 : vector<16x64xf32>
    %230 = arith.mulf %191, %229 : vector<16x64xf32>
    %cst_73 = arith.constant dense<0.000000e+00> : vector<16xf32>
    %231 = vector.multi_reduction <add>, %230, %cst_73 [1] : vector<16x64xf32> to vector<16xf32>
    %232 = vector.shape_cast %231 : vector<16xf32> to vector<16x1xf32>
    %cst_74 = arith.constant 6.400000e+01 : f32
    %233 = vector.broadcast %cst_74 : f32 to vector<16x1xf32>
    %234 = arith.divf %232, %233 : vector<16x1xf32>
    %235 = vector.broadcast %234 : vector<16x1xf32> to vector<16x64xf32>
    %236 = arith.subf %230, %235 : vector<16x64xf32>
    %237 = vector.broadcast %234 : vector<16x1xf32> to vector<16x64xf32>
    %238 = arith.subf %230, %237 : vector<16x64xf32>
    %239 = arith.mulf %236, %238 : vector<16x64xf32>
    %cst_75 = arith.constant dense<0.000000e+00> : vector<16xf32>
    %240 = vector.multi_reduction <add>, %239, %cst_75 [1] : vector<16x64xf32> to vector<16xf32>
    %241 = vector.shape_cast %240 : vector<16xf32> to vector<16x1xf32>
    %cst_76 = arith.constant 6.400000e+01 : f32
    %242 = vector.broadcast %cst_76 : f32 to vector<16x1xf32>
    %243 = arith.divf %241, %242 : vector<16x1xf32>
    %244 = vector.broadcast %234 : vector<16x1xf32> to vector<16x64xf32>
    %245 = arith.subf %230, %244 : vector<16x64xf32>
    %cst_77 = arith.constant 9.99999974E-6 : f32
    %246 = vector.broadcast %cst_77 : f32 to vector<16x1xf32>
    %247 = arith.addf %243, %246 : vector<16x1xf32>
    %248 = math.rsqrt %247 : vector<16x1xf32>
    %249 = vector.broadcast %248 : vector<16x1xf32> to vector<16x64xf32>
    %250 = arith.mulf %245, %249 : vector<16x64xf32>
    %251 = vector.broadcast %23 : vector<1x64xf32> to vector<16x64xf32>
    %252 = arith.mulf %250, %251 : vector<16x64xf32>
    %253 = vector.broadcast %24 : vector<1x64xf32> to vector<16x64xf32>
    %254 = arith.addf %252, %253 : vector<16x64xf32>
    %cst_78 = arith.constant dense<0.000000e+00> : vector<16x32xf32>
    %255 = tpu.matmul %254, %15, %cst_78 {dimension_numbers = #tpu.dot_dimension_numbers<[1], [0], [0], [1], [0, 0, 1, 1], [], []>} : vector<16x64xf32>, vector<64x32xf32>, vector<16x32xf32> -> vector<16x32xf32>
    %256 = vector.broadcast %25 : vector<1x32xf32> to vector<16x32xf32>
    %257 = arith.addf %255, %256 : vector<16x32xf32>
    %258 = arith.addf %257, %10 : vector<16x32xf32>
    %cst_79 = arith.constant dense<0.000000e+00> : vector<16xf32>
    %259 = vector.multi_reduction <add>, %258, %cst_79 [1] : vector<16x32xf32> to vector<16xf32>
    %260 = vector.shape_cast %259 : vector<16xf32> to vector<16x1xf32>
    %cst_80 = arith.constant 3.200000e+01 : f32
    %261 = vector.broadcast %cst_80 : f32 to vector<16x1xf32>
    %262 = arith.divf %260, %261 : vector<16x1xf32>
    %263 = vector.broadcast %262 : vector<16x1xf32> to vector<16x32xf32>
    %264 = arith.subf %258, %263 : vector<16x32xf32>
    %265 = vector.broadcast %262 : vector<16x1xf32> to vector<16x32xf32>
    %266 = arith.subf %258, %265 : vector<16x32xf32>
    %267 = arith.mulf %264, %266 : vector<16x32xf32>
    %cst_81 = arith.constant dense<0.000000e+00> : vector<16xf32>
    %268 = vector.multi_reduction <add>, %267, %cst_81 [1] : vector<16x32xf32> to vector<16xf32>
    %269 = vector.shape_cast %268 : vector<16xf32> to vector<16x1xf32>
    %cst_82 = arith.constant 3.200000e+01 : f32
    %270 = vector.broadcast %cst_82 : f32 to vector<16x1xf32>
    %271 = arith.divf %269, %270 : vector<16x1xf32>
    %272 = vector.broadcast %262 : vector<16x1xf32> to vector<16x32xf32>
    %273 = arith.subf %258, %272 : vector<16x32xf32>
    %cst_83 = arith.constant 9.99999974E-6 : f32
    %274 = vector.broadcast %cst_83 : f32 to vector<16x1xf32>
    %275 = arith.addf %271, %274 : vector<16x1xf32>
    %276 = math.rsqrt %275 : vector<16x1xf32>
    %277 = vector.broadcast %276 : vector<16x1xf32> to vector<16x32xf32>
    %278 = arith.mulf %273, %277 : vector<16x32xf32>
    %279 = vector.broadcast %26 : vector<1x32xf32> to vector<16x32xf32>
    %280 = arith.mulf %278, %279 : vector<16x32xf32>
    %281 = vector.broadcast %27 : vector<1x32xf32> to vector<16x32xf32>
    %282 = arith.addf %280, %281 : vector<16x32xf32>
    %c320 = arith.constant 320 : index
    %c0_84 = arith.constant 0 : index
    %283 = vector.load %arg1[%c320, %c0_84] : memref<496x128xf32, #tpu.memory_space<vmem>>, vector<32x96xf32>
    %c352 = arith.constant 352 : index
    %c0_85 = arith.constant 0 : index
    %284 = vector.load %arg1[%c352, %c0_85] : memref<496x128xf32, #tpu.memory_space<vmem>>, vector<32x32xf32>
    %c384 = arith.constant 384 : index
    %c0_86 = arith.constant 0 : index
    %285 = vector.load %arg1[%c384, %c0_86] : memref<496x128xf32, #tpu.memory_space<vmem>>, vector<32x64xf32>
    %c416 = arith.constant 416 : index
    %c0_87 = arith.constant 0 : index
    %286 = vector.load %arg1[%c416, %c0_87] : memref<496x128xf32, #tpu.memory_space<vmem>>, vector<64x32xf32>
    %c480 = arith.constant 480 : index
    %c0_88 = arith.constant 0 : index
    %287 = vector.load %arg1[%c480, %c0_88] : memref<496x128xf32, #tpu.memory_space<vmem>>, vector<16x128xf32>
    %288 = vector.extract_strided_slice %287 {offsets = [0, 0], sizes = [1, 32], strides = [1, 1]} : vector<16x128xf32> to vector<1x32xf32>
    %289 = vector.extract_strided_slice %287 {offsets = [1, 0], sizes = [1, 32], strides = [1, 1]} : vector<16x128xf32> to vector<1x32xf32>
    %290 = vector.extract_strided_slice %287 {offsets = [2, 0], sizes = [1, 32], strides = [1, 1]} : vector<16x128xf32> to vector<1x32xf32>
    %291 = vector.extract_strided_slice %287 {offsets = [3, 0], sizes = [1, 32], strides = [1, 1]} : vector<16x128xf32> to vector<1x32xf32>
    %292 = vector.extract_strided_slice %287 {offsets = [4, 0], sizes = [1, 32], strides = [1, 1]} : vector<16x128xf32> to vector<1x32xf32>
    %293 = vector.extract_strided_slice %287 {offsets = [5, 0], sizes = [1, 64], strides = [1, 1]} : vector<16x128xf32> to vector<1x64xf32>
    %294 = vector.extract_strided_slice %287 {offsets = [6, 0], sizes = [1, 64], strides = [1, 1]} : vector<16x128xf32> to vector<1x64xf32>
    %295 = vector.extract_strided_slice %287 {offsets = [7, 0], sizes = [1, 64], strides = [1, 1]} : vector<16x128xf32> to vector<1x64xf32>
    %296 = vector.extract_strided_slice %287 {offsets = [8, 0], sizes = [1, 32], strides = [1, 1]} : vector<16x128xf32> to vector<1x32xf32>
    %297 = vector.extract_strided_slice %287 {offsets = [9, 0], sizes = [1, 32], strides = [1, 1]} : vector<16x128xf32> to vector<1x32xf32>
    %298 = vector.extract_strided_slice %287 {offsets = [10, 0], sizes = [1, 32], strides = [1, 1]} : vector<16x128xf32> to vector<1x32xf32>
    %cst_89 = arith.constant dense<0.000000e+00> : vector<16x96xf32>
    %299 = tpu.matmul %282, %283, %cst_89 {dimension_numbers = #tpu.dot_dimension_numbers<[1], [0], [0], [1], [0, 0, 1, 1], [], []>} : vector<16x32xf32>, vector<32x96xf32>, vector<16x96xf32> -> vector<16x96xf32>
    %300 = vector.extract_strided_slice %299 {offsets = [0, 0], sizes = [16, 8], strides = [1, 1]} : vector<16x96xf32> to vector<16x8xf32>
    %301 = vector.extract_strided_slice %299 {offsets = [0, 32], sizes = [16, 8], strides = [1, 1]} : vector<16x96xf32> to vector<16x8xf32>
    %302 = vector.extract_strided_slice %299 {offsets = [0, 64], sizes = [16, 8], strides = [1, 1]} : vector<16x96xf32> to vector<16x8xf32>
    %cst_90 = arith.constant dense<0.000000e+00> : vector<16x16xf32>
    %303 = tpu.matmul %300, %301, %cst_90 {dimension_numbers = #tpu.dot_dimension_numbers<[1], [1], [0], [0], [0, 0, 1, 0], [], []>} : vector<16x8xf32>, vector<16x8xf32>, vector<16x16xf32> -> vector<16x16xf32>
    %304 = arith.addf %303, %11 : vector<16x16xf32>
    %cst_91 = arith.constant dense<0xFF800000> : vector<16xf32>
    %305 = vector.multi_reduction <maximumf>, %304, %cst_91 [1] : vector<16x16xf32> to vector<16xf32>
    %306 = vector.shape_cast %305 : vector<16xf32> to vector<16x1xf32>
    %307 = vector.broadcast %306 : vector<16x1xf32> to vector<16x16xf32>
    %308 = arith.subf %304, %307 : vector<16x16xf32>
    %309 = math.exp %308 : vector<16x16xf32>
    %cst_92 = arith.constant dense<0.000000e+00> : vector<16xf32>
    %310 = vector.multi_reduction <add>, %309, %cst_92 [1] : vector<16x16xf32> to vector<16xf32>
    %311 = vector.shape_cast %310 : vector<16xf32> to vector<16x1xf32>
    %312 = tpu.reciprocal %311 {approx = true} : vector<16x1xf32> -> vector<16x1xf32>
    %313 = vector.broadcast %312 : vector<16x1xf32> to vector<16x16xf32>
    %314 = arith.mulf %309, %313 : vector<16x16xf32>
    %cst_93 = arith.constant dense<0.000000e+00> : vector<16x8xf32>
    %315 = tpu.matmul %314, %302, %cst_93 {dimension_numbers = #tpu.dot_dimension_numbers<[1], [0], [0], [1], [0, 0, 1, 1], [], []>} : vector<16x16xf32>, vector<16x8xf32>, vector<16x8xf32> -> vector<16x8xf32>
    %316 = vector.extract_strided_slice %299 {offsets = [0, 8], sizes = [16, 8], strides = [1, 1]} : vector<16x96xf32> to vector<16x8xf32>
    %317 = vector.extract_strided_slice %299 {offsets = [0, 40], sizes = [16, 8], strides = [1, 1]} : vector<16x96xf32> to vector<16x8xf32>
    %318 = vector.extract_strided_slice %299 {offsets = [0, 72], sizes = [16, 8], strides = [1, 1]} : vector<16x96xf32> to vector<16x8xf32>
    %cst_94 = arith.constant dense<0.000000e+00> : vector<16x16xf32>
    %319 = tpu.matmul %316, %317, %cst_94 {dimension_numbers = #tpu.dot_dimension_numbers<[1], [1], [0], [0], [0, 0, 1, 0], [], []>} : vector<16x8xf32>, vector<16x8xf32>, vector<16x16xf32> -> vector<16x16xf32>
    %320 = arith.addf %319, %11 : vector<16x16xf32>
    %cst_95 = arith.constant dense<0xFF800000> : vector<16xf32>
    %321 = vector.multi_reduction <maximumf>, %320, %cst_95 [1] : vector<16x16xf32> to vector<16xf32>
    %322 = vector.shape_cast %321 : vector<16xf32> to vector<16x1xf32>
    %323 = vector.broadcast %322 : vector<16x1xf32> to vector<16x16xf32>
    %324 = arith.subf %320, %323 : vector<16x16xf32>
    %325 = math.exp %324 : vector<16x16xf32>
    %cst_96 = arith.constant dense<0.000000e+00> : vector<16xf32>
    %326 = vector.multi_reduction <add>, %325, %cst_96 [1] : vector<16x16xf32> to vector<16xf32>
    %327 = vector.shape_cast %326 : vector<16xf32> to vector<16x1xf32>
    %328 = tpu.reciprocal %327 {approx = true} : vector<16x1xf32> -> vector<16x1xf32>
    %329 = vector.broadcast %328 : vector<16x1xf32> to vector<16x16xf32>
    %330 = arith.mulf %325, %329 : vector<16x16xf32>
    %cst_97 = arith.constant dense<0.000000e+00> : vector<16x8xf32>
    %331 = tpu.matmul %330, %318, %cst_97 {dimension_numbers = #tpu.dot_dimension_numbers<[1], [0], [0], [1], [0, 0, 1, 1], [], []>} : vector<16x16xf32>, vector<16x8xf32>, vector<16x8xf32> -> vector<16x8xf32>
    %332 = vector.extract_strided_slice %299 {offsets = [0, 16], sizes = [16, 8], strides = [1, 1]} : vector<16x96xf32> to vector<16x8xf32>
    %333 = vector.extract_strided_slice %299 {offsets = [0, 48], sizes = [16, 8], strides = [1, 1]} : vector<16x96xf32> to vector<16x8xf32>
    %334 = vector.extract_strided_slice %299 {offsets = [0, 80], sizes = [16, 8], strides = [1, 1]} : vector<16x96xf32> to vector<16x8xf32>
    %cst_98 = arith.constant dense<0.000000e+00> : vector<16x16xf32>
    %335 = tpu.matmul %332, %333, %cst_98 {dimension_numbers = #tpu.dot_dimension_numbers<[1], [1], [0], [0], [0, 0, 1, 0], [], []>} : vector<16x8xf32>, vector<16x8xf32>, vector<16x16xf32> -> vector<16x16xf32>
    %336 = arith.addf %335, %11 : vector<16x16xf32>
    %cst_99 = arith.constant dense<0xFF800000> : vector<16xf32>
    %337 = vector.multi_reduction <maximumf>, %336, %cst_99 [1] : vector<16x16xf32> to vector<16xf32>
    %338 = vector.shape_cast %337 : vector<16xf32> to vector<16x1xf32>
    %339 = vector.broadcast %338 : vector<16x1xf32> to vector<16x16xf32>
    %340 = arith.subf %336, %339 : vector<16x16xf32>
    %341 = math.exp %340 : vector<16x16xf32>
    %cst_100 = arith.constant dense<0.000000e+00> : vector<16xf32>
    %342 = vector.multi_reduction <add>, %341, %cst_100 [1] : vector<16x16xf32> to vector<16xf32>
    %343 = vector.shape_cast %342 : vector<16xf32> to vector<16x1xf32>
    %344 = tpu.reciprocal %343 {approx = true} : vector<16x1xf32> -> vector<16x1xf32>
    %345 = vector.broadcast %344 : vector<16x1xf32> to vector<16x16xf32>
    %346 = arith.mulf %341, %345 : vector<16x16xf32>
    %cst_101 = arith.constant dense<0.000000e+00> : vector<16x8xf32>
    %347 = tpu.matmul %346, %334, %cst_101 {dimension_numbers = #tpu.dot_dimension_numbers<[1], [0], [0], [1], [0, 0, 1, 1], [], []>} : vector<16x16xf32>, vector<16x8xf32>, vector<16x8xf32> -> vector<16x8xf32>
    %348 = vector.extract_strided_slice %299 {offsets = [0, 24], sizes = [16, 8], strides = [1, 1]} : vector<16x96xf32> to vector<16x8xf32>
    %349 = vector.extract_strided_slice %299 {offsets = [0, 56], sizes = [16, 8], strides = [1, 1]} : vector<16x96xf32> to vector<16x8xf32>
    %350 = vector.extract_strided_slice %299 {offsets = [0, 88], sizes = [16, 8], strides = [1, 1]} : vector<16x96xf32> to vector<16x8xf32>
    %cst_102 = arith.constant dense<0.000000e+00> : vector<16x16xf32>
    %351 = tpu.matmul %348, %349, %cst_102 {dimension_numbers = #tpu.dot_dimension_numbers<[1], [1], [0], [0], [0, 0, 1, 0], [], []>} : vector<16x8xf32>, vector<16x8xf32>, vector<16x16xf32> -> vector<16x16xf32>
    %352 = arith.addf %351, %11 : vector<16x16xf32>
    %cst_103 = arith.constant dense<0xFF800000> : vector<16xf32>
    %353 = vector.multi_reduction <maximumf>, %352, %cst_103 [1] : vector<16x16xf32> to vector<16xf32>
    %354 = vector.shape_cast %353 : vector<16xf32> to vector<16x1xf32>
    %355 = vector.broadcast %354 : vector<16x1xf32> to vector<16x16xf32>
    %356 = arith.subf %352, %355 : vector<16x16xf32>
    %357 = math.exp %356 : vector<16x16xf32>
    %cst_104 = arith.constant dense<0.000000e+00> : vector<16xf32>
    %358 = vector.multi_reduction <add>, %357, %cst_104 [1] : vector<16x16xf32> to vector<16xf32>
    %359 = vector.shape_cast %358 : vector<16xf32> to vector<16x1xf32>
    %360 = tpu.reciprocal %359 {approx = true} : vector<16x1xf32> -> vector<16x1xf32>
    %361 = vector.broadcast %360 : vector<16x1xf32> to vector<16x16xf32>
    %362 = arith.mulf %357, %361 : vector<16x16xf32>
    %cst_105 = arith.constant dense<0.000000e+00> : vector<16x8xf32>
    %363 = tpu.matmul %362, %350, %cst_105 {dimension_numbers = #tpu.dot_dimension_numbers<[1], [0], [0], [1], [0, 0, 1, 1], [], []>} : vector<16x16xf32>, vector<16x8xf32>, vector<16x8xf32> -> vector<16x8xf32>
    %364 = tpu.concatenate %315, %331, %347, %363 in 1 : vector<16x8xf32>, vector<16x8xf32>, vector<16x8xf32>, vector<16x8xf32> -> vector<16x32xf32>
    %cst_106 = arith.constant dense<0.000000e+00> : vector<16x32xf32>
    %365 = tpu.matmul %364, %284, %cst_106 {dimension_numbers = #tpu.dot_dimension_numbers<[1], [0], [0], [1], [0, 0, 1, 1], [], []>} : vector<16x32xf32>, vector<32x32xf32>, vector<16x32xf32> -> vector<16x32xf32>
    %366 = vector.broadcast %288 : vector<1x32xf32> to vector<16x32xf32>
    %367 = arith.addf %365, %366 : vector<16x32xf32>
    %368 = arith.addf %367, %282 : vector<16x32xf32>
    %cst_107 = arith.constant dense<0.000000e+00> : vector<16xf32>
    %369 = vector.multi_reduction <add>, %368, %cst_107 [1] : vector<16x32xf32> to vector<16xf32>
    %370 = vector.shape_cast %369 : vector<16xf32> to vector<16x1xf32>
    %cst_108 = arith.constant 3.200000e+01 : f32
    %371 = vector.broadcast %cst_108 : f32 to vector<16x1xf32>
    %372 = arith.divf %370, %371 : vector<16x1xf32>
    %373 = vector.broadcast %372 : vector<16x1xf32> to vector<16x32xf32>
    %374 = arith.subf %368, %373 : vector<16x32xf32>
    %375 = vector.broadcast %372 : vector<16x1xf32> to vector<16x32xf32>
    %376 = arith.subf %368, %375 : vector<16x32xf32>
    %377 = arith.mulf %374, %376 : vector<16x32xf32>
    %cst_109 = arith.constant dense<0.000000e+00> : vector<16xf32>
    %378 = vector.multi_reduction <add>, %377, %cst_109 [1] : vector<16x32xf32> to vector<16xf32>
    %379 = vector.shape_cast %378 : vector<16xf32> to vector<16x1xf32>
    %cst_110 = arith.constant 3.200000e+01 : f32
    %380 = vector.broadcast %cst_110 : f32 to vector<16x1xf32>
    %381 = arith.divf %379, %380 : vector<16x1xf32>
    %382 = vector.broadcast %372 : vector<16x1xf32> to vector<16x32xf32>
    %383 = arith.subf %368, %382 : vector<16x32xf32>
    %cst_111 = arith.constant 9.99999974E-6 : f32
    %384 = vector.broadcast %cst_111 : f32 to vector<16x1xf32>
    %385 = arith.addf %381, %384 : vector<16x1xf32>
    %386 = math.rsqrt %385 : vector<16x1xf32>
    %387 = vector.broadcast %386 : vector<16x1xf32> to vector<16x32xf32>
    %388 = arith.mulf %383, %387 : vector<16x32xf32>
    %389 = vector.broadcast %289 : vector<1x32xf32> to vector<16x32xf32>
    %390 = arith.mulf %388, %389 : vector<16x32xf32>
    %391 = vector.broadcast %290 : vector<1x32xf32> to vector<16x32xf32>
    %392 = arith.addf %390, %391 : vector<16x32xf32>
    %cst_112 = arith.constant 5.000000e-01 : f32
    %393 = vector.broadcast %cst_112 : f32 to vector<16x32xf32>
    %394 = arith.mulf %393, %392 : vector<16x32xf32>
    %cst_113 = arith.constant 0.707106769 : f32
    %395 = vector.broadcast %cst_113 : f32 to vector<16x32xf32>
    %396 = arith.mulf %392, %395 : vector<16x32xf32>
    %cst_114 = arith.constant 0.000000e+00 : f32
    %397 = vector.broadcast %cst_114 : f32 to vector<16x32xf32>
    %398 = arith.cmpf oge, %396, %397 : vector<16x32xf32>
    %cst_115 = arith.constant 1.000000e+00 : f32
    %cst_116 = arith.constant -1.000000e+00 : f32
    %399 = vector.broadcast %cst_115 : f32 to vector<16x32xf32>
    %400 = vector.broadcast %cst_116 : f32 to vector<16x32xf32>
    %401 = arith.select %398, %399, %400 : vector<16x32xi1>, vector<16x32xf32>
    %402 = math.absf %396 : vector<16x32xf32>
    %cst_117 = arith.constant 0.327591091 : f32
    %403 = vector.broadcast %cst_117 : f32 to vector<16x32xf32>
    %404 = arith.mulf %403, %402 : vector<16x32xf32>
    %cst_118 = arith.constant 1.000000e+00 : f32
    %405 = vector.broadcast %cst_118 : f32 to vector<16x32xf32>
    %406 = arith.addf %405, %404 : vector<16x32xf32>
    %cst_119 = arith.constant 1.000000e+00 : f32
    %407 = vector.broadcast %cst_119 : f32 to vector<16x32xf32>
    %408 = arith.divf %407, %406 : vector<16x32xf32>
    %cst_120 = arith.constant 1.06140542 : f32
    %409 = vector.broadcast %cst_120 : f32 to vector<16x32xf32>
    %410 = arith.mulf %409, %408 : vector<16x32xf32>
    %cst_121 = arith.constant -1.45315206 : f32
    %411 = vector.broadcast %cst_121 : f32 to vector<16x32xf32>
    %412 = arith.addf %410, %411 : vector<16x32xf32>
    %413 = arith.mulf %412, %408 : vector<16x32xf32>
    %cst_122 = arith.constant 1.42141378 : f32
    %414 = vector.broadcast %cst_122 : f32 to vector<16x32xf32>
    %415 = arith.addf %413, %414 : vector<16x32xf32>
    %416 = arith.mulf %415, %408 : vector<16x32xf32>
    %cst_123 = arith.constant -0.284496725 : f32
    %417 = vector.broadcast %cst_123 : f32 to vector<16x32xf32>
    %418 = arith.addf %416, %417 : vector<16x32xf32>
    %419 = arith.mulf %418, %408 : vector<16x32xf32>
    %cst_124 = arith.constant 0.254829586 : f32
    %420 = vector.broadcast %cst_124 : f32 to vector<16x32xf32>
    %421 = arith.addf %419, %420 : vector<16x32xf32>
    %422 = arith.mulf %421, %408 : vector<16x32xf32>
    %cst_125 = arith.constant 0.000000e+00 : f32
    %423 = vector.broadcast %cst_125 : f32 to vector<16x32xf32>
    %424 = arith.subf %423, %402 : vector<16x32xf32>
    %425 = arith.mulf %424, %402 : vector<16x32xf32>
    %426 = math.exp %425 : vector<16x32xf32>
    %427 = arith.mulf %422, %426 : vector<16x32xf32>
    %cst_126 = arith.constant 1.000000e+00 : f32
    %428 = vector.broadcast %cst_126 : f32 to vector<16x32xf32>
    %429 = arith.subf %428, %427 : vector<16x32xf32>
    %430 = arith.mulf %401, %429 : vector<16x32xf32>
    %cst_127 = arith.constant 1.000000e+00 : f32
    %431 = vector.broadcast %cst_127 : f32 to vector<16x32xf32>
    %432 = arith.addf %431, %430 : vector<16x32xf32>
    %433 = arith.mulf %394, %432 : vector<16x32xf32>
    %cst_128 = arith.constant dense<0.000000e+00> : vector<16xf32>
    %434 = vector.multi_reduction <add>, %433, %cst_128 [1] : vector<16x32xf32> to vector<16xf32>
    %435 = vector.shape_cast %434 : vector<16xf32> to vector<16x1xf32>
    %cst_129 = arith.constant 3.200000e+01 : f32
    %436 = vector.broadcast %cst_129 : f32 to vector<16x1xf32>
    %437 = arith.divf %435, %436 : vector<16x1xf32>
    %438 = vector.broadcast %437 : vector<16x1xf32> to vector<16x32xf32>
    %439 = arith.subf %433, %438 : vector<16x32xf32>
    %440 = vector.broadcast %437 : vector<16x1xf32> to vector<16x32xf32>
    %441 = arith.subf %433, %440 : vector<16x32xf32>
    %442 = arith.mulf %439, %441 : vector<16x32xf32>
    %cst_130 = arith.constant dense<0.000000e+00> : vector<16xf32>
    %443 = vector.multi_reduction <add>, %442, %cst_130 [1] : vector<16x32xf32> to vector<16xf32>
    %444 = vector.shape_cast %443 : vector<16xf32> to vector<16x1xf32>
    %cst_131 = arith.constant 3.200000e+01 : f32
    %445 = vector.broadcast %cst_131 : f32 to vector<16x1xf32>
    %446 = arith.divf %444, %445 : vector<16x1xf32>
    %447 = vector.broadcast %437 : vector<16x1xf32> to vector<16x32xf32>
    %448 = arith.subf %433, %447 : vector<16x32xf32>
    %cst_132 = arith.constant 9.99999974E-6 : f32
    %449 = vector.broadcast %cst_132 : f32 to vector<16x1xf32>
    %450 = arith.addf %446, %449 : vector<16x1xf32>
    %451 = math.rsqrt %450 : vector<16x1xf32>
    %452 = vector.broadcast %451 : vector<16x1xf32> to vector<16x32xf32>
    %453 = arith.mulf %448, %452 : vector<16x32xf32>
    %454 = vector.broadcast %291 : vector<1x32xf32> to vector<16x32xf32>
    %455 = arith.mulf %453, %454 : vector<16x32xf32>
    %456 = vector.broadcast %292 : vector<1x32xf32> to vector<16x32xf32>
    %457 = arith.addf %455, %456 : vector<16x32xf32>
    %cst_133 = arith.constant dense<0.000000e+00> : vector<16x64xf32>
    %458 = tpu.matmul %457, %285, %cst_133 {dimension_numbers = #tpu.dot_dimension_numbers<[1], [0], [0], [1], [0, 0, 1, 1], [], []>} : vector<16x32xf32>, vector<32x64xf32>, vector<16x64xf32> -> vector<16x64xf32>
    %459 = vector.broadcast %293 : vector<1x64xf32> to vector<16x64xf32>
    %460 = arith.addf %458, %459 : vector<16x64xf32>
    %cst_134 = arith.constant 5.000000e-01 : f32
    %461 = vector.broadcast %cst_134 : f32 to vector<16x64xf32>
    %462 = arith.mulf %461, %460 : vector<16x64xf32>
    %cst_135 = arith.constant 0.707106769 : f32
    %463 = vector.broadcast %cst_135 : f32 to vector<16x64xf32>
    %464 = arith.mulf %460, %463 : vector<16x64xf32>
    %cst_136 = arith.constant 0.000000e+00 : f32
    %465 = vector.broadcast %cst_136 : f32 to vector<16x64xf32>
    %466 = arith.cmpf oge, %464, %465 : vector<16x64xf32>
    %cst_137 = arith.constant 1.000000e+00 : f32
    %cst_138 = arith.constant -1.000000e+00 : f32
    %467 = vector.broadcast %cst_137 : f32 to vector<16x64xf32>
    %468 = vector.broadcast %cst_138 : f32 to vector<16x64xf32>
    %469 = arith.select %466, %467, %468 : vector<16x64xi1>, vector<16x64xf32>
    %470 = math.absf %464 : vector<16x64xf32>
    %cst_139 = arith.constant 0.327591091 : f32
    %471 = vector.broadcast %cst_139 : f32 to vector<16x64xf32>
    %472 = arith.mulf %471, %470 : vector<16x64xf32>
    %cst_140 = arith.constant 1.000000e+00 : f32
    %473 = vector.broadcast %cst_140 : f32 to vector<16x64xf32>
    %474 = arith.addf %473, %472 : vector<16x64xf32>
    %cst_141 = arith.constant 1.000000e+00 : f32
    %475 = vector.broadcast %cst_141 : f32 to vector<16x64xf32>
    %476 = arith.divf %475, %474 : vector<16x64xf32>
    %cst_142 = arith.constant 1.06140542 : f32
    %477 = vector.broadcast %cst_142 : f32 to vector<16x64xf32>
    %478 = arith.mulf %477, %476 : vector<16x64xf32>
    %cst_143 = arith.constant -1.45315206 : f32
    %479 = vector.broadcast %cst_143 : f32 to vector<16x64xf32>
    %480 = arith.addf %478, %479 : vector<16x64xf32>
    %481 = arith.mulf %480, %476 : vector<16x64xf32>
    %cst_144 = arith.constant 1.42141378 : f32
    %482 = vector.broadcast %cst_144 : f32 to vector<16x64xf32>
    %483 = arith.addf %481, %482 : vector<16x64xf32>
    %484 = arith.mulf %483, %476 : vector<16x64xf32>
    %cst_145 = arith.constant -0.284496725 : f32
    %485 = vector.broadcast %cst_145 : f32 to vector<16x64xf32>
    %486 = arith.addf %484, %485 : vector<16x64xf32>
    %487 = arith.mulf %486, %476 : vector<16x64xf32>
    %cst_146 = arith.constant 0.254829586 : f32
    %488 = vector.broadcast %cst_146 : f32 to vector<16x64xf32>
    %489 = arith.addf %487, %488 : vector<16x64xf32>
    %490 = arith.mulf %489, %476 : vector<16x64xf32>
    %cst_147 = arith.constant 0.000000e+00 : f32
    %491 = vector.broadcast %cst_147 : f32 to vector<16x64xf32>
    %492 = arith.subf %491, %470 : vector<16x64xf32>
    %493 = arith.mulf %492, %470 : vector<16x64xf32>
    %494 = math.exp %493 : vector<16x64xf32>
    %495 = arith.mulf %490, %494 : vector<16x64xf32>
    %cst_148 = arith.constant 1.000000e+00 : f32
    %496 = vector.broadcast %cst_148 : f32 to vector<16x64xf32>
    %497 = arith.subf %496, %495 : vector<16x64xf32>
    %498 = arith.mulf %469, %497 : vector<16x64xf32>
    %cst_149 = arith.constant 1.000000e+00 : f32
    %499 = vector.broadcast %cst_149 : f32 to vector<16x64xf32>
    %500 = arith.addf %499, %498 : vector<16x64xf32>
    %501 = arith.mulf %462, %500 : vector<16x64xf32>
    %cst_150 = arith.constant dense<0.000000e+00> : vector<16xf32>
    %502 = vector.multi_reduction <add>, %501, %cst_150 [1] : vector<16x64xf32> to vector<16xf32>
    %503 = vector.shape_cast %502 : vector<16xf32> to vector<16x1xf32>
    %cst_151 = arith.constant 6.400000e+01 : f32
    %504 = vector.broadcast %cst_151 : f32 to vector<16x1xf32>
    %505 = arith.divf %503, %504 : vector<16x1xf32>
    %506 = vector.broadcast %505 : vector<16x1xf32> to vector<16x64xf32>
    %507 = arith.subf %501, %506 : vector<16x64xf32>
    %508 = vector.broadcast %505 : vector<16x1xf32> to vector<16x64xf32>
    %509 = arith.subf %501, %508 : vector<16x64xf32>
    %510 = arith.mulf %507, %509 : vector<16x64xf32>
    %cst_152 = arith.constant dense<0.000000e+00> : vector<16xf32>
    %511 = vector.multi_reduction <add>, %510, %cst_152 [1] : vector<16x64xf32> to vector<16xf32>
    %512 = vector.shape_cast %511 : vector<16xf32> to vector<16x1xf32>
    %cst_153 = arith.constant 6.400000e+01 : f32
    %513 = vector.broadcast %cst_153 : f32 to vector<16x1xf32>
    %514 = arith.divf %512, %513 : vector<16x1xf32>
    %515 = vector.broadcast %505 : vector<16x1xf32> to vector<16x64xf32>
    %516 = arith.subf %501, %515 : vector<16x64xf32>
    %cst_154 = arith.constant 9.99999974E-6 : f32
    %517 = vector.broadcast %cst_154 : f32 to vector<16x1xf32>
    %518 = arith.addf %514, %517 : vector<16x1xf32>
    %519 = math.rsqrt %518 : vector<16x1xf32>
    %520 = vector.broadcast %519 : vector<16x1xf32> to vector<16x64xf32>
    %521 = arith.mulf %516, %520 : vector<16x64xf32>
    %522 = vector.broadcast %294 : vector<1x64xf32> to vector<16x64xf32>
    %523 = arith.mulf %521, %522 : vector<16x64xf32>
    %524 = vector.broadcast %295 : vector<1x64xf32> to vector<16x64xf32>
    %525 = arith.addf %523, %524 : vector<16x64xf32>
    %cst_155 = arith.constant dense<0.000000e+00> : vector<16x32xf32>
    %526 = tpu.matmul %525, %286, %cst_155 {dimension_numbers = #tpu.dot_dimension_numbers<[1], [0], [0], [1], [0, 0, 1, 1], [], []>} : vector<16x64xf32>, vector<64x32xf32>, vector<16x32xf32> -> vector<16x32xf32>
    %527 = vector.broadcast %296 : vector<1x32xf32> to vector<16x32xf32>
    %528 = arith.addf %526, %527 : vector<16x32xf32>
    %529 = arith.addf %528, %282 : vector<16x32xf32>
    %cst_156 = arith.constant dense<0.000000e+00> : vector<16xf32>
    %530 = vector.multi_reduction <add>, %529, %cst_156 [1] : vector<16x32xf32> to vector<16xf32>
    %531 = vector.shape_cast %530 : vector<16xf32> to vector<16x1xf32>
    %cst_157 = arith.constant 3.200000e+01 : f32
    %532 = vector.broadcast %cst_157 : f32 to vector<16x1xf32>
    %533 = arith.divf %531, %532 : vector<16x1xf32>
    %534 = vector.broadcast %533 : vector<16x1xf32> to vector<16x32xf32>
    %535 = arith.subf %529, %534 : vector<16x32xf32>
    %536 = vector.broadcast %533 : vector<16x1xf32> to vector<16x32xf32>
    %537 = arith.subf %529, %536 : vector<16x32xf32>
    %538 = arith.mulf %535, %537 : vector<16x32xf32>
    %cst_158 = arith.constant dense<0.000000e+00> : vector<16xf32>
    %539 = vector.multi_reduction <add>, %538, %cst_158 [1] : vector<16x32xf32> to vector<16xf32>
    %540 = vector.shape_cast %539 : vector<16xf32> to vector<16x1xf32>
    %cst_159 = arith.constant 3.200000e+01 : f32
    %541 = vector.broadcast %cst_159 : f32 to vector<16x1xf32>
    %542 = arith.divf %540, %541 : vector<16x1xf32>
    %543 = vector.broadcast %533 : vector<16x1xf32> to vector<16x32xf32>
    %544 = arith.subf %529, %543 : vector<16x32xf32>
    %cst_160 = arith.constant 9.99999974E-6 : f32
    %545 = vector.broadcast %cst_160 : f32 to vector<16x1xf32>
    %546 = arith.addf %542, %545 : vector<16x1xf32>
    %547 = math.rsqrt %546 : vector<16x1xf32>
    %548 = vector.broadcast %547 : vector<16x1xf32> to vector<16x32xf32>
    %549 = arith.mulf %544, %548 : vector<16x32xf32>
    %550 = vector.broadcast %297 : vector<1x32xf32> to vector<16x32xf32>
    %551 = arith.mulf %549, %550 : vector<16x32xf32>
    %552 = vector.broadcast %298 : vector<1x32xf32> to vector<16x32xf32>
    %553 = arith.addf %551, %552 : vector<16x32xf32>
    %c104 = arith.constant 104 : index
    %c0_161 = arith.constant 0 : index
    %554 = vector.load %arg1[%c104, %c0_161] : memref<496x128xf32, #tpu.memory_space<vmem>>, vector<32x64xf32>
    %c136 = arith.constant 136 : index
    %c0_162 = arith.constant 0 : index
    %555 = vector.load %arg1[%c136, %c0_162] : memref<496x128xf32, #tpu.memory_space<vmem>>, vector<1x64xf32>
    %cst_163 = arith.constant dense<0.000000e+00> : vector<16x64xf32>
    %556 = tpu.matmul %553, %554, %cst_163 {dimension_numbers = #tpu.dot_dimension_numbers<[1], [0], [0], [1], [0, 0, 1, 1], [], []>} : vector<16x32xf32>, vector<32x64xf32>, vector<16x64xf32> -> vector<16x64xf32>
    %557 = vector.broadcast %555 : vector<1x64xf32> to vector<16x64xf32>
    %558 = arith.addf %556, %557 : vector<16x64xf32>
    %c96 = arith.constant 96 : index
    %c0_164 = arith.constant 0 : index
    %559 = vector.load %arg1[%c96, %c0_164] : memref<496x128xf32, #tpu.memory_space<vmem>>, vector<2x16xf32>
    %cst_165 = arith.constant dense<0.000000e+00> : vector<2x64xf32>
    %560 = tpu.matmul %559, %558, %cst_165 {dimension_numbers = #tpu.dot_dimension_numbers<[1], [0], [0], [1], [0, 0, 1, 1], [], []>} : vector<2x16xf32>, vector<16x64xf32>, vector<2x64xf32> -> vector<2x64xf32>
    %c0_166 = arith.constant 0 : index
    %c0_167 = arith.constant 0 : index
    %561 = vector.load %arg2[%c0_166, %c0_167] : memref<2x64xf32, #tpu.memory_space<vmem>>, vector<2x64xf32>
    tpu.vector_store %arg2[%c0_166, %c0_167], %560 {strides = array<i32>} : memref<2x64xf32, #tpu.memory_space<vmem>>, vector<2x64xf32>,
    return
  }
}

</mosaic_0001>

<llo_original>
// kernel: forward.1
$region0: #{forward.1}
  #allocation0 [shape = 'u32[]', space=smem, size = 0x4, offset = 0x4, fixed_abs, tag = 'smem constant byte address 0x4 - core index']
  #allocation1 [shape = 'u32[144,128]{1,0:T(1,128)}', space=vmem, size = 0x12000, scoped, tag = 'internal scratch']
  %s0 = inlined_call_operand.vmem [shape: s32[16,1], index: 0, kind: input, shape index: {}]
  %s1 = inlined_call_operand.hbm [shape: f32[496,128], index: 1, kind: input, shape index: {}]
  %s2 = inlined_call_operand.hbm [shape: f32[2,64], index: 2, kind: output, shape index: {}]
  %s3 = sld [smem:[#allocation0]]
  $region22: #{forward.1} parent=0
    _
  %s5 = ssub.s32 1, %s3
  %s6 = scalar_select 0, %s5, %s3
  $region1: #{forward.1} parent=0
    #allocation2 [shape = 'u8[253952]{0}', space=vmem, size = 0x3e000, scoped, tag = 'input window, operand 1, single buffered']
    #allocation3 [shape = 's32[1]{0}', space=sflag, size = 0x4, scoped, tag = 'scoped memory for forward.1']
    #allocation4 [shape = 's32[1]{0}', space=sflag, size = 0x4, scoped, tag = 'scoped memory for forward.1']
    #allocation5 [shape = 'u8[1024]{0}', space=vmem, size = 0x400, scoped, tag = 'output window, operand 0, single buffered']
    %7 = vsyncpa [#allocation3], 0
    %8 = vsyncpa [#allocation4], 0
    // Predicated region
    $region2: #{forward.1} parent=1 // pred_check
      _
    $region3: #{forward.1} parent=1 // pred_check_branch
      %10 = sbr.rel (0) target = $region5
    $region4: #{forward.1} parent=1 // pred_region
      _
    $region5: #{forward.1} parent=1 // pred_fallthru
      _
    // Predicated region
    $region6: #{forward.1} parent=1 // pred_check
      _
    $region7: #{forward.1} parent=1 // pred_check_branch
      %12 = sbr.rel (0) target = $region9
    $region8: #{forward.1} parent=1 // pred_region
      %s14 = ssub.s32 7936, 7936
      %15 = vsyncadd [#allocation3], %s14
      %s16 = sshll.u32 [#allocation2], 4
      %s17 = int_to_ptr.vmem [resolvable:$true] %s16
      %22 = dma.hbm_to_vmem [thread:$0]  %s1, 7936, %s17, [#allocation3], 128, 128, 8
    $region9: #{forward.1} parent=1 // pred_fallthru
      _
    // Predicated region
    $region10: #{forward.1} parent=1 // pred_check
      _
    $region11: #{forward.1} parent=1 // pred_check_branch
      %24 = sbr.rel (0) target = $region13
    $region12: #{forward.1} parent=1 // pred_region
      %25 = dma.done [#allocation3], 7936
    $region13: #{forward.1} parent=1 // pred_fallthru
      _
    %v26 = vld [vmem:[%s0] sm:$0xff]
    %v27 = vld [vmem:[%s0 + $0x8] sm:$0xff]
    %v28 = vlaneseq
    %v29 = vand.u32 %v28, 127
    %30 = vset.pattern.permute.xlu0 0
    %31 = vperm.xlu0 %30, %v26
    %v32 = vpop.permute.xlu0 %31
    %33 = vset.pattern.permute.xlu0 0
    %34 = vperm.xlu0 %33, %v27
    %v35 = vpop.permute.xlu0 %34
    %vm36 = vcmp.eq.s32.totalorder %v32, %v29
    %vm37 = vcmp.eq.s32.totalorder %v35, %v29
    %v38 = vsel %vm36, 1.0, 0.0
    %v39 = vsel %vm37, 1.0, 0.0
    %v40 = vld [vmem:[#allocation2] sm:$0xff]
    %v41 = vld [vmem:[#allocation2 + $0x8] sm:$0xff]
    %v42 = vld [vmem:[#allocation2 + $0x10] sm:$0xff]
    %v43 = vld [vmem:[#allocation2 + $0x18] sm:$0xff]
    %v44 = vld [vmem:[#allocation2 + $0x20] sm:$0xff]
    %v45 = vld [vmem:[#allocation2 + $0x28] sm:$0xff]
    %v46 = vld [vmem:[#allocation2 + $0x30] sm:$0xff]
    %v47 = vld [vmem:[#allocation2 + $0x38] sm:$0xff]
    %v48 = vld [vmem:[#allocation2 + $0x40] sm:$0xff]
    %v49 = vld [vmem:[#allocation2 + $0x48] sm:$0xff]
    %vm50 = vcmask 523264
    %v52 = vsel %vm50, %v38, 0
    %v55 = vsel %vm50, %v39, 0
    %57 = vmatprep.subr.mxu0 0.0
    %58 = vmatpush1.msra.mxu0 %v40
    %59 = vmatprep.subr.mxu0 0.0
    %60 = vmatpush1.msra.mxu0 %v41
    %61 = vmatprep.subr.mxu0 0.0
    %62 = vmatpush1.msra.mxu0 %v42
    %63 = vmatprep.subr.mxu0 0.0
    %64 = vmatpush1.msra.mxu0 %v43
    %65 = vmatprep.subr.mxu0 0.0
    %66 = vmatpush1.msra.mxu0 %v44
    %67 = vmatprep.subr.mxu0 0.0
    %68 = vmatpush1.msra.mxu0 %v45
    %69 = vmatprep.subr.mxu0 0.0
    %70 = vmatpush1.msra.mxu0 %v46
    %71 = vmatprep.subr.mxu0 0.0
    %72 = vmatpush1.msra.mxu0 %v47
    %73 = vmatprep.subr.mxu0 0.0
    %74 = vmatpush1.msra.mxu0 0.0
    %75 = vmatprep.subr.mxu0 0.0
    %76 = vmatpush1.msra.mxu0 0.0
    %77 = vmatprep.subr.mxu0 0.0
    %78 = vmatpush1.msra.mxu0 0.0
    %79 = vmatprep.subr.mxu0 0.0
    %80 = vmatpush1.msra.mxu0 0.0
    %81 = vmatprep.subr.mxu0 0.0
    %82 = vmatpush1.msra.mxu0 0.0
    %83 = vmatprep.subr.mxu0 0.0
    %84 = vmatpush1.msra.mxu0 0.0
    %85 = vmatprep.subr.mxu0 0.0
    %86 = vmatpush1.msra.mxu0 0.0
    %87 = vmatprep.subr.mxu0 0.0
    %88 = vmatpush1.msra.mxu0 0.0
    %89 = vmatprep.subr.mxu0 0.0
    %90 = vmatpush1.msra.mxu0 0.0
    %91 = vmatprep.subr.mxu0 0.0
    %92 = vmatpush1.msra.mxu0 0.0
    %93 = vmatprep.subr.mxu0 0.0
    %94 = vmatpush1.msra.mxu0 0.0
    %95 = vmatprep.subr.mxu0 0.0
    %96 = vmatpush1.msra.mxu0 0.0
    %97 = vmatprep.subr.mxu0 0.0
    %98 = vmatpush1.msra.mxu0 0.0
    %99 = vmatprep.subr.mxu0 0.0
    %100 = vmatpush1.msra.mxu0 0.0
    %101 = vmatprep.subr.mxu0 0.0
    %102 = vmatpush1.msra.mxu0 0.0
    %103 = vmatprep.subr.mxu0 0.0
    %104 = vmatpush1.msra.mxu0 0.0
    %105 = vmatprep.subr.mxu0 0.0
    %106 = vmatpush1.msra.mxu0 0.0
    %107 = vmatprep.subr.mxu0 0.0
    %108 = vmatpush1.msra.mxu0 0.0
    %109 = vmatprep.subr.mxu0 0.0
    %110 = vmatpush1.msra.mxu0 0.0
    %111 = vmatprep.subr.mxu0 0.0
    %112 = vmatpush1.msra.mxu0 0.0
    %113 = vmatprep.subr.mxu0 0.0
    %114 = vmatpush1.msra.mxu0 0.0
    %115 = vmatprep.subr.mxu0 0.0
    %116 = vmatpush1.msra.mxu0 0.0
    %117 = vmatprep.subr.mxu0 0.0
    %118 = vmatpush1.msra.mxu0 0.0
    %119 = vmatprep.subr.mxu0 0.0
    %120 = vmatpush1.msra.mxu0 0.0
    %121 = vmatprep.mubr.f32.mxu0 0.0
    %122 = vmatmul.mubr.f32.gmra.mrb[0].mxu0 %v52
    %v123 = vpop.f32.mrb[0].mxu0
    %v124 = vadd.f32 %v48, %v123
    %v125 = vpop.f32.mrb[0].mxu0
    %126 = vmatprep.mubr.f32.mxu0 0.0
    %127 = vmatmul.mubr.f32.gmra.mrb[0].mxu0 %v55
    %v128 = vpop.f32.mrb[0].mxu0
    %v129 = vadd.f32 %v49, %v128
    %v130 = vpop.f32.mrb[0].mxu0
    %131 = vdwg.mxu0
    %v132 = vld [vmem:[#allocation2 + $0x50] sm:$0xff]
    %v133 = vld [vmem:[#allocation2 + $0x58] sm:$0xff]
    %v134 = vld [vmem:[#allocation2 + $0x90] sm:$0xff]
    %v135 = vld [vmem:[#allocation2 + $0x98] sm:$0xff]
    %v136 = vld [vmem:[#allocation2 + $0xa0] sm:$0xff]
    %v137 = vld [vmem:[#allocation2 + $0xa8] sm:$0xff]
    %v138 = vld [vmem:[#allocation2 + $0xb0] sm:$0xff]
    %v139 = vld [vmem:[#allocation2 + $0xb8] sm:$0xff]
    %v140 = vld [vmem:[#allocation2 + $0xc0] sm:$0xff]
    %v141 = vld [vmem:[#allocation2 + $0xc8] sm:$0xff]
    %v142 = vld [vmem:[#allocation2 + $0xd0] sm:$0xff]
    %v143 = vld [vmem:[#allocation2 + $0xd8] sm:$0xff]
    %v144 = vld [vmem:[#allocation2 + $0xe0] sm:$0xff]
    %v145 = vld [vmem:[#allocation2 + $0xe8] sm:$0xff]
    %v146 = vld [vmem:[#allocation2 + $0xf0] sm:$0xff]
    %v147 = vld [vmem:[#allocation2 + $0xf8] sm:$0xff]
    %v148 = vld [vmem:[#allocation2 + $0x100] sm:$0xff]
    %v149 = vld [vmem:[#allocation2 + $0x108] sm:$0xff]
    %v150 = vld [vmem:[#allocation2 + $0x110] sm:$0xff]
    %v151 = vld [vmem:[#allocation2 + $0x118] sm:$0xff]
    %v152 = vld [vmem:[#allocation2 + $0x120] sm:$0xff]
    %v153 = vld [vmem:[#allocation2 + $0x128] sm:$0xff]
    %v154 = vld [vmem:[#allocation2 + $0x130] sm:$0xff]
    %v155 = vld [vmem:[#allocation2 + $0x138] sm:$0xff]
    %vm156 = vcmask 261120
    %v158 = vsel %vm156, %v124, 0
    %v161 = vsel %vm156, %v129, 0
    %163 = vmatprep.subr.mxu0 0.0
    %164 = vmatpush1.msra.mxu0 %v134
    %165 = vmatprep.subr.mxu0 0.0
    %166 = vmatpush1.msra.mxu0 %v135
    %167 = vmatprep.subr.mxu0 0.0
    %168 = vmatpush1.msra.mxu0 %v136
    %169 = vmatprep.subr.mxu0 0.0
    %170 = vmatpush1.msra.mxu0 %v137
    %171 = vmatprep.subr.mxu0 0.0
    %172 = vmatpush1.msra.mxu0 0.0
    %173 = vmatprep.subr.mxu0 0.0
    %174 = vmatpush1.msra.mxu0 0.0
    %175 = vmatprep.subr.mxu0 0.0
    %176 = vmatpush1.msra.mxu0 0.0
    %177 = vmatprep.subr.mxu0 0.0
    %178 = vmatpush1.msra.mxu0 0.0
    %179 = vmatprep.subr.mxu0 0.0
    %180 = vmatpush1.msra.mxu0 0.0
    %181 = vmatprep.subr.mxu0 0.0
    %182 = vmatpush1.msra.mxu0 0.0
    %183 = vmatprep.subr.mxu0 0.0
    %184 = vmatpush1.msra.mxu0 0.0
    %185 = vmatprep.subr.mxu0 0.0
    %186 = vmatpush1.msra.mxu0 0.0
    %187 = vmatprep.subr.mxu0 0.0
    %188 = vmatpush1.msra.mxu0 0.0
    %189 = vmatprep.subr.mxu0 0.0
    %190 = vmatpush1.msra.mxu0 0.0
    %191 = vmatprep.subr.mxu0 0.0
    %192 = vmatpush1.msra.mxu0 0.0
    %193 = vmatprep.subr.mxu0 0.0
    %194 = vmatpush1.msra.mxu0 0.0
    %195 = vmatprep.subr.mxu0 0.0
    %196 = vmatpush1.msra.mxu0 0.0
    %197 = vmatprep.subr.mxu0 0.0
    %198 = vmatpush1.msra.mxu0 0.0
    %199 = vmatprep.subr.mxu0 0.0
    %200 = vmatpush1.msra.mxu0 0.0
    %201 = vmatprep.subr.mxu0 0.0
    %202 = vmatpush1.msra.mxu0 0.0
    %203 = vmatprep.subr.mxu0 0.0
    %204 = vmatpush1.msra.mxu0 0.0
    %205 = vmatprep.subr.mxu0 0.0
    %206 = vmatpush1.msra.mxu0 0.0
    %207 = vmatprep.subr.mxu0 0.0
    %208 = vmatpush1.msra.mxu0 0.0
    %209 = vmatprep.subr.mxu0 0.0
    %210 = vmatpush1.msra.mxu0 0.0
    %211 = vmatprep.subr.mxu0 0.0
    %212 = vmatpush1.msra.mxu0 0.0
    %213 = vmatprep.subr.mxu0 0.0
    %214 = vmatpush1.msra.mxu0 0.0
    %215 = vmatprep.subr.mxu0 0.0
    %216 = vmatpush1.msra.mxu0 0.0
    %217 = vmatprep.subr.mxu0 0.0
    %218 = vmatpush1.msra.mxu0 0.0
    %219 = vmatprep.subr.mxu0 0.0
    %220 = vmatpush1.msra.mxu0 0.0
    %221 = vmatprep.subr.mxu0 0.0
    %222 = vmatpush1.msra.mxu0 0.0
    %223 = vmatprep.subr.mxu0 0.0
    %224 = vmatpush1.msra.mxu0 0.0
    %225 = vmatprep.subr.mxu0 0.0
    %226 = vmatpush1.msra.mxu0 0.0
    %227 = vmatprep.mubr.f32.mxu0 0.0
    %228 = vmatmul.mubr.f32.gmra.mrb[0].mxu0 %v158
    %v229 = vpop.f32.mrb[0].mxu0
    %v230 = vadd.f32 0.0, %v229
    %v231 = vpop.f32.mrb[0].mxu0
    %232 = vmatprep.mubr.f32.mxu0 0.0
    %233 = vmatmul.mubr.f32.gmra.mrb[0].mxu0 %v161
    %v234 = vpop.f32.mrb[0].mxu0
    %v235 = vadd.f32 0.0, %v234
    %v236 = vpop.f32.mrb[0].mxu0
    %237 = vdwg.mxu0
    %240 = vrot.lane.b32.xlu0 %v230, 96
    %v241 = vpop.permute.xlu0 %240
    %242 = vrot.lane.b32.xlu0 %v235, 96
    %v243 = vpop.permute.xlu0 %242
    %vm244 = vcmask 64512
    %v245 = vsel %vm244, %v230, 0
    %v247 = vsel %vm244, %v235, 0
    %v249 = vsel %vm244, %v241, 0
    %v251 = vsel %vm244, %v243, 0
    %253 = vmatprep.subr.mxu0 0.0
    %254 = vmatpush1.xpose.msra.mxu0 %v249
    %255 = vmatprep.subr.mxu0 0.0
    %256 = vmatpush1.xpose.msra.mxu0 %v251
    %257 = vmatprep.subr.mxu0 0.0
    %258 = vmatpush1.xpose.msra.mxu0 0.0
    %259 = vmatprep.subr.mxu0 0.0
    %260 = vmatpush1.xpose.msra.mxu0 0.0
    %261 = vmatprep.subr.mxu0 0.0
    %262 = vmatpush1.xpose.msra.mxu0 0.0
    %263 = vmatprep.subr.mxu0 0.0
    %264 = vmatpush1.xpose.msra.mxu0 0.0
    %265 = vmatprep.subr.mxu0 0.0
    %266 = vmatpush1.xpose.msra.mxu0 0.0
    %267 = vmatprep.subr.mxu0 0.0
    %268 = vmatpush1.xpose.msra.mxu0 0.0
    %269 = vmatprep.subr.mxu0 0.0
    %270 = vmatpush1.xpose.msra.mxu0 0.0
    %271 = vmatprep.subr.mxu0 0.0
    %272 = vmatpush1.xpose.msra.mxu0 0.0
    %273 = vmatprep.subr.mxu0 0.0
    %274 = vmatpush1.xpose.msra.mxu0 0.0
    %275 = vmatprep.subr.mxu0 0.0
    %276 = vmatpush1.xpose.msra.mxu0 0.0
    %277 = vmatprep.subr.mxu0 0.0
    %278 = vmatpush1.xpose.msra.mxu0 0.0
    %279 = vmatprep.subr.mxu0 0.0
    %280 = vmatpush1.xpose.msra.mxu0 0.0
    %281 = vmatprep.subr.mxu0 0.0
    %282 = vmatpush1.xpose.msra.mxu0 0.0
    %283 = vmatprep.subr.mxu0 0.0
    %284 = vmatpush1.xpose.msra.mxu0 0.0
    %285 = vmatprep.subr.mxu0 0.0
    %286 = vmatpush1.xpose.msra.mxu0 0.0
    %287 = vmatprep.subr.mxu0 0.0
    %288 = vmatpush1.xpose.msra.mxu0 0.0
    %289 = vmatprep.subr.mxu0 0.0
    %290 = vmatpush1.xpose.msra.mxu0 0.0
    %291 = vmatprep.subr.mxu0 0.0
    %292 = vmatpush1.xpose.msra.mxu0 0.0
    %293 = vmatprep.subr.mxu0 0.0
    %294 = vmatpush1.xpose.msra.mxu0 0.0
    %295 = vmatprep.subr.mxu0 0.0
    %296 = vmatpush1.xpose.msra.mxu0 0.0
    %297 = vmatprep.subr.mxu0 0.0
    %298 = vmatpush1.xpose.msra.mxu0 0.0
    %299 = vmatprep.subr.mxu0 0.0
    %300 = vmatpush1.xpose.msra.mxu0 0.0
    %301 = vmatprep.subr.mxu0 0.0
    %302 = vmatpush1.xpose.msra.mxu0 0.0
    %303 = vmatprep.subr.mxu0 0.0
    %304 = vmatpush1.xpose.msra.mxu0 0.0
    %305 = vmatprep.subr.mxu0 0.0
    %306 = vmatpush1.xpose.msra.mxu0 0.0
    %307 = vmatprep.subr.mxu0 0.0
    %308 = vmatpush1.xpose.msra.mxu0 0.0
    %309 = vmatprep.subr.mxu0 0.0
    %310 = vmatpush1.xpose.msra.mxu0 0.0
    %311 = vmatprep.subr.mxu0 0.0
    %312 = vmatpush1.xpose.msra.mxu0 0.0
    %313 = vmatprep.subr.mxu0 0.0
    %314 = vmatpush1.xpose.msra.mxu0 0.0
    %315 = vmatprep.subr.mxu0 0.0
    %316 = vmatpush1.xpose.msra.mxu0 0.0
    %317 = vmatprep.mubr.f32.mxu0 0.0
    %318 = vmatmul.mubr.f32.gmra.mrb[0].mxu0 %v245
    %v319 = vpop.f32.mrb[0].mxu0
    %v320 = vadd.f32 %v132, %v319
    %v321 = vpop.f32.mrb[0].mxu0
    %322 = vmatprep.mubr.f32.mxu0 0.0
    %323 = vmatmul.mubr.f32.gmra.mrb[0].mxu0 %v247
    %v324 = vpop.f32.mrb[0].mxu0
    %v325 = vadd.f32 %v133, %v324
    %v326 = vpop.f32.mrb[0].mxu0
    %327 = vdwg.mxu0
    %vm328 = vcmask 130048
    %v329 = vsel %vm328, %v320, -inf
    %330 = vmax.xlane.f32.xlu0 %v329
    %v331 = vpop.xlane.xlu0 %330
    %v332 = vsel %vm328, %v325, -inf
    %333 = vmax.xlane.f32.xlu0 %v332
    %v334 = vpop.xlane.xlu0 %333
    %v335 = vsub.f32 %v320, %v331
    %v336 = vsub.f32 %v325, %v334
    %v337 = vmul.f32 %v335, 1.442695
    %v338 = vpow.pop %v337
    %v339 = vmul.f32 %v336, 1.442695
    %v340 = vpow.pop %v339
    %v341 = vsel %vm328, %v338, 0.0
    %342 = vadd.xlane.f32.xlu0 %v341
    %v343 = vpop.xlane.xlu0 %342
    %v344 = vsel %vm328, %v340, 0.0
    %345 = vadd.xlane.f32.xlu0 %v344
    %v346 = vpop.xlane.xlu0 %345
    %v347 = vrcp.pop %v343
    %v348 = vrcp.pop %v346
    %v349 = vmul.f32 %v338, %v347
    %v350 = vmul.f32 %v340, %v348
    %351 = vrot.lane.b32.xlu0 %v230, 64
    %v352 = vpop.permute.xlu0 %351
    %353 = vrot.lane.b32.xlu0 %v235, 64
    %v354 = vpop.permute.xlu0 %353
    %v358 = vsel %vm328, %v349, 0
    %v361 = vsel %vm328, %v350, 0
    %363 = vmatprep.subr.mxu0 0.0
    %364 = vmatpush1.msra.mxu0 %v352
    %365 = vmatprep.subr.mxu0 0.0
    %366 = vmatpush1.msra.mxu0 %v354
    %367 = vmatprep.subr.mxu0 0.0
    %368 = vmatpush1.msra.mxu0 0.0
    %369 = vmatprep.subr.mxu0 0.0
    %370 = vmatpush1.msra.mxu0 0.0
    %371 = vmatprep.subr.mxu0 0.0
    %372 = vmatpush1.msra.mxu0 0.0
    %373 = vmatprep.subr.mxu0 0.0
    %374 = vmatpush1.msra.mxu0 0.0
    %375 = vmatprep.subr.mxu0 0.0
    %376 = vmatpush1.msra.mxu0 0.0
    %377 = vmatprep.subr.mxu0 0.0
    %378 = vmatpush1.msra.mxu0 0.0
    %379 = vmatprep.subr.mxu0 0.0
    %380 = vmatpush1.msra.mxu0 0.0
    %381 = vmatprep.subr.mxu0 0.0
    %382 = vmatpush1.msra.mxu0 0.0
    %383 = vmatprep.subr.mxu0 0.0
    %384 = vmatpush1.msra.mxu0 0.0
    %385 = vmatprep.subr.mxu0 0.0
    %386 = vmatpush1.msra.mxu0 0.0
    %387 = vmatprep.subr.mxu0 0.0
    %388 = vmatpush1.msra.mxu0 0.0
    %389 = vmatprep.subr.mxu0 0.0
    %390 = vmatpush1.msra.mxu0 0.0
    %391 = vmatprep.subr.mxu0 0.0
    %392 = vmatpush1.msra.mxu0 0.0
    %393 = vmatprep.subr.mxu0 0.0
    %394 = vmatpush1.msra.mxu0 0.0
    %395 = vmatprep.subr.mxu0 0.0
    %396 = vmatpush1.msra.mxu0 0.0
    %397 = vmatprep.subr.mxu0 0.0
    %398 = vmatpush1.msra.mxu0 0.0
    %399 = vmatprep.subr.mxu0 0.0
    %400 = vmatpush1.msra.mxu0 0.0
    %401 = vmatprep.subr.mxu0 0.0
    %402 = vmatpush1.msra.mxu0 0.0
    %403 = vmatprep.subr.mxu0 0.0
    %404 = vmatpush1.msra.mxu0 0.0
    %405 = vmatprep.subr.mxu0 0.0
    %406 = vmatpush1.msra.mxu0 0.0
    %407 = vmatprep.subr.mxu0 0.0
    %408 = vmatpush1.msra.mxu0 0.0
    %409 = vmatprep.subr.mxu0 0.0
    %410 = vmatpush1.msra.mxu0 0.0
    %411 = vmatprep.subr.mxu0 0.0
    %412 = vmatpush1.msra.mxu0 0.0
    %413 = vmatprep.subr.mxu0 0.0
    %414 = vmatpush1.msra.mxu0 0.0
    %415 = vmatprep.subr.mxu0 0.0
    %416 = vmatpush1.msra.mxu0 0.0
    %417 = vmatprep.subr.mxu0 0.0
    %418 = vmatpush1.msra.mxu0 0.0
    %419 = vmatprep.subr.mxu0 0.0
    %420 = vmatpush1.msra.mxu0 0.0
    %421 = vmatprep.subr.mxu0 0.0
    %422 = vmatpush1.msra.mxu0 0.0
    %423 = vmatprep.subr.mxu0 0.0
    %424 = vmatpush1.msra.mxu0 0.0
    %425 = vmatprep.subr.mxu0 0.0
    %426 = vmatpush1.msra.mxu0 0.0
    %427 = vmatprep.mubr.f32.mxu0 0.0
    %428 = vmatmul.mubr.f32.gmra.mrb[0].mxu0 %v358
    %v429 = vpop.f32.mrb[0].mxu0
    %v430 = vadd.f32 0.0, %v429
    %v431 = vpop.f32.mrb[0].mxu0
    %432 = vmatprep.mubr.f32.mxu0 0.0
    %433 = vmatmul.mubr.f32.gmra.mrb[0].mxu0 %v361
    %v434 = vpop.f32.mrb[0].mxu0
    %v435 = vadd.f32 0.0, %v434
    %v436 = vpop.f32.mrb[0].mxu0
    %437 = vdwg.mxu0
    %438 = vrot.lane.b32.xlu0 %v230, 120
    %v439 = vpop.permute.xlu0 %438
    %440 = vrot.lane.b32.xlu0 %v235, 120
    %v441 = vpop.permute.xlu0 %440
    %442 = vrot.lane.b32.xlu0 %v230, 88
    %v443 = vpop.permute.xlu0 %442
    %444 = vrot.lane.b32.xlu0 %v235, 88
    %v445 = vpop.permute.xlu0 %444
    %v446 = vsel %vm244, %v439, 0
    %v448 = vsel %vm244, %v441, 0
    %v450 = vsel %vm244, %v443, 0
    %v452 = vsel %vm244, %v445, 0
    %454 = vmatprep.subr.mxu0 0.0
    %455 = vmatpush1.xpose.msra.mxu0 %v450
    %456 = vmatprep.subr.mxu0 0.0
    %457 = vmatpush1.xpose.msra.mxu0 %v452
    %458 = vmatprep.subr.mxu0 0.0
    %459 = vmatpush1.xpose.msra.mxu0 0.0
    %460 = vmatprep.subr.mxu0 0.0
    %461 = vmatpush1.xpose.msra.mxu0 0.0
    %462 = vmatprep.subr.mxu0 0.0
    %463 = vmatpush1.xpose.msra.mxu0 0.0
    %464 = vmatprep.subr.mxu0 0.0
    %465 = vmatpush1.xpose.msra.mxu0 0.0
    %466 = vmatprep.subr.mxu0 0.0
    %467 = vmatpush1.xpose.msra.mxu0 0.0
    %468 = vmatprep.subr.mxu0 0.0
    %469 = vmatpush1.xpose.msra.mxu0 0.0
    %470 = vmatprep.subr.mxu0 0.0
    %471 = vmatpush1.xpose.msra.mxu0 0.0
    %472 = vmatprep.subr.mxu0 0.0
    %473 = vmatpush1.xpose.msra.mxu0 0.0
    %474 = vmatprep.subr.mxu0 0.0
    %475 = vmatpush1.xpose.msra.mxu0 0.0
    %476 = vmatprep.subr.mxu0 0.0
    %477 = vmatpush1.xpose.msra.mxu0 0.0
    %478 = vmatprep.subr.mxu0 0.0
    %479 = vmatpush1.xpose.msra.mxu0 0.0
    %480 = vmatprep.subr.mxu0 0.0
    %481 = vmatpush1.xpose.msra.mxu0 0.0
    %482 = vmatprep.subr.mxu0 0.0
    %483 = vmatpush1.xpose.msra.mxu0 0.0
    %484 = vmatprep.subr.mxu0 0.0
    %485 = vmatpush1.xpose.msra.mxu0 0.0
    %486 = vmatprep.subr.mxu0 0.0
    %487 = vmatpush1.xpose.msra.mxu0 0.0
    %488 = vmatprep.subr.mxu0 0.0
    %489 = vmatpush1.xpose.msra.mxu0 0.0
    %490 = vmatprep.subr.mxu0 0.0
    %491 = vmatpush1.xpose.msra.mxu0 0.0
    %492 = vmatprep.subr.mxu0 0.0
    %493 = vmatpush1.xpose.msra.mxu0 0.0
    %494 = vmatprep.subr.mxu0 0.0
    %495 = vmatpush1.xpose.msra.mxu0 0.0
    %496 = vmatprep.subr.mxu0 0.0
    %497 = vmatpush1.xpose.msra.mxu0 0.0
    %498 = vmatprep.subr.mxu0 0.0
    %499 = vmatpush1.xpose.msra.mxu0 0.0
    %500 = vmatprep.subr.mxu0 0.0
    %501 = vmatpush1.xpose.msra.mxu0 0.0
    %502 = vmatprep.subr.mxu0 0.0
    %503 = vmatpush1.xpose.msra.mxu0 0.0
    %504 = vmatprep.subr.mxu0 0.0
    %505 = vmatpush1.xpose.msra.mxu0 0.0
    %506 = vmatprep.subr.mxu0 0.0
    %507 = vmatpush1.xpose.msra.mxu0 0.0
    %508 = vmatprep.subr.mxu0 0.0
    %509 = vmatpush1.xpose.msra.mxu0 0.0
    %510 = vmatprep.subr.mxu0 0.0
    %511 = vmatpush1.xpose.msra.mxu0 0.0
    %512 = vmatprep.subr.mxu0 0.0
    %513 = vmatpush1.xpose.msra.mxu0 0.0
    %514 = vmatprep.subr.mxu0 0.0
    %515 = vmatpush1.xpose.msra.mxu0 0.0
    %516 = vmatprep.subr.mxu0 0.0
    %517 = vmatpush1.xpose.msra.mxu0 0.0
    %518 = vmatprep.mubr.f32.mxu0 0.0
    %519 = vmatmul.mubr.f32.gmra.mrb[0].mxu0 %v446
    %v520 = vpop.f32.mrb[0].mxu0
    %v521 = vadd.f32 %v132, %v520
    %v522 = vpop.f32.mrb[0].mxu0
    %523 = vmatprep.mubr.f32.mxu0 0.0
    %524 = vmatmul.mubr.f32.gmra.mrb[0].mxu0 %v448
    %v525 = vpop.f32.mrb[0].mxu0
    %v526 = vadd.f32 %v133, %v525
    %v527 = vpop.f32.mrb[0].mxu0
    %528 = vdwg.mxu0
    %v529 = vsel %vm328, %v521, -inf
    %530 = vmax.xlane.f32.xlu0 %v529
    %v531 = vpop.xlane.xlu0 %530
    %v532 = vsel %vm328, %v526, -inf
    %533 = vmax.xlane.f32.xlu0 %v532
    %v534 = vpop.xlane.xlu0 %533
    %v535 = vsub.f32 %v521, %v531
    %v536 = vsub.f32 %v526, %v534
    %v537 = vmul.f32 %v535, 1.442695
    %v538 = vpow.pop %v537
    %v539 = vmul.f32 %v536, 1.442695
    %v540 = vpow.pop %v539
    %v541 = vsel %vm328, %v538, 0.0
    %542 = vadd.xlane.f32.xlu0 %v541
    %v543 = vpop.xlane.xlu0 %542
    %v544 = vsel %vm328, %v540, 0.0
    %545 = vadd.xlane.f32.xlu0 %v544
    %v546 = vpop.xlane.xlu0 %545
    %v547 = vrcp.pop %v543
    %v548 = vrcp.pop %v546
    %v549 = vmul.f32 %v538, %v547
    %v550 = vmul.f32 %v540, %v548
    %551 = vrot.lane.b32.xlu0 %v230, 56
    %v552 = vpop.permute.xlu0 %551
    %553 = vrot.lane.b32.xlu0 %v235, 56
    %v554 = vpop.permute.xlu0 %553
    %v558 = vsel %vm328, %v549, 0
    %v561 = vsel %vm328, %v550, 0
    %563 = vmatprep.subr.mxu0 0.0
    %564 = vmatpush1.msra.mxu0 %v552
    %565 = vmatprep.subr.mxu0 0.0
    %566 = vmatpush1.msra.mxu0 %v554
    %567 = vmatprep.subr.mxu0 0.0
    %568 = vmatpush1.msra.mxu0 0.0
    %569 = vmatprep.subr.mxu0 0.0
    %570 = vmatpush1.msra.mxu0 0.0
    %571 = vmatprep.subr.mxu0 0.0
    %572 = vmatpush1.msra.mxu0 0.0
    %573 = vmatprep.subr.mxu0 0.0
    %574 = vmatpush1.msra.mxu0 0.0
    %575 = vmatprep.subr.mxu0 0.0
    %576 = vmatpush1.msra.mxu0 0.0
    %577 = vmatprep.subr.mxu0 0.0
    %578 = vmatpush1.msra.mxu0 0.0
    %579 = vmatprep.subr.mxu0 0.0
    %580 = vmatpush1.msra.mxu0 0.0
    %581 = vmatprep.subr.mxu0 0.0
    %582 = vmatpush1.msra.mxu0 0.0
    %583 = vmatprep.subr.mxu0 0.0
    %584 = vmatpush1.msra.mxu0 0.0
    %585 = vmatprep.subr.mxu0 0.0
    %586 = vmatpush1.msra.mxu0 0.0
    %587 = vmatprep.subr.mxu0 0.0
    %588 = vmatpush1.msra.mxu0 0.0
    %589 = vmatprep.subr.mxu0 0.0
    %590 = vmatpush1.msra.mxu0 0.0
    %591 = vmatprep.subr.mxu0 0.0
    %592 = vmatpush1.msra.mxu0 0.0
    %593 = vmatprep.subr.mxu0 0.0
    %594 = vmatpush1.msra.mxu0 0.0
    %595 = vmatprep.subr.mxu0 0.0
    %596 = vmatpush1.msra.mxu0 0.0
    %597 = vmatprep.subr.mxu0 0.0
    %598 = vmatpush1.msra.mxu0 0.0
    %599 = vmatprep.subr.mxu0 0.0
    %600 = vmatpush1.msra.mxu0 0.0
    %601 = vmatprep.subr.mxu0 0.0
    %602 = vmatpush1.msra.mxu0 0.0
    %603 = vmatprep.subr.mxu0 0.0
    %604 = vmatpush1.msra.mxu0 0.0
    %605 = vmatprep.subr.mxu0 0.0
    %606 = vmatpush1.msra.mxu0 0.0
    %607 = vmatprep.subr.mxu0 0.0
    %608 = vmatpush1.msra.mxu0 0.0
    %609 = vmatprep.subr.mxu0 0.0
    %610 = vmatpush1.msra.mxu0 0.0
    %611 = vmatprep.subr.mxu0 0.0
    %612 = vmatpush1.msra.mxu0 0.0
    %613 = vmatprep.subr.mxu0 0.0
    %614 = vmatpush1.msra.mxu0 0.0
    %615 = vmatprep.subr.mxu0 0.0
    %616 = vmatpush1.msra.mxu0 0.0
    %617 = vmatprep.subr.mxu0 0.0
    %618 = vmatpush1.msra.mxu0 0.0
    %619 = vmatprep.subr.mxu0 0.0
    %620 = vmatpush1.msra.mxu0 0.0
    %621 = vmatprep.subr.mxu0 0.0
    %622 = vmatpush1.msra.mxu0 0.0
    %623 = vmatprep.subr.mxu0 0.0
    %624 = vmatpush1.msra.mxu0 0.0
    %625 = vmatprep.subr.mxu0 0.0
    %626 = vmatpush1.msra.mxu0 0.0
    %627 = vmatprep.mubr.f32.mxu0 0.0
    %628 = vmatmul.mubr.f32.gmra.mrb[0].mxu0 %v558
    %v629 = vpop.f32.mrb[0].mxu0
    %v630 = vadd.f32 0.0, %v629
    %v631 = vpop.f32.mrb[0].mxu0
    %632 = vmatprep.mubr.f32.mxu0 0.0
    %633 = vmatmul.mubr.f32.gmra.mrb[0].mxu0 %v561
    %v634 = vpop.f32.mrb[0].mxu0
    %v635 = vadd.f32 0.0, %v634
    %v636 = vpop.f32.mrb[0].mxu0
    %637 = vdwg.mxu0
    %638 = vrot.lane.b32.xlu0 %v230, 112
    %v639 = vpop.permute.xlu0 %638
    %640 = vrot.lane.b32.xlu0 %v235, 112
    %v641 = vpop.permute.xlu0 %640
    %642 = vrot.lane.b32.xlu0 %v230, 80
    %v643 = vpop.permute.xlu0 %642
    %644 = vrot.lane.b32.xlu0 %v235, 80
    %v645 = vpop.permute.xlu0 %644
    %v646 = vsel %vm244, %v639, 0
    %v648 = vsel %vm244, %v641, 0
    %v650 = vsel %vm244, %v643, 0
    %v652 = vsel %vm244, %v645, 0
    %654 = vmatprep.subr.mxu0 0.0
    %655 = vmatpush1.xpose.msra.mxu0 %v650
    %656 = vmatprep.subr.mxu0 0.0
    %657 = vmatpush1.xpose.msra.mxu0 %v652
    %658 = vmatprep.subr.mxu0 0.0
    %659 = vmatpush1.xpose.msra.mxu0 0.0
    %660 = vmatprep.subr.mxu0 0.0
    %661 = vmatpush1.xpose.msra.mxu0 0.0
    %662 = vmatprep.subr.mxu0 0.0
    %663 = vmatpush1.xpose.msra.mxu0 0.0
    %664 = vmatprep.subr.mxu0 0.0
    %665 = vmatpush1.xpose.msra.mxu0 0.0
    %666 = vmatprep.subr.mxu0 0.0
    %667 = vmatpush1.xpose.msra.mxu0 0.0
    %668 = vmatprep.subr.mxu0 0.0
    %669 = vmatpush1.xpose.msra.mxu0 0.0
    %670 = vmatprep.subr.mxu0 0.0
    %671 = vmatpush1.xpose.msra.mxu0 0.0
    %672 = vmatprep.subr.mxu0 0.0
    %673 = vmatpush1.xpose.msra.mxu0 0.0
    %674 = vmatprep.subr.mxu0 0.0
    %675 = vmatpush1.xpose.msra.mxu0 0.0
    %676 = vmatprep.subr.mxu0 0.0
    %677 = vmatpush1.xpose.msra.mxu0 0.0
    %678 = vmatprep.subr.mxu0 0.0
    %679 = vmatpush1.xpose.msra.mxu0 0.0
    %680 = vmatprep.subr.mxu0 0.0
    %681 = vmatpush1.xpose.msra.mxu0 0.0
    %682 = vmatprep.subr.mxu0 0.0
    %683 = vmatpush1.xpose.msra.mxu0 0.0
    %684 = vmatprep.subr.mxu0 0.0
    %685 = vmatpush1.xpose.msra.mxu0 0.0
    %686 = vmatprep.subr.mxu0 0.0
    %687 = vmatpush1.xpose.msra.mxu0 0.0
    %688 = vmatprep.subr.mxu0 0.0
    %689 = vmatpush1.xpose.msra.mxu0 0.0
    %690 = vmatprep.subr.mxu0 0.0
    %691 = vmatpush1.xpose.msra.mxu0 0.0
    %692 = vmatprep.subr.mxu0 0.0
    %693 = vmatpush1.xpose.msra.mxu0 0.0
    %694 = vmatprep.subr.mxu0 0.0
    %695 = vmatpush1.xpose.msra.mxu0 0.0
    %696 = vmatprep.subr.mxu0 0.0
    %697 = vmatpush1.xpose.msra.mxu0 0.0
    %698 = vmatprep.subr.mxu0 0.0
    %699 = vmatpush1.xpose.msra.mxu0 0.0
    %700 = vmatprep.subr.mxu0 0.0
    %701 = vmatpush1.xpose.msra.mxu0 0.0
    %702 = vmatprep.subr.mxu0 0.0
    %703 = vmatpush1.xpose.msra.mxu0 0.0
    %704 = vmatprep.subr.mxu0 0.0
    %705 = vmatpush1.xpose.msra.mxu0 0.0
    %706 = vmatprep.subr.mxu0 0.0
    %707 = vmatpush1.xpose.msra.mxu0 0.0
    %708 = vmatprep.subr.mxu0 0.0
    %709 = vmatpush1.xpose.msra.mxu0 0.0
    %710 = vmatprep.subr.mxu0 0.0
    %711 = vmatpush1.xpose.msra.mxu0 0.0
    %712 = vmatprep.subr.mxu0 0.0
    %713 = vmatpush1.xpose.msra.mxu0 0.0
    %714 = vmatprep.subr.mxu0 0.0
    %715 = vmatpush1.xpose.msra.mxu0 0.0
    %716 = vmatprep.subr.mxu0 0.0
    %717 = vmatpush1.xpose.msra.mxu0 0.0
    %718 = vmatprep.mubr.f32.mxu0 0.0
    %719 = vmatmul.mubr.f32.gmra.mrb[0].mxu0 %v646
    %v720 = vpop.f32.mrb[0].mxu0
    %v721 = vadd.f32 %v132, %v720
    %v722 = vpop.f32.mrb[0].mxu0
    %723 = vmatprep.mubr.f32.mxu0 0.0
    %724 = vmatmul.mubr.f32.gmra.mrb[0].mxu0 %v648
    %v725 = vpop.f32.mrb[0].mxu0
    %v726 = vadd.f32 %v133, %v725
    %v727 = vpop.f32.mrb[0].mxu0
    %728 = vdwg.mxu0
    %v729 = vsel %vm328, %v721, -inf
    %730 = vmax.xlane.f32.xlu0 %v729
    %v731 = vpop.xlane.xlu0 %730
    %v732 = vsel %vm328, %v726, -inf
    %733 = vmax.xlane.f32.xlu0 %v732
    %v734 = vpop.xlane.xlu0 %733
    %v735 = vsub.f32 %v721, %v731
    %v736 = vsub.f32 %v726, %v734
    %v737 = vmul.f32 %v735, 1.442695
    %v738 = vpow.pop %v737
    %v739 = vmul.f32 %v736, 1.442695
    %v740 = vpow.pop %v739
    %v741 = vsel %vm328, %v738, 0.0
    %742 = vadd.xlane.f32.xlu0 %v741
    %v743 = vpop.xlane.xlu0 %742
    %v744 = vsel %vm328, %v740, 0.0
    %745 = vadd.xlane.f32.xlu0 %v744
    %v746 = vpop.xlane.xlu0 %745
    %v747 = vrcp.pop %v743
    %v748 = vrcp.pop %v746
    %v749 = vmul.f32 %v738, %v747
    %v750 = vmul.f32 %v740, %v748
    %751 = vrot.lane.b32.xlu0 %v230, 48
    %v752 = vpop.permute.xlu0 %751
    %753 = vrot.lane.b32.xlu0 %v235, 48
    %v754 = vpop.permute.xlu0 %753
    %v758 = vsel %vm328, %v749, 0
    %v761 = vsel %vm328, %v750, 0
    %763 = vmatprep.subr.mxu0 0.0
    %764 = vmatpush1.msra.mxu0 %v752
    %765 = vmatprep.subr.mxu0 0.0
    %766 = vmatpush1.msra.mxu0 %v754
    %767 = vmatprep.subr.mxu0 0.0
    %768 = vmatpush1.msra.mxu0 0.0
    %769 = vmatprep.subr.mxu0 0.0
    %770 = vmatpush1.msra.mxu0 0.0
    %771 = vmatprep.subr.mxu0 0.0
    %772 = vmatpush1.msra.mxu0 0.0
    %773 = vmatprep.subr.mxu0 0.0
    %774 = vmatpush1.msra.mxu0 0.0
    %775 = vmatprep.subr.mxu0 0.0
    %776 = vmatpush1.msra.mxu0 0.0
    %777 = vmatprep.subr.mxu0 0.0
    %778 = vmatpush1.msra.mxu0 0.0
    %779 = vmatprep.subr.mxu0 0.0
    %780 = vmatpush1.msra.mxu0 0.0
    %781 = vmatprep.subr.mxu0 0.0
    %782 = vmatpush1.msra.mxu0 0.0
    %783 = vmatprep.subr.mxu0 0.0
    %784 = vmatpush1.msra.mxu0 0.0
    %785 = vmatprep.subr.mxu0 0.0
    %786 = vmatpush1.msra.mxu0 0.0
    %787 = vmatprep.subr.mxu0 0.0
    %788 = vmatpush1.msra.mxu0 0.0
    %789 = vmatprep.subr.mxu0 0.0
    %790 = vmatpush1.msra.mxu0 0.0
    %791 = vmatprep.subr.mxu0 0.0
    %792 = vmatpush1.msra.mxu0 0.0
    %793 = vmatprep.subr.mxu0 0.0
    %794 = vmatpush1.msra.mxu0 0.0
    %795 = vmatprep.subr.mxu0 0.0
    %796 = vmatpush1.msra.mxu0 0.0
    %797 = vmatprep.subr.mxu0 0.0
    %798 = vmatpush1.msra.mxu0 0.0
    %799 = vmatprep.subr.mxu0 0.0
    %800 = vmatpush1.msra.mxu0 0.0
    %801 = vmatprep.subr.mxu0 0.0
    %802 = vmatpush1.msra.mxu0 0.0
    %803 = vmatprep.subr.mxu0 0.0
    %804 = vmatpush1.msra.mxu0 0.0
    %805 = vmatprep.subr.mxu0 0.0
    %806 = vmatpush1.msra.mxu0 0.0
    %807 = vmatprep.subr.mxu0 0.0
    %808 = vmatpush1.msra.mxu0 0.0
    %809 = vmatprep.subr.mxu0 0.0
    %810 = vmatpush1.msra.mxu0 0.0
    %811 = vmatprep.subr.mxu0 0.0
    %812 = vmatpush1.msra.mxu0 0.0
    %813 = vmatprep.subr.mxu0 0.0
    %814 = vmatpush1.msra.mxu0 0.0
    %815 = vmatprep.subr.mxu0 0.0
    %816 = vmatpush1.msra.mxu0 0.0
    %817 = vmatprep.subr.mxu0 0.0
    %818 = vmatpush1.msra.mxu0 0.0
    %819 = vmatprep.subr.mxu0 0.0
    %820 = vmatpush1.msra.mxu0 0.0
    %821 = vmatprep.subr.mxu0 0.0
    %822 = vmatpush1.msra.mxu0 0.0
    %823 = vmatprep.subr.mxu0 0.0
    %824 = vmatpush1.msra.mxu0 0.0
    %825 = vmatprep.subr.mxu0 0.0
    %826 = vmatpush1.msra.mxu0 0.0
    %827 = vmatprep.mubr.f32.mxu0 0.0
    %828 = vmatmul.mubr.f32.gmra.mrb[0].mxu0 %v758
    %v829 = vpop.f32.mrb[0].mxu0
    %v830 = vadd.f32 0.0, %v829
    %v831 = vpop.f32.mrb[0].mxu0
    %832 = vmatprep.mubr.f32.mxu0 0.0
    %833 = vmatmul.mubr.f32.gmra.mrb[0].mxu0 %v761
    %v834 = vpop.f32.mrb[0].mxu0
    %v835 = vadd.f32 0.0, %v834
    %v836 = vpop.f32.mrb[0].mxu0
    %837 = vdwg.mxu0
    %838 = vrot.lane.b32.xlu0 %v230, 104
    %v839 = vpop.permute.xlu0 %838
    %840 = vrot.lane.b32.xlu0 %v235, 104
    %v841 = vpop.permute.xlu0 %840
    %842 = vrot.lane.b32.xlu0 %v230, 72
    %v843 = vpop.permute.xlu0 %842
    %844 = vrot.lane.b32.xlu0 %v235, 72
    %v845 = vpop.permute.xlu0 %844
    %v846 = vsel %vm244, %v839, 0
    %v848 = vsel %vm244, %v841, 0
    %v850 = vsel %vm244, %v843, 0
    %v852 = vsel %vm244, %v845, 0
    %854 = vmatprep.subr.mxu0 0.0
    %855 = vmatpush1.xpose.msra.mxu0 %v850
    %856 = vmatprep.subr.mxu0 0.0
    %857 = vmatpush1.xpose.msra.mxu0 %v852
    %858 = vmatprep.subr.mxu0 0.0
    %859 = vmatpush1.xpose.msra.mxu0 0.0
    %860 = vmatprep.subr.mxu0 0.0
    %861 = vmatpush1.xpose.msra.mxu0 0.0
    %862 = vmatprep.subr.mxu0 0.0
    %863 = vmatpush1.xpose.msra.mxu0 0.0
    %864 = vmatprep.subr.mxu0 0.0
    %865 = vmatpush1.xpose.msra.mxu0 0.0
    %866 = vmatprep.subr.mxu0 0.0
    %867 = vmatpush1.xpose.msra.mxu0 0.0
    %868 = vmatprep.subr.mxu0 0.0
    %869 = vmatpush1.xpose.msra.mxu0 0.0
    %870 = vmatprep.subr.mxu0 0.0
    %871 = vmatpush1.xpose.msra.mxu0 0.0
    %872 = vmatprep.subr.mxu0 0.0
    %873 = vmatpush1.xpose.msra.mxu0 0.0
    %874 = vmatprep.subr.mxu0 0.0
    %875 = vmatpush1.xpose.msra.mxu0 0.0
    %876 = vmatprep.subr.mxu0 0.0
    %877 = vmatpush1.xpose.msra.mxu0 0.0
    %878 = vmatprep.subr.mxu0 0.0
    %879 = vmatpush1.xpose.msra.mxu0 0.0
    %880 = vmatprep.subr.mxu0 0.0
    %881 = vmatpush1.xpose.msra.mxu0 0.0
    %882 = vmatprep.subr.mxu0 0.0
    %883 = vmatpush1.xpose.msra.mxu0 0.0
    %884 = vmatprep.subr.mxu0 0.0
    %885 = vmatpush1.xpose.msra.mxu0 0.0
    %886 = vmatprep.subr.mxu0 0.0
    %887 = vmatpush1.xpose.msra.mxu0 0.0
    %888 = vmatprep.subr.mxu0 0.0
    %889 = vmatpush1.xpose.msra.mxu0 0.0
    %890 = vmatprep.subr.mxu0 0.0
    %891 = vmatpush1.xpose.msra.mxu0 0.0
    %892 = vmatprep.subr.mxu0 0.0
    %893 = vmatpush1.xpose.msra.mxu0 0.0
    %894 = vmatprep.subr.mxu0 0.0
    %895 = vmatpush1.xpose.msra.mxu0 0.0
    %896 = vmatprep.subr.mxu0 0.0
    %897 = vmatpush1.xpose.msra.mxu0 0.0
    %898 = vmatprep.subr.mxu0 0.0
    %899 = vmatpush1.xpose.msra.mxu0 0.0
    %900 = vmatprep.subr.mxu0 0.0
    %901 = vmatpush1.xpose.msra.mxu0 0.0
    %902 = vmatprep.subr.mxu0 0.0
    %903 = vmatpush1.xpose.msra.mxu0 0.0
    %904 = vmatprep.subr.mxu0 0.0
    %905 = vmatpush1.xpose.msra.mxu0 0.0
    %906 = vmatprep.subr.mxu0 0.0
    %907 = vmatpush1.xpose.msra.mxu0 0.0
    %908 = vmatprep.subr.mxu0 0.0
    %909 = vmatpush1.xpose.msra.mxu0 0.0
    %910 = vmatprep.subr.mxu0 0.0
    %911 = vmatpush1.xpose.msra.mxu0 0.0
    %912 = vmatprep.subr.mxu0 0.0
    %913 = vmatpush1.xpose.msra.mxu0 0.0
    %914 = vmatprep.subr.mxu0 0.0
    %915 = vmatpush1.xpose.msra.mxu0 0.0
    %916 = vmatprep.subr.mxu0 0.0
    %917 = vmatpush1.xpose.msra.mxu0 0.0
    %918 = vmatprep.mubr.f32.mxu0 0.0
    %919 = vmatmul.mubr.f32.gmra.mrb[0].mxu0 %v846
    %v920 = vpop.f32.mrb[0].mxu0
    %v921 = vadd.f32 %v132, %v920
    %v922 = vpop.f32.mrb[0].mxu0
    %923 = vmatprep.mubr.f32.mxu0 0.0
    %924 = vmatmul.mubr.f32.gmra.mrb[0].mxu0 %v848
    %v925 = vpop.f32.mrb[0].mxu0
    %v926 = vadd.f32 %v133, %v925
    %v927 = vpop.f32.mrb[0].mxu0
    %928 = vdwg.mxu0
    %v929 = vsel %vm328, %v921, -inf
    %930 = vmax.xlane.f32.xlu0 %v929
    %v931 = vpop.xlane.xlu0 %930
    %v932 = vsel %vm328, %v926, -inf
    %933 = vmax.xlane.f32.xlu0 %v932
    %v934 = vpop.xlane.xlu0 %933
    %v935 = vsub.f32 %v921, %v931
    %v936 = vsub.f32 %v926, %v934
    %v937 = vmul.f32 %v935, 1.442695
    %v938 = vpow.pop %v937
    %v939 = vmul.f32 %v936, 1.442695
    %v940 = vpow.pop %v939
    %v941 = vsel %vm328, %v938, 0.0
    %942 = vadd.xlane.f32.xlu0 %v941
    %v943 = vpop.xlane.xlu0 %942
    %v944 = vsel %vm328, %v940, 0.0
    %945 = vadd.xlane.f32.xlu0 %v944
    %v946 = vpop.xlane.xlu0 %945
    %v947 = vrcp.pop %v943
    %v948 = vrcp.pop %v946
    %v949 = vmul.f32 %v938, %v947
    %v950 = vmul.f32 %v940, %v948
    %951 = vrot.lane.b32.xlu0 %v230, 40
    %v952 = vpop.permute.xlu0 %951
    %953 = vrot.lane.b32.xlu0 %v235, 40
    %v954 = vpop.permute.xlu0 %953
    %v958 = vsel %vm328, %v949, 0
    %v961 = vsel %vm328, %v950, 0
    %963 = vmatprep.subr.mxu0 0.0
    %964 = vmatpush1.msra.mxu0 %v952
    %965 = vmatprep.subr.mxu0 0.0
    %966 = vmatpush1.msra.mxu0 %v954
    %967 = vmatprep.subr.mxu0 0.0
    %968 = vmatpush1.msra.mxu0 0.0
    %969 = vmatprep.subr.mxu0 0.0
    %970 = vmatpush1.msra.mxu0 0.0
    %971 = vmatprep.subr.mxu0 0.0
    %972 = vmatpush1.msra.mxu0 0.0
    %973 = vmatprep.subr.mxu0 0.0
    %974 = vmatpush1.msra.mxu0 0.0
    %975 = vmatprep.subr.mxu0 0.0
    %976 = vmatpush1.msra.mxu0 0.0
    %977 = vmatprep.subr.mxu0 0.0
    %978 = vmatpush1.msra.mxu0 0.0
    %979 = vmatprep.subr.mxu0 0.0
    %980 = vmatpush1.msra.mxu0 0.0
    %981 = vmatprep.subr.mxu0 0.0
    %982 = vmatpush1.msra.mxu0 0.0
    %983 = vmatprep.subr.mxu0 0.0
    %984 = vmatpush1.msra.mxu0 0.0
    %985 = vmatprep.subr.mxu0 0.0
    %986 = vmatpush1.msra.mxu0 0.0
    %987 = vmatprep.subr.mxu0 0.0
    %988 = vmatpush1.msra.mxu0 0.0
    %989 = vmatprep.subr.mxu0 0.0
    %990 = vmatpush1.msra.mxu0 0.0
    %991 = vmatprep.subr.mxu0 0.0
    %992 = vmatpush1.msra.mxu0 0.0
    %993 = vmatprep.subr.mxu0 0.0
    %994 = vmatpush1.msra.mxu0 0.0
    %995 = vmatprep.subr.mxu0 0.0
    %996 = vmatpush1.msra.mxu0 0.0
    %997 = vmatprep.subr.mxu0 0.0
    %998 = vmatpush1.msra.mxu0 0.0
    %999 = vmatprep.subr.mxu0 0.0
    %1000 = vmatpush1.msra.mxu0 0.0
    %1001 = vmatprep.subr.mxu0 0.0
    %1002 = vmatpush1.msra.mxu0 0.0
    %1003 = vmatprep.subr.mxu0 0.0
    %1004 = vmatpush1.msra.mxu0 0.0
    %1005 = vmatprep.subr.mxu0 0.0
    %1006 = vmatpush1.msra.mxu0 0.0
    %1007 = vmatprep.subr.mxu0 0.0
    %1008 = vmatpush1.msra.mxu0 0.0
    %1009 = vmatprep.subr.mxu0 0.0
    %1010 = vmatpush1.msra.mxu0 0.0
    %1011 = vmatprep.subr.mxu0 0.0
    %1012 = vmatpush1.msra.mxu0 0.0
    %1013 = vmatprep.subr.mxu0 0.0
    %1014 = vmatpush1.msra.mxu0 0.0
    %1015 = vmatprep.subr.mxu0 0.0
    %1016 = vmatpush1.msra.mxu0 0.0
    %1017 = vmatprep.subr.mxu0 0.0
    %1018 = vmatpush1.msra.mxu0 0.0
    %1019 = vmatprep.subr.mxu0 0.0
    %1020 = vmatpush1.msra.mxu0 0.0
    %1021 = vmatprep.subr.mxu0 0.0
    %1022 = vmatpush1.msra.mxu0 0.0
    %1023 = vmatprep.subr.mxu0 0.0
    %1024 = vmatpush1.msra.mxu0 0.0
    %1025 = vmatprep.subr.mxu0 0.0
    %1026 = vmatpush1.msra.mxu0 0.0
    %1027 = vmatprep.mubr.f32.mxu0 0.0
    %1028 = vmatmul.mubr.f32.gmra.mrb[0].mxu0 %v958
    %v1029 = vpop.f32.mrb[0].mxu0
    %v1030 = vadd.f32 0.0, %v1029
    %v1031 = vpop.f32.mrb[0].mxu0
    %1032 = vmatprep.mubr.f32.mxu0 0.0
    %1033 = vmatmul.mubr.f32.gmra.mrb[0].mxu0 %v961
    %v1034 = vpop.f32.mrb[0].mxu0
    %v1035 = vadd.f32 0.0, %v1034
    %v1036 = vpop.f32.mrb[0].mxu0
    %1037 = vdwg.mxu0
    %1040 = vrot.lane.b32.xlu0 %v630, 8
    %v1041 = vpop.permute.xlu0 %1040
    %1042 = vrot.lane.b32.xlu0 %v635, 8
    %v1043 = vpop.permute.xlu0 %1042
    %1048 = vrot.lane.b32.xlu0 %v830, 16
    %v1049 = vpop.permute.xlu0 %1048
    %1050 = vrot.lane.b32.xlu0 %v835, 16
    %v1051 = vpop.permute.xlu0 %1050
    %1056 = vrot.lane.b32.xlu0 %v1030, 24
    %v1057 = vpop.permute.xlu0 %1056
    %1058 = vrot.lane.b32.xlu0 %v1035, 24
    %v1059 = vpop.permute.xlu0 %1058
    %v1062 = vsel %vm244, %v430, %v1041
    %v1063 = vsel %vm244, %v435, %v1043
    %v1064 = vsel %vm328, %v1062, %v1049
    %v1065 = vsel %vm328, %v1063, %v1051
    %vm1066 = vcmask 195584
    %v1067 = vsel %vm1066, %v1064, %v1057
    %v1068 = vsel %vm1066, %v1065, %v1059
    %v1069 = vlaneseq
    %v1070 = vshrl.u32 %v1069, 7
    %v1071 = vsub.s32 0, %v1070
    %v1072 = vrot.slane %v154, %v1071
    %v1074 = vsel %vm156, %v1067, 0
    %v1077 = vsel %vm156, %v1068, 0
    %1079 = vmatprep.subr.mxu0 0.0
    %1080 = vmatpush1.msra.mxu0 %v138
    %1081 = vmatprep.subr.mxu0 0.0
    %1082 = vmatpush1.msra.mxu0 %v139
    %1083 = vmatprep.subr.mxu0 0.0
    %1084 = vmatpush1.msra.mxu0 %v140
    %1085 = vmatprep.subr.mxu0 0.0
    %1086 = vmatpush1.msra.mxu0 %v141
    %1087 = vmatprep.subr.mxu0 0.0
    %1088 = vmatpush1.msra.mxu0 0.0
    %1089 = vmatprep.subr.mxu0 0.0
    %1090 = vmatpush1.msra.mxu0 0.0
    %1091 = vmatprep.subr.mxu0 0.0
    %1092 = vmatpush1.msra.mxu0 0.0
    %1093 = vmatprep.subr.mxu0 0.0
    %1094 = vmatpush1.msra.mxu0 0.0
    %1095 = vmatprep.subr.mxu0 0.0
    %1096 = vmatpush1.msra.mxu0 0.0
    %1097 = vmatprep.subr.mxu0 0.0
    %1098 = vmatpush1.msra.mxu0 0.0
    %1099 = vmatprep.subr.mxu0 0.0
    %1100 = vmatpush1.msra.mxu0 0.0
    %1101 = vmatprep.subr.mxu0 0.0
    %1102 = vmatpush1.msra.mxu0 0.0
    %1103 = vmatprep.subr.mxu0 0.0
    %1104 = vmatpush1.msra.mxu0 0.0
    %1105 = vmatprep.subr.mxu0 0.0
    %1106 = vmatpush1.msra.mxu0 0.0
    %1107 = vmatprep.subr.mxu0 0.0
    %1108 = vmatpush1.msra.mxu0 0.0
    %1109 = vmatprep.subr.mxu0 0.0
    %1110 = vmatpush1.msra.mxu0 0.0
    %1111 = vmatprep.subr.mxu0 0.0
    %1112 = vmatpush1.msra.mxu0 0.0
    %1113 = vmatprep.subr.mxu0 0.0
    %1114 = vmatpush1.msra.mxu0 0.0
    %1115 = vmatprep.subr.mxu0 0.0
    %1116 = vmatpush1.msra.mxu0 0.0
    %1117 = vmatprep.subr.mxu0 0.0
    %1118 = vmatpush1.msra.mxu0 0.0
    %1119 = vmatprep.subr.mxu0 0.0
    %1120 = vmatpush1.msra.mxu0 0.0
    %1121 = vmatprep.subr.mxu0 0.0
    %1122 = vmatpush1.msra.mxu0 0.0
    %1123 = vmatprep.subr.mxu0 0.0
    %1124 = vmatpush1.msra.mxu0 0.0
    %1125 = vmatprep.subr.mxu0 0.0
    %1126 = vmatpush1.msra.mxu0 0.0
    %1127 = vmatprep.subr.mxu0 0.0
    %1128 = vmatpush1.msra.mxu0 0.0
    %1129 = vmatprep.subr.mxu0 0.0
    %1130 = vmatpush1.msra.mxu0 0.0
    %1131 = vmatprep.subr.mxu0 0.0
    %1132 = vmatpush1.msra.mxu0 0.0
    %1133 = vmatprep.subr.mxu0 0.0
    %1134 = vmatpush1.msra.mxu0 0.0
    %1135 = vmatprep.subr.mxu0 0.0
    %1136 = vmatpush1.msra.mxu0 0.0
    %1137 = vmatprep.subr.mxu0 0.0
    %1138 = vmatpush1.msra.mxu0 0.0
    %1139 = vmatprep.subr.mxu0 0.0
    %1140 = vmatpush1.msra.mxu0 0.0
    %1141 = vmatprep.subr.mxu0 0.0
    %1142 = vmatpush1.msra.mxu0 0.0
    %1143 = vmatprep.mubr.f32.mxu0 0.0
    %1144 = vmatmul.mubr.f32.gmra.mrb[0].mxu0 %v1074
    %v1145 = vpop.f32.mrb[0].mxu0
    %v1146 = vadd.f32 %v1072, %v1145
    %v1147 = vpop.f32.mrb[0].mxu0
    %1148 = vmatprep.mubr.f32.mxu0 0.0
    %1149 = vmatmul.mubr.f32.gmra.mrb[0].mxu0 %v1077
    %v1150 = vpop.f32.mrb[0].mxu0
    %v1151 = vadd.f32 %v1072, %v1150
    %v1152 = vpop.f32.mrb[0].mxu0
    %1153 = vdwg.mxu0
    %v1154 = vadd.f32 %v1146, %v124
    %v1155 = vadd.f32 %v1151, %v129
    %v1156 = vsel %vm156, %v1154, 0.0
    %1157 = vadd.xlane.f32.xlu0 %v1156
    %v1158 = vpop.xlane.xlu0 %1157
    %v1159 = vsel %vm156, %v1155, 0.0
    %1160 = vadd.xlane.f32.xlu0 %v1159
    %v1161 = vpop.xlane.xlu0 %1160
    %v1162 = vrcp.pop 32.0
    %v1163 = vmul.f32 %v1158, %v1162
    %v1164 = vmul.f32 %v1161, %v1162
    %v1165 = vsub.f32 %v1154, %v1163
    %v1166 = vsub.f32 %v1155, %v1164
    %v1167 = vmul.f32 %v1165, %v1165
    %v1168 = vmul.f32 %v1166, %v1166
    %v1169 = vsel %vm156, %v1167, 0.0
    %1170 = vadd.xlane.f32.xlu0 %v1169
    %v1171 = vpop.xlane.xlu0 %1170
    %v1172 = vsel %vm156, %v1168, 0.0
    %1173 = vadd.xlane.f32.xlu0 %v1172
    %v1174 = vpop.xlane.xlu0 %1173
    %v1175 = vmul.f32 %v1171, %v1162
    %v1176 = vmul.f32 %v1174, %v1162
    %v1177 = vadd.f32 %v1175, 1e-05
    %v1178 = vadd.f32 %v1176, 1e-05
    %v1179 = vrsqrt.pop %v1177
    %v1180 = vrsqrt.pop %v1178
    %v1181 = vmul.f32 %v1165, %v1179
    %v1182 = vmul.f32 %v1166, %v1180
    %v1183 = vlaneseq
    %v1184 = vshrl.u32 %v1183, 7
    %v1185 = vsub.s32 1, %v1184
    %v1186 = vrot.slane %v154, %v1185
    %v1187 = vmul.f32 %v1181, %v1186
    %v1188 = vmul.f32 %v1182, %v1186
    %v1189 = vlaneseq
    %v1190 = vshrl.u32 %v1189, 7
    %v1191 = vsub.s32 2, %v1190
    %v1192 = vrot.slane %v154, %v1191
    %v1193 = vadd.f32 %v1187, %v1192
    %v1194 = vadd.f32 %v1188, %v1192
    %v1195 = vmul.f32 %v1193, 0.5
    %v1196 = vmul.f32 %v1194, 0.5
    %v1197 = vmul.f32 %v1193, 0.70710677
    %v1198 = vmul.f32 %v1194, 0.70710677
    %vm1199 = vcmp.ge.f32.partialorder %v1197, 0.0
    %vm1200 = vcmp.ge.f32.partialorder %v1198, 0.0
    %v1201 = vsel %vm1199, 1.0, -1.0
    %v1202 = vsel %vm1200, 1.0, -1.0
    %v1203 = vand.u32 2147483647, %v1197
    %v1204 = vand.u32 2147483647, %v1198
    %v1205 = vmul.f32 %v1203, 0.3275911
    %v1206 = vmul.f32 %v1204, 0.3275911
    %v1207 = vadd.f32 %v1205, 1.0
    %v1208 = vadd.f32 %v1206, 1.0
    %v1209 = vrcp.pop %v1207
    %v1210 = vmul.f32 1.0, %v1209
    %v1211 = vrcp.pop %v1208
    %v1212 = vmul.f32 1.0, %v1211
    %v1213 = vmul.f32 %v1210, 1.0614054
    %v1214 = vmul.f32 %v1212, 1.0614054
    %v1215 = vadd.f32 %v1213, -1.4531521
    %v1216 = vadd.f32 %v1214, -1.4531521
    %v1217 = vmul.f32 %v1215, %v1210
    %v1218 = vmul.f32 %v1216, %v1212
    %v1219 = vadd.f32 %v1217, 1.4214138
    %v1220 = vadd.f32 %v1218, 1.4214138
    %v1221 = vmul.f32 %v1219, %v1210
    %v1222 = vmul.f32 %v1220, %v1212
    %v1223 = vadd.f32 %v1221, -0.28449672
    %v1224 = vadd.f32 %v1222, -0.28449672
    %v1225 = vmul.f32 %v1223, %v1210
    %v1226 = vmul.f32 %v1224, %v1212
    %v1227 = vadd.f32 %v1225, 0.2548296
    %v1228 = vadd.f32 %v1226, 0.2548296
    %v1229 = vmul.f32 %v1227, %v1210
    %v1230 = vmul.f32 %v1228, %v1212
    %v1231 = vsub.f32 0.0, %v1203
    %v1232 = vsub.f32 0.0, %v1204
    %v1233 = vmul.f32 %v1231, %v1203
    %v1234 = vmul.f32 %v1232, %v1204
    %v1235 = vmul.f32 %v1233, 1.442695
    %v1236 = vpow.pop %v1235
    %v1237 = vmul.f32 %v1234, 1.442695
    %v1238 = vpow.pop %v1237
    %v1239 = vmul.f32 %v1229, %v1236
    %v1240 = vmul.f32 %v1230, %v1238
    %v1241 = vsub.f32 1.0, %v1239
    %v1242 = vsub.f32 1.0, %v1240
    %v1243 = vmul.f32 %v1201, %v1241
    %v1244 = vmul.f32 %v1202, %v1242
    %v1245 = vadd.f32 %v1243, 1.0
    %v1246 = vadd.f32 %v1244, 1.0
    %v1247 = vmul.f32 %v1195, %v1245
    %v1248 = vmul.f32 %v1196, %v1246
    %v1249 = vsel %vm156, %v1247, 0.0
    %1250 = vadd.xlane.f32.xlu0 %v1249
    %v1251 = vpop.xlane.xlu0 %1250
    %v1252 = vsel %vm156, %v1248, 0.0
    %1253 = vadd.xlane.f32.xlu0 %v1252
    %v1254 = vpop.xlane.xlu0 %1253
    %v1255 = vmul.f32 %v1251, %v1162
    %v1256 = vmul.f32 %v1254, %v1162
    %v1257 = vsub.f32 %v1247, %v1255
    %v1258 = vsub.f32 %v1248, %v1256
    %v1259 = vmul.f32 %v1257, %v1257
    %v1260 = vmul.f32 %v1258, %v1258
    %v1261 = vsel %vm156, %v1259, 0.0
    %1262 = vadd.xlane.f32.xlu0 %v1261
    %v1263 = vpop.xlane.xlu0 %1262
    %v1264 = vsel %vm156, %v1260, 0.0
    %1265 = vadd.xlane.f32.xlu0 %v1264
    %v1266 = vpop.xlane.xlu0 %1265
    %v1267 = vmul.f32 %v1263, %v1162
    %v1268 = vmul.f32 %v1266, %v1162
    %v1269 = vadd.f32 %v1267, 1e-05
    %v1270 = vadd.f32 %v1268, 1e-05
    %v1271 = vrsqrt.pop %v1269
    %v1272 = vrsqrt.pop %v1270
    %v1273 = vmul.f32 %v1257, %v1271
    %v1274 = vmul.f32 %v1258, %v1272
    %v1275 = vlaneseq
    %v1276 = vshrl.u32 %v1275, 7
    %v1277 = vsub.s32 3, %v1276
    %v1278 = vrot.slane %v154, %v1277
    %v1279 = vmul.f32 %v1273, %v1278
    %v1280 = vmul.f32 %v1274, %v1278
    %v1281 = vlaneseq
    %v1282 = vshrl.u32 %v1281, 7
    %v1283 = vsub.s32 4, %v1282
    %v1284 = vrot.slane %v154, %v1283
    %v1285 = vadd.f32 %v1279, %v1284
    %v1286 = vadd.f32 %v1280, %v1284
    %v1287 = vlaneseq
    %v1288 = vshrl.u32 %v1287, 7
    %v1289 = vsub.s32 5, %v1288
    %v1290 = vrot.slane %v154, %v1289
    %v1292 = vsel %vm156, %v1285, 0
    %v1295 = vsel %vm156, %v1286, 0
    %1297 = vmatprep.subr.mxu0 0.0
    %1298 = vmatpush1.msra.mxu0 %v142
    %1299 = vmatprep.subr.mxu0 0.0
    %1300 = vmatpush1.msra.mxu0 %v143
    %1301 = vmatprep.subr.mxu0 0.0
    %1302 = vmatpush1.msra.mxu0 %v144
    %1303 = vmatprep.subr.mxu0 0.0
    %1304 = vmatpush1.msra.mxu0 %v145
    %1305 = vmatprep.subr.mxu0 0.0
    %1306 = vmatpush1.msra.mxu0 0.0
    %1307 = vmatprep.subr.mxu0 0.0
    %1308 = vmatpush1.msra.mxu0 0.0
    %1309 = vmatprep.subr.mxu0 0.0
    %1310 = vmatpush1.msra.mxu0 0.0
    %1311 = vmatprep.subr.mxu0 0.0
    %1312 = vmatpush1.msra.mxu0 0.0
    %1313 = vmatprep.subr.mxu0 0.0
    %1314 = vmatpush1.msra.mxu0 0.0
    %1315 = vmatprep.subr.mxu0 0.0
    %1316 = vmatpush1.msra.mxu0 0.0
    %1317 = vmatprep.subr.mxu0 0.0
    %1318 = vmatpush1.msra.mxu0 0.0
    %1319 = vmatprep.subr.mxu0 0.0
    %1320 = vmatpush1.msra.mxu0 0.0
    %1321 = vmatprep.subr.mxu0 0.0
    %1322 = vmatpush1.msra.mxu0 0.0
    %1323 = vmatprep.subr.mxu0 0.0
    %1324 = vmatpush1.msra.mxu0 0.0
    %1325 = vmatprep.subr.mxu0 0.0
    %1326 = vmatpush1.msra.mxu0 0.0
    %1327 = vmatprep.subr.mxu0 0.0
    %1328 = vmatpush1.msra.mxu0 0.0
    %1329 = vmatprep.subr.mxu0 0.0
    %1330 = vmatpush1.msra.mxu0 0.0
    %1331 = vmatprep.subr.mxu0 0.0
    %1332 = vmatpush1.msra.mxu0 0.0
    %1333 = vmatprep.subr.mxu0 0.0
    %1334 = vmatpush1.msra.mxu0 0.0
    %1335 = vmatprep.subr.mxu0 0.0
    %1336 = vmatpush1.msra.mxu0 0.0
    %1337 = vmatprep.subr.mxu0 0.0
    %1338 = vmatpush1.msra.mxu0 0.0
    %1339 = vmatprep.subr.mxu0 0.0
    %1340 = vmatpush1.msra.mxu0 0.0
    %1341 = vmatprep.subr.mxu0 0.0
    %1342 = vmatpush1.msra.mxu0 0.0
    %1343 = vmatprep.subr.mxu0 0.0
    %1344 = vmatpush1.msra.mxu0 0.0
    %1345 = vmatprep.subr.mxu0 0.0
    %1346 = vmatpush1.msra.mxu0 0.0
    %1347 = vmatprep.subr.mxu0 0.0
    %1348 = vmatpush1.msra.mxu0 0.0
    %1349 = vmatprep.subr.mxu0 0.0
    %1350 = vmatpush1.msra.mxu0 0.0
    %1351 = vmatprep.subr.mxu0 0.0
    %1352 = vmatpush1.msra.mxu0 0.0
    %1353 = vmatprep.subr.mxu0 0.0
    %1354 = vmatpush1.msra.mxu0 0.0
    %1355 = vmatprep.subr.mxu0 0.0
    %1356 = vmatpush1.msra.mxu0 0.0
    %1357 = vmatprep.subr.mxu0 0.0
    %1358 = vmatpush1.msra.mxu0 0.0
    %1359 = vmatprep.subr.mxu0 0.0
    %1360 = vmatpush1.msra.mxu0 0.0
    %1361 = vmatprep.mubr.f32.mxu0 0.0
    %1362 = vmatmul.mubr.f32.gmra.mrb[0].mxu0 %v1292
    %v1363 = vpop.f32.mrb[0].mxu0
    %v1364 = vadd.f32 %v1290, %v1363
    %v1365 = vpop.f32.mrb[0].mxu0
    %1366 = vmatprep.mubr.f32.mxu0 0.0
    %1367 = vmatmul.mubr.f32.gmra.mrb[0].mxu0 %v1295
    %v1368 = vpop.f32.mrb[0].mxu0
    %v1369 = vadd.f32 %v1290, %v1368
    %v1370 = vpop.f32.mrb[0].mxu0
    %1371 = vdwg.mxu0
    %v1372 = vmul.f32 %v1364, 0.5
    %v1373 = vmul.f32 %v1369, 0.5
    %v1374 = vmul.f32 %v1364, 0.70710677
    %v1375 = vmul.f32 %v1369, 0.70710677
    %vm1376 = vcmp.ge.f32.partialorder %v1374, 0.0
    %vm1377 = vcmp.ge.f32.partialorder %v1375, 0.0
    %v1378 = vsel %vm1376, 1.0, -1.0
    %v1379 = vsel %vm1377, 1.0, -1.0
    %v1380 = vand.u32 2147483647, %v1374
    %v1381 = vand.u32 2147483647, %v1375
    %v1382 = vmul.f32 %v1380, 0.3275911
    %v1383 = vmul.f32 %v1381, 0.3275911
    %v1384 = vadd.f32 %v1382, 1.0
    %v1385 = vadd.f32 %v1383, 1.0
    %v1386 = vrcp.pop %v1384
    %v1387 = vmul.f32 1.0, %v1386
    %v1388 = vrcp.pop %v1385
    %v1389 = vmul.f32 1.0, %v1388
    %v1390 = vmul.f32 %v1387, 1.0614054
    %v1391 = vmul.f32 %v1389, 1.0614054
    %v1392 = vadd.f32 %v1390, -1.4531521
    %v1393 = vadd.f32 %v1391, -1.4531521
    %v1394 = vmul.f32 %v1392, %v1387
    %v1395 = vmul.f32 %v1393, %v1389
    %v1396 = vadd.f32 %v1394, 1.4214138
    %v1397 = vadd.f32 %v1395, 1.4214138
    %v1398 = vmul.f32 %v1396, %v1387
    %v1399 = vmul.f32 %v1397, %v1389
    %v1400 = vadd.f32 %v1398, -0.28449672
    %v1401 = vadd.f32 %v1399, -0.28449672
    %v1402 = vmul.f32 %v1400, %v1387
    %v1403 = vmul.f32 %v1401, %v1389
    %v1404 = vadd.f32 %v1402, 0.2548296
    %v1405 = vadd.f32 %v1403, 0.2548296
    %v1406 = vmul.f32 %v1404, %v1387
    %v1407 = vmul.f32 %v1405, %v1389
    %v1408 = vsub.f32 0.0, %v1380
    %v1409 = vsub.f32 0.0, %v1381
    %v1410 = vmul.f32 %v1408, %v1380
    %v1411 = vmul.f32 %v1409, %v1381
    %v1412 = vmul.f32 %v1410, 1.442695
    %v1413 = vpow.pop %v1412
    %v1414 = vmul.f32 %v1411, 1.442695
    %v1415 = vpow.pop %v1414
    %v1416 = vmul.f32 %v1406, %v1413
    %v1417 = vmul.f32 %v1407, %v1415
    %v1418 = vsub.f32 1.0, %v1416
    %v1419 = vsub.f32 1.0, %v1417
    %v1420 = vmul.f32 %v1378, %v1418
    %v1421 = vmul.f32 %v1379, %v1419
    %v1422 = vadd.f32 %v1420, 1.0
    %v1423 = vadd.f32 %v1421, 1.0
    %v1424 = vmul.f32 %v1372, %v1422
    %v1425 = vmul.f32 %v1373, %v1423
    %v1426 = vsel %vm50, %v1424, 0.0
    %1427 = vadd.xlane.f32.xlu0 %v1426
    %v1428 = vpop.xlane.xlu0 %1427
    %v1429 = vsel %vm50, %v1425, 0.0
    %1430 = vadd.xlane.f32.xlu0 %v1429
    %v1431 = vpop.xlane.xlu0 %1430
    %v1432 = vrcp.pop 64.0
    %v1433 = vmul.f32 %v1428, %v1432
    %v1434 = vmul.f32 %v1431, %v1432
    %v1435 = vsub.f32 %v1424, %v1433
    %v1436 = vsub.f32 %v1425, %v1434
    %v1437 = vmul.f32 %v1435, %v1435
    %v1438 = vmul.f32 %v1436, %v1436
    %v1439 = vsel %vm50, %v1437, 0.0
    %1440 = vadd.xlane.f32.xlu0 %v1439
    %v1441 = vpop.xlane.xlu0 %1440
    %v1442 = vsel %vm50, %v1438, 0.0
    %1443 = vadd.xlane.f32.xlu0 %v1442
    %v1444 = vpop.xlane.xlu0 %1443
    %v1445 = vmul.f32 %v1441, %v1432
    %v1446 = vmul.f32 %v1444, %v1432
    %v1447 = vadd.f32 %v1445, 1e-05
    %v1448 = vadd.f32 %v1446, 1e-05
    %v1449 = vrsqrt.pop %v1447
    %v1450 = vrsqrt.pop %v1448
    %v1451 = vmul.f32 %v1435, %v1449
    %v1452 = vmul.f32 %v1436, %v1450
    %v1453 = vlaneseq
    %v1454 = vshrl.u32 %v1453, 7
    %v1455 = vsub.s32 6, %v1454
    %v1456 = vrot.slane %v154, %v1455
    %v1457 = vmul.f32 %v1451, %v1456
    %v1458 = vmul.f32 %v1452, %v1456
    %v1459 = vlaneseq
    %v1460 = vshrl.u32 %v1459, 7
    %v1461 = vsub.s32 7, %v1460
    %v1462 = vrot.slane %v154, %v1461
    %v1463 = vadd.f32 %v1457, %v1462
    %v1464 = vadd.f32 %v1458, %v1462
    %v1465 = vlaneseq
    %v1466 = vshrl.u32 %v1465, 7
    %v1467 = vsub.s32 0, %v1466
    %v1468 = vrot.slane %v155, %v1467
    %v1470 = vsel %vm50, %v1463, 0
    %v1473 = vsel %vm50, %v1464, 0
    %1475 = vmatprep.subr.mxu0 0.0
    %1476 = vmatpush1.msra.mxu0 %v146
    %1477 = vmatprep.subr.mxu0 0.0
    %1478 = vmatpush1.msra.mxu0 %v147
    %1479 = vmatprep.subr.mxu0 0.0
    %1480 = vmatpush1.msra.mxu0 %v148
    %1481 = vmatprep.subr.mxu0 0.0
    %1482 = vmatpush1.msra.mxu0 %v149
    %1483 = vmatprep.subr.mxu0 0.0
    %1484 = vmatpush1.msra.mxu0 %v150
    %1485 = vmatprep.subr.mxu0 0.0
    %1486 = vmatpush1.msra.mxu0 %v151
    %1487 = vmatprep.subr.mxu0 0.0
    %1488 = vmatpush1.msra.mxu0 %v152
    %1489 = vmatprep.subr.mxu0 0.0
    %1490 = vmatpush1.msra.mxu0 %v153
    %1491 = vmatprep.subr.mxu0 0.0
    %1492 = vmatpush1.msra.mxu0 0.0
    %1493 = vmatprep.subr.mxu0 0.0
    %1494 = vmatpush1.msra.mxu0 0.0
    %1495 = vmatprep.subr.mxu0 0.0
    %1496 = vmatpush1.msra.mxu0 0.0
    %1497 = vmatprep.subr.mxu0 0.0
    %1498 = vmatpush1.msra.mxu0 0.0
    %1499 = vmatprep.subr.mxu0 0.0
    %1500 = vmatpush1.msra.mxu0 0.0
    %1501 = vmatprep.subr.mxu0 0.0
    %1502 = vmatpush1.msra.mxu0 0.0
    %1503 = vmatprep.subr.mxu0 0.0
    %1504 = vmatpush1.msra.mxu0 0.0
    %1505 = vmatprep.subr.mxu0 0.0
    %1506 = vmatpush1.msra.mxu0 0.0
    %1507 = vmatprep.subr.mxu0 0.0
    %1508 = vmatpush1.msra.mxu0 0.0
    %1509 = vmatprep.subr.mxu0 0.0
    %1510 = vmatpush1.msra.mxu0 0.0
    %1511 = vmatprep.subr.mxu0 0.0
    %1512 = vmatpush1.msra.mxu0 0.0
    %1513 = vmatprep.subr.mxu0 0.0
    %1514 = vmatpush1.msra.mxu0 0.0
    %1515 = vmatprep.subr.mxu0 0.0
    %1516 = vmatpush1.msra.mxu0 0.0
    %1517 = vmatprep.subr.mxu0 0.0
    %1518 = vmatpush1.msra.mxu0 0.0
    %1519 = vmatprep.subr.mxu0 0.0
    %1520 = vmatpush1.msra.mxu0 0.0
    %1521 = vmatprep.subr.mxu0 0.0
    %1522 = vmatpush1.msra.mxu0 0.0
    %1523 = vmatprep.subr.mxu0 0.0
    %1524 = vmatpush1.msra.mxu0 0.0
    %1525 = vmatprep.subr.mxu0 0.0
    %1526 = vmatpush1.msra.mxu0 0.0
    %1527 = vmatprep.subr.mxu0 0.0
    %1528 = vmatpush1.msra.mxu0 0.0
    %1529 = vmatprep.subr.mxu0 0.0
    %1530 = vmatpush1.msra.mxu0 0.0
    %1531 = vmatprep.subr.mxu0 0.0
    %1532 = vmatpush1.msra.mxu0 0.0
    %1533 = vmatprep.subr.mxu0 0.0
    %1534 = vmatpush1.msra.mxu0 0.0
    %1535 = vmatprep.subr.mxu0 0.0
    %1536 = vmatpush1.msra.mxu0 0.0
    %1537 = vmatprep.subr.mxu0 0.0
    %1538 = vmatpush1.msra.mxu0 0.0
    %1539 = vmatprep.mubr.f32.mxu0 0.0
    %1540 = vmatmul.mubr.f32.gmra.mrb[0].mxu0 %v1470
    %v1541 = vpop.f32.mrb[0].mxu0
    %v1542 = vadd.f32 %v1468, %v1541
    %v1543 = vpop.f32.mrb[0].mxu0
    %1544 = vmatprep.mubr.f32.mxu0 0.0
    %1545 = vmatmul.mubr.f32.gmra.mrb[0].mxu0 %v1473
    %v1546 = vpop.f32.mrb[0].mxu0
    %v1547 = vadd.f32 %v1468, %v1546
    %v1548 = vpop.f32.mrb[0].mxu0
    %1549 = vdwg.mxu0
    %v1550 = vadd.f32 %v1542, %v124
    %v1551 = vadd.f32 %v1547, %v129
    %v1552 = vsel %vm156, %v1550, 0.0
    %1553 = vadd.xlane.f32.xlu0 %v1552
    %v1554 = vpop.xlane.xlu0 %1553
    %v1555 = vsel %vm156, %v1551, 0.0
    %1556 = vadd.xlane.f32.xlu0 %v1555
    %v1557 = vpop.xlane.xlu0 %1556
    %v1558 = vmul.f32 %v1554, %v1162
    %v1559 = vmul.f32 %v1557, %v1162
    %v1560 = vsub.f32 %v1550, %v1558
    %v1561 = vsub.f32 %v1551, %v1559
    %v1562 = vmul.f32 %v1560, %v1560
    %v1563 = vmul.f32 %v1561, %v1561
    %v1564 = vsel %vm156, %v1562, 0.0
    %1565 = vadd.xlane.f32.xlu0 %v1564
    %v1566 = vpop.xlane.xlu0 %1565
    %v1567 = vsel %vm156, %v1563, 0.0
    %1568 = vadd.xlane.f32.xlu0 %v1567
    %v1569 = vpop.xlane.xlu0 %1568
    %v1570 = vmul.f32 %v1566, %v1162
    %v1571 = vmul.f32 %v1569, %v1162
    %v1572 = vadd.f32 %v1570, 1e-05
    %v1573 = vadd.f32 %v1571, 1e-05
    %v1574 = vrsqrt.pop %v1572
    %v1575 = vrsqrt.pop %v1573
    %v1576 = vmul.f32 %v1560, %v1574
    %v1577 = vmul.f32 %v1561, %v1575
    %v1578 = vlaneseq
    %v1579 = vshrl.u32 %v1578, 7
    %v1580 = vsub.s32 1, %v1579
    %v1581 = vrot.slane %v155, %v1580
    %v1582 = vmul.f32 %v1576, %v1581
    %v1583 = vmul.f32 %v1577, %v1581
    %v1584 = vlaneseq
    %v1585 = vshrl.u32 %v1584, 7
    %v1586 = vsub.s32 2, %v1585
    %v1587 = vrot.slane %v155, %v1586
    %v1588 = vadd.f32 %v1582, %v1587
    %v1589 = vadd.f32 %v1583, %v1587
    %v1590 = vld [vmem:[#allocation2 + $0x140] sm:$0xff]
    %v1591 = vld [vmem:[#allocation2 + $0x148] sm:$0xff]
    %v1592 = vld [vmem:[#allocation2 + $0x150] sm:$0xff]
    %v1593 = vld [vmem:[#allocation2 + $0x158] sm:$0xff]
    %v1594 = vld [vmem:[#allocation2 + $0x160] sm:$0xff]
    %v1595 = vld [vmem:[#allocation2 + $0x168] sm:$0xff]
    %v1596 = vld [vmem:[#allocation2 + $0x170] sm:$0xff]
    %v1597 = vld [vmem:[#allocation2 + $0x178] sm:$0xff]
    %v1598 = vld [vmem:[#allocation2 + $0x180] sm:$0xff]
    %v1599 = vld [vmem:[#allocation2 + $0x188] sm:$0xff]
    %v1600 = vld [vmem:[#allocation2 + $0x190] sm:$0xff]
    %v1601 = vld [vmem:[#allocation2 + $0x198] sm:$0xff]
    %v1602 = vld [vmem:[#allocation2 + $0x1a0] sm:$0xff]
    %v1603 = vld [vmem:[#allocation2 + $0x1a8] sm:$0xff]
    %v1604 = vld [vmem:[#allocation2 + $0x1b0] sm:$0xff]
    %v1605 = vld [vmem:[#allocation2 + $0x1b8] sm:$0xff]
    %v1606 = vld [vmem:[#allocation2 + $0x1c0] sm:$0xff]
    %v1607 = vld [vmem:[#allocation2 + $0x1c8] sm:$0xff]
    %v1608 = vld [vmem:[#allocation2 + $0x1d0] sm:$0xff]
    %v1609 = vld [vmem:[#allocation2 + $0x1d8] sm:$0xff]
    %v1610 = vld [vmem:[#allocation2 + $0x1e0] sm:$0xff]
    %v1611 = vld [vmem:[#allocation2 + $0x1e8] sm:$0xff]
    %v1613 = vsel %vm156, %v1588, 0
    %v1616 = vsel %vm156, %v1589, 0
    %1618 = vmatprep.subr.mxu0 0.0
    %1619 = vmatpush1.msra.mxu0 %v1590
    %1620 = vmatprep.subr.mxu0 0.0
    %1621 = vmatpush1.msra.mxu0 %v1591
    %1622 = vmatprep.subr.mxu0 0.0
    %1623 = vmatpush1.msra.mxu0 %v1592
    %1624 = vmatprep.subr.mxu0 0.0
    %1625 = vmatpush1.msra.mxu0 %v1593
    %1626 = vmatprep.subr.mxu0 0.0
    %1627 = vmatpush1.msra.mxu0 0.0
    %1628 = vmatprep.subr.mxu0 0.0
    %1629 = vmatpush1.msra.mxu0 0.0
    %1630 = vmatprep.subr.mxu0 0.0
    %1631 = vmatpush1.msra.mxu0 0.0
    %1632 = vmatprep.subr.mxu0 0.0
    %1633 = vmatpush1.msra.mxu0 0.0
    %1634 = vmatprep.subr.mxu0 0.0
    %1635 = vmatpush1.msra.mxu0 0.0
    %1636 = vmatprep.subr.mxu0 0.0
    %1637 = vmatpush1.msra.mxu0 0.0
    %1638 = vmatprep.subr.mxu0 0.0
    %1639 = vmatpush1.msra.mxu0 0.0
    %1640 = vmatprep.subr.mxu0 0.0
    %1641 = vmatpush1.msra.mxu0 0.0
    %1642 = vmatprep.subr.mxu0 0.0
    %1643 = vmatpush1.msra.mxu0 0.0
    %1644 = vmatprep.subr.mxu0 0.0
    %1645 = vmatpush1.msra.mxu0 0.0
    %1646 = vmatprep.subr.mxu0 0.0
    %1647 = vmatpush1.msra.mxu0 0.0
    %1648 = vmatprep.subr.mxu0 0.0
    %1649 = vmatpush1.msra.mxu0 0.0
    %1650 = vmatprep.subr.mxu0 0.0
    %1651 = vmatpush1.msra.mxu0 0.0
    %1652 = vmatprep.subr.mxu0 0.0
    %1653 = vmatpush1.msra.mxu0 0.0
    %1654 = vmatprep.subr.mxu0 0.0
    %1655 = vmatpush1.msra.mxu0 0.0
    %1656 = vmatprep.subr.mxu0 0.0
    %1657 = vmatpush1.msra.mxu0 0.0
    %1658 = vmatprep.subr.mxu0 0.0
    %1659 = vmatpush1.msra.mxu0 0.0
    %1660 = vmatprep.subr.mxu0 0.0
    %1661 = vmatpush1.msra.mxu0 0.0
    %1662 = vmatprep.subr.mxu0 0.0
    %1663 = vmatpush1.msra.mxu0 0.0
    %1664 = vmatprep.subr.mxu0 0.0
    %1665 = vmatpush1.msra.mxu0 0.0
    %1666 = vmatprep.subr.mxu0 0.0
    %1667 = vmatpush1.msra.mxu0 0.0
    %1668 = vmatprep.subr.mxu0 0.0
    %1669 = vmatpush1.msra.mxu0 0.0
    %1670 = vmatprep.subr.mxu0 0.0
    %1671 = vmatpush1.msra.mxu0 0.0
    %1672 = vmatprep.subr.mxu0 0.0
    %1673 = vmatpush1.msra.mxu0 0.0
    %1674 = vmatprep.subr.mxu0 0.0
    %1675 = vmatpush1.msra.mxu0 0.0
    %1676 = vmatprep.subr.mxu0 0.0
    %1677 = vmatpush1.msra.mxu0 0.0
    %1678 = vmatprep.subr.mxu0 0.0
    %1679 = vmatpush1.msra.mxu0 0.0
    %1680 = vmatprep.subr.mxu0 0.0
    %1681 = vmatpush1.msra.mxu0 0.0
    %1682 = vmatprep.mubr.f32.mxu0 0.0
    %1683 = vmatmul.mubr.f32.gmra.mrb[0].mxu0 %v1613
    %v1684 = vpop.f32.mrb[0].mxu0
    %v1685 = vadd.f32 0.0, %v1684
    %v1686 = vpop.f32.mrb[0].mxu0
    %1687 = vmatprep.mubr.f32.mxu0 0.0
    %1688 = vmatmul.mubr.f32.gmra.mrb[0].mxu0 %v1616
    %v1689 = vpop.f32.mrb[0].mxu0
    %v1690 = vadd.f32 0.0, %v1689
    %v1691 = vpop.f32.mrb[0].mxu0
    %1692 = vdwg.mxu0
    %1695 = vrot.lane.b32.xlu0 %v1685, 96
    %v1696 = vpop.permute.xlu0 %1695
    %1697 = vrot.lane.b32.xlu0 %v1690, 96
    %v1698 = vpop.permute.xlu0 %1697
    %v1699 = vsel %vm244, %v1685, 0
    %v1701 = vsel %vm244, %v1690, 0
    %v1703 = vsel %vm244, %v1696, 0
    %v1705 = vsel %vm244, %v1698, 0
    %1707 = vmatprep.subr.mxu0 0.0
    %1708 = vmatpush1.xpose.msra.mxu0 %v1703
    %1709 = vmatprep.subr.mxu0 0.0
    %1710 = vmatpush1.xpose.msra.mxu0 %v1705
    %1711 = vmatprep.subr.mxu0 0.0
    %1712 = vmatpush1.xpose.msra.mxu0 0.0
    %1713 = vmatprep.subr.mxu0 0.0
    %1714 = vmatpush1.xpose.msra.mxu0 0.0
    %1715 = vmatprep.subr.mxu0 0.0
    %1716 = vmatpush1.xpose.msra.mxu0 0.0
    %1717 = vmatprep.subr.mxu0 0.0
    %1718 = vmatpush1.xpose.msra.mxu0 0.0
    %1719 = vmatprep.subr.mxu0 0.0
    %1720 = vmatpush1.xpose.msra.mxu0 0.0
    %1721 = vmatprep.subr.mxu0 0.0
    %1722 = vmatpush1.xpose.msra.mxu0 0.0
    %1723 = vmatprep.subr.mxu0 0.0
    %1724 = vmatpush1.xpose.msra.mxu0 0.0
    %1725 = vmatprep.subr.mxu0 0.0
    %1726 = vmatpush1.xpose.msra.mxu0 0.0
    %1727 = vmatprep.subr.mxu0 0.0
    %1728 = vmatpush1.xpose.msra.mxu0 0.0
    %1729 = vmatprep.subr.mxu0 0.0
    %1730 = vmatpush1.xpose.msra.mxu0 0.0
    %1731 = vmatprep.subr.mxu0 0.0
    %1732 = vmatpush1.xpose.msra.mxu0 0.0
    %1733 = vmatprep.subr.mxu0 0.0
    %1734 = vmatpush1.xpose.msra.mxu0 0.0
    %1735 = vmatprep.subr.mxu0 0.0
    %1736 = vmatpush1.xpose.msra.mxu0 0.0
    %1737 = vmatprep.subr.mxu0 0.0
    %1738 = vmatpush1.xpose.msra.mxu0 0.0
    %1739 = vmatprep.subr.mxu0 0.0
    %1740 = vmatpush1.xpose.msra.mxu0 0.0
    %1741 = vmatprep.subr.mxu0 0.0
    %1742 = vmatpush1.xpose.msra.mxu0 0.0
    %1743 = vmatprep.subr.mxu0 0.0
    %1744 = vmatpush1.xpose.msra.mxu0 0.0
    %1745 = vmatprep.subr.mxu0 0.0
    %1746 = vmatpush1.xpose.msra.mxu0 0.0
    %1747 = vmatprep.subr.mxu0 0.0
    %1748 = vmatpush1.xpose.msra.mxu0 0.0
    %1749 = vmatprep.subr.mxu0 0.0
    %1750 = vmatpush1.xpose.msra.mxu0 0.0
    %1751 = vmatprep.subr.mxu0 0.0
    %1752 = vmatpush1.xpose.msra.mxu0 0.0
    %1753 = vmatprep.subr.mxu0 0.0
    %1754 = vmatpush1.xpose.msra.mxu0 0.0
    %1755 = vmatprep.subr.mxu0 0.0
    %1756 = vmatpush1.xpose.msra.mxu0 0.0
    %1757 = vmatprep.subr.mxu0 0.0
    %1758 = vmatpush1.xpose.msra.mxu0 0.0
    %1759 = vmatprep.subr.mxu0 0.0
    %1760 = vmatpush1.xpose.msra.mxu0 0.0
    %1761 = vmatprep.subr.mxu0 0.0
    %1762 = vmatpush1.xpose.msra.mxu0 0.0
    %1763 = vmatprep.subr.mxu0 0.0
    %1764 = vmatpush1.xpose.msra.mxu0 0.0
    %1765 = vmatprep.subr.mxu0 0.0
    %1766 = vmatpush1.xpose.msra.mxu0 0.0
    %1767 = vmatprep.subr.mxu0 0.0
    %1768 = vmatpush1.xpose.msra.mxu0 0.0
    %1769 = vmatprep.subr.mxu0 0.0
    %1770 = vmatpush1.xpose.msra.mxu0 0.0
    %1771 = vmatprep.mubr.f32.mxu0 0.0
    %1772 = vmatmul.mubr.f32.gmra.mrb[0].mxu0 %v1699
    %v1773 = vpop.f32.mrb[0].mxu0
    %v1774 = vadd.f32 %v132, %v1773
    %v1775 = vpop.f32.mrb[0].mxu0
    %1776 = vmatprep.mubr.f32.mxu0 0.0
    %1777 = vmatmul.mubr.f32.gmra.mrb[0].mxu0 %v1701
    %v1778 = vpop.f32.mrb[0].mxu0
    %v1779 = vadd.f32 %v133, %v1778
    %v1780 = vpop.f32.mrb[0].mxu0
    %1781 = vdwg.mxu0
    %v1782 = vsel %vm328, %v1774, -inf
    %1783 = vmax.xlane.f32.xlu0 %v1782
    %v1784 = vpop.xlane.xlu0 %1783
    %v1785 = vsel %vm328, %v1779, -inf
    %1786 = vmax.xlane.f32.xlu0 %v1785
    %v1787 = vpop.xlane.xlu0 %1786
    %v1788 = vsub.f32 %v1774, %v1784
    %v1789 = vsub.f32 %v1779, %v1787
    %v1790 = vmul.f32 %v1788, 1.442695
    %v1791 = vpow.pop %v1790
    %v1792 = vmul.f32 %v1789, 1.442695
    %v1793 = vpow.pop %v1792
    %v1794 = vsel %vm328, %v1791, 0.0
    %1795 = vadd.xlane.f32.xlu0 %v1794
    %v1796 = vpop.xlane.xlu0 %1795
    %v1797 = vsel %vm328, %v1793, 0.0
    %1798 = vadd.xlane.f32.xlu0 %v1797
    %v1799 = vpop.xlane.xlu0 %1798
    %v1800 = vrcp.pop %v1796
    %v1801 = vrcp.pop %v1799
    %v1802 = vmul.f32 %v1791, %v1800
    %v1803 = vmul.f32 %v1793, %v1801
    %1804 = vrot.lane.b32.xlu0 %v1685, 64
    %v1805 = vpop.permute.xlu0 %1804
    %1806 = vrot.lane.b32.xlu0 %v1690, 64
    %v1807 = vpop.permute.xlu0 %1806
    %v1811 = vsel %vm328, %v1802, 0
    %v1814 = vsel %vm328, %v1803, 0
    %1816 = vmatprep.subr.mxu0 0.0
    %1817 = vmatpush1.msra.mxu0 %v1805
    %1818 = vmatprep.subr.mxu0 0.0
    %1819 = vmatpush1.msra.mxu0 %v1807
    %1820 = vmatprep.subr.mxu0 0.0
    %1821 = vmatpush1.msra.mxu0 0.0
    %1822 = vmatprep.subr.mxu0 0.0
    %1823 = vmatpush1.msra.mxu0 0.0
    %1824 = vmatprep.subr.mxu0 0.0
    %1825 = vmatpush1.msra.mxu0 0.0
    %1826 = vmatprep.subr.mxu0 0.0
    %1827 = vmatpush1.msra.mxu0 0.0
    %1828 = vmatprep.subr.mxu0 0.0
    %1829 = vmatpush1.msra.mxu0 0.0
    %1830 = vmatprep.subr.mxu0 0.0
    %1831 = vmatpush1.msra.mxu0 0.0
    %1832 = vmatprep.subr.mxu0 0.0
    %1833 = vmatpush1.msra.mxu0 0.0
    %1834 = vmatprep.subr.mxu0 0.0
    %1835 = vmatpush1.msra.mxu0 0.0
    %1836 = vmatprep.subr.mxu0 0.0
    %1837 = vmatpush1.msra.mxu0 0.0
    %1838 = vmatprep.subr.mxu0 0.0
    %1839 = vmatpush1.msra.mxu0 0.0
    %1840 = vmatprep.subr.mxu0 0.0
    %1841 = vmatpush1.msra.mxu0 0.0
    %1842 = vmatprep.subr.mxu0 0.0
    %1843 = vmatpush1.msra.mxu0 0.0
    %1844 = vmatprep.subr.mxu0 0.0
    %1845 = vmatpush1.msra.mxu0 0.0
    %1846 = vmatprep.subr.mxu0 0.0
    %1847 = vmatpush1.msra.mxu0 0.0
    %1848 = vmatprep.subr.mxu0 0.0
    %1849 = vmatpush1.msra.mxu0 0.0
    %1850 = vmatprep.subr.mxu0 0.0
    %1851 = vmatpush1.msra.mxu0 0.0
    %1852 = vmatprep.subr.mxu0 0.0
    %1853 = vmatpush1.msra.mxu0 0.0
    %1854 = vmatprep.subr.mxu0 0.0
    %1855 = vmatpush1.msra.mxu0 0.0
    %1856 = vmatprep.subr.mxu0 0.0
    %1857 = vmatpush1.msra.mxu0 0.0
    %1858 = vmatprep.subr.mxu0 0.0
    %1859 = vmatpush1.msra.mxu0 0.0
    %1860 = vmatprep.subr.mxu0 0.0
    %1861 = vmatpush1.msra.mxu0 0.0
    %1862 = vmatprep.subr.mxu0 0.0
    %1863 = vmatpush1.msra.mxu0 0.0
    %1864 = vmatprep.subr.mxu0 0.0
    %1865 = vmatpush1.msra.mxu0 0.0
    %1866 = vmatprep.subr.mxu0 0.0
    %1867 = vmatpush1.msra.mxu0 0.0
    %1868 = vmatprep.subr.mxu0 0.0
    %1869 = vmatpush1.msra.mxu0 0.0
    %1870 = vmatprep.subr.mxu0 0.0
    %1871 = vmatpush1.msra.mxu0 0.0
    %1872 = vmatprep.subr.mxu0 0.0
    %1873 = vmatpush1.msra.mxu0 0.0
    %1874 = vmatprep.subr.mxu0 0.0
    %1875 = vmatpush1.msra.mxu0 0.0
    %1876 = vmatprep.subr.mxu0 0.0
    %1877 = vmatpush1.msra.mxu0 0.0
    %1878 = vmatprep.subr.mxu0 0.0
    %1879 = vmatpush1.msra.mxu0 0.0
    %1880 = vmatprep.mubr.f32.mxu0 0.0
    %1881 = vmatmul.mubr.f32.gmra.mrb[0].mxu0 %v1811
    %v1882 = vpop.f32.mrb[0].mxu0
    %v1883 = vadd.f32 0.0, %v1882
    %v1884 = vpop.f32.mrb[0].mxu0
    %1885 = vmatprep.mubr.f32.mxu0 0.0
    %1886 = vmatmul.mubr.f32.gmra.mrb[0].mxu0 %v1814
    %v1887 = vpop.f32.mrb[0].mxu0
    %v1888 = vadd.f32 0.0, %v1887
    %v1889 = vpop.f32.mrb[0].mxu0
    %1890 = vdwg.mxu0
    %1891 = vrot.lane.b32.xlu0 %v1685, 120
    %v1892 = vpop.permute.xlu0 %1891
    %1893 = vrot.lane.b32.xlu0 %v1690, 120
    %v1894 = vpop.permute.xlu0 %1893
    %1895 = vrot.lane.b32.xlu0 %v1685, 88
    %v1896 = vpop.permute.xlu0 %1895
    %1897 = vrot.lane.b32.xlu0 %v1690, 88
    %v1898 = vpop.permute.xlu0 %1897
    %v1899 = vsel %vm244, %v1892, 0
    %v1901 = vsel %vm244, %v1894, 0
    %v1903 = vsel %vm244, %v1896, 0
    %v1905 = vsel %vm244, %v1898, 0
    %1907 = vmatprep.subr.mxu0 0.0
    %1908 = vmatpush1.xpose.msra.mxu0 %v1903
    %1909 = vmatprep.subr.mxu0 0.0
    %1910 = vmatpush1.xpose.msra.mxu0 %v1905
    %1911 = vmatprep.subr.mxu0 0.0
    %1912 = vmatpush1.xpose.msra.mxu0 0.0
    %1913 = vmatprep.subr.mxu0 0.0
    %1914 = vmatpush1.xpose.msra.mxu0 0.0
    %1915 = vmatprep.subr.mxu0 0.0
    %1916 = vmatpush1.xpose.msra.mxu0 0.0
    %1917 = vmatprep.subr.mxu0 0.0
    %1918 = vmatpush1.xpose.msra.mxu0 0.0
    %1919 = vmatprep.subr.mxu0 0.0
    %1920 = vmatpush1.xpose.msra.mxu0 0.0
    %1921 = vmatprep.subr.mxu0 0.0
    %1922 = vmatpush1.xpose.msra.mxu0 0.0
    %1923 = vmatprep.subr.mxu0 0.0
    %1924 = vmatpush1.xpose.msra.mxu0 0.0
    %1925 = vmatprep.subr.mxu0 0.0
    %1926 = vmatpush1.xpose.msra.mxu0 0.0
    %1927 = vmatprep.subr.mxu0 0.0
    %1928 = vmatpush1.xpose.msra.mxu0 0.0
    %1929 = vmatprep.subr.mxu0 0.0
    %1930 = vmatpush1.xpose.msra.mxu0 0.0
    %1931 = vmatprep.subr.mxu0 0.0
    %1932 = vmatpush1.xpose.msra.mxu0 0.0
    %1933 = vmatprep.subr.mxu0 0.0
    %1934 = vmatpush1.xpose.msra.mxu0 0.0
    %1935 = vmatprep.subr.mxu0 0.0
    %1936 = vmatpush1.xpose.msra.mxu0 0.0
    %1937 = vmatprep.subr.mxu0 0.0
    %1938 = vmatpush1.xpose.msra.mxu0 0.0
    %1939 = vmatprep.subr.mxu0 0.0
    %1940 = vmatpush1.xpose.msra.mxu0 0.0
    %1941 = vmatprep.subr.mxu0 0.0
    %1942 = vmatpush1.xpose.msra.mxu0 0.0
    %1943 = vmatprep.subr.mxu0 0.0
    %1944 = vmatpush1.xpose.msra.mxu0 0.0
    %1945 = vmatprep.subr.mxu0 0.0
    %1946 = vmatpush1.xpose.msra.mxu0 0.0
    %1947 = vmatprep.subr.mxu0 0.0
    %1948 = vmatpush1.xpose.msra.mxu0 0.0
    %1949 = vmatprep.subr.mxu0 0.0
    %1950 = vmatpush1.xpose.msra.mxu0 0.0
    %1951 = vmatprep.subr.mxu0 0.0
    %1952 = vmatpush1.xpose.msra.mxu0 0.0
    %1953 = vmatprep.subr.mxu0 0.0
    %1954 = vmatpush1.xpose.msra.mxu0 0.0
    %1955 = vmatprep.subr.mxu0 0.0
    %1956 = vmatpush1.xpose.msra.mxu0 0.0
    %1957 = vmatprep.subr.mxu0 0.0
    %1958 = vmatpush1.xpose.msra.mxu0 0.0
    %1959 = vmatprep.subr.mxu0 0.0
    %1960 = vmatpush1.xpose.msra.mxu0 0.0
    %1961 = vmatprep.subr.mxu0 0.0
    %1962 = vmatpush1.xpose.msra.mxu0 0.0
    %1963 = vmatprep.subr.mxu0 0.0
    %1964 = vmatpush1.xpose.msra.mxu0 0.0
    %1965 = vmatprep.subr.mxu0 0.0
    %1966 = vmatpush1.xpose.msra.mxu0 0.0
    %1967 = vmatprep.subr.mxu0 0.0
    %1968 = vmatpush1.xpose.msra.mxu0 0.0
    %1969 = vmatprep.subr.mxu0 0.0
    %1970 = vmatpush1.xpose.msra.mxu0 0.0
    %1971 = vmatprep.mubr.f32.mxu0 0.0
    %1972 = vmatmul.mubr.f32.gmra.mrb[0].mxu0 %v1899
    %v1973 = vpop.f32.mrb[0].mxu0
    %v1974 = vadd.f32 %v132, %v1973
    %v1975 = vpop.f32.mrb[0].mxu0
    %1976 = vmatprep.mubr.f32.mxu0 0.0
    %1977 = vmatmul.mubr.f32.gmra.mrb[0].mxu0 %v1901
    %v1978 = vpop.f32.mrb[0].mxu0
    %v1979 = vadd.f32 %v133, %v1978
    %v1980 = vpop.f32.mrb[0].mxu0
    %1981 = vdwg.mxu0
    %v1982 = vsel %vm328, %v1974, -inf
    %1983 = vmax.xlane.f32.xlu0 %v1982
    %v1984 = vpop.xlane.xlu0 %1983
    %v1985 = vsel %vm328, %v1979, -inf
    %1986 = vmax.xlane.f32.xlu0 %v1985
    %v1987 = vpop.xlane.xlu0 %1986
    %v1988 = vsub.f32 %v1974, %v1984
    %v1989 = vsub.f32 %v1979, %v1987
    %v1990 = vmul.f32 %v1988, 1.442695
    %v1991 = vpow.pop %v1990
    %v1992 = vmul.f32 %v1989, 1.442695
    %v1993 = vpow.pop %v1992
    %v1994 = vsel %vm328, %v1991, 0.0
    %1995 = vadd.xlane.f32.xlu0 %v1994
    %v1996 = vpop.xlane.xlu0 %1995
    %v1997 = vsel %vm328, %v1993, 0.0
    %1998 = vadd.xlane.f32.xlu0 %v1997
    %v1999 = vpop.xlane.xlu0 %1998
    %v2000 = vrcp.pop %v1996
    %v2001 = vrcp.pop %v1999
    %v2002 = vmul.f32 %v1991, %v2000
    %v2003 = vmul.f32 %v1993, %v2001
    %2004 = vrot.lane.b32.xlu0 %v1685, 56
    %v2005 = vpop.permute.xlu0 %2004
    %2006 = vrot.lane.b32.xlu0 %v1690, 56
    %v2007 = vpop.permute.xlu0 %2006
    %v2011 = vsel %vm328, %v2002, 0
    %v2014 = vsel %vm328, %v2003, 0
    %2016 = vmatprep.subr.mxu0 0.0
    %2017 = vmatpush1.msra.mxu0 %v2005
    %2018 = vmatprep.subr.mxu0 0.0
    %2019 = vmatpush1.msra.mxu0 %v2007
    %2020 = vmatprep.subr.mxu0 0.0
    %2021 = vmatpush1.msra.mxu0 0.0
    %2022 = vmatprep.subr.mxu0 0.0
    %2023 = vmatpush1.msra.mxu0 0.0
    %2024 = vmatprep.subr.mxu0 0.0
    %2025 = vmatpush1.msra.mxu0 0.0
    %2026 = vmatprep.subr.mxu0 0.0
    %2027 = vmatpush1.msra.mxu0 0.0
    %2028 = vmatprep.subr.mxu0 0.0
    %2029 = vmatpush1.msra.mxu0 0.0
    %2030 = vmatprep.subr.mxu0 0.0
    %2031 = vmatpush1.msra.mxu0 0.0
    %2032 = vmatprep.subr.mxu0 0.0
    %2033 = vmatpush1.msra.mxu0 0.0
    %2034 = vmatprep.subr.mxu0 0.0
    %2035 = vmatpush1.msra.mxu0 0.0
    %2036 = vmatprep.subr.mxu0 0.0
    %2037 = vmatpush1.msra.mxu0 0.0
    %2038 = vmatprep.subr.mxu0 0.0
    %2039 = vmatpush1.msra.mxu0 0.0
    %2040 = vmatprep.subr.mxu0 0.0
    %2041 = vmatpush1.msra.mxu0 0.0
    %2042 = vmatprep.subr.mxu0 0.0
    %2043 = vmatpush1.msra.mxu0 0.0
    %2044 = vmatprep.subr.mxu0 0.0
    %2045 = vmatpush1.msra.mxu0 0.0
    %2046 = vmatprep.subr.mxu0 0.0
    %2047 = vmatpush1.msra.mxu0 0.0
    %2048 = vmatprep.subr.mxu0 0.0
    %2049 = vmatpush1.msra.mxu0 0.0
    %2050 = vmatprep.subr.mxu0 0.0
    %2051 = vmatpush1.msra.mxu0 0.0
    %2052 = vmatprep.subr.mxu0 0.0
    %2053 = vmatpush1.msra.mxu0 0.0
    %2054 = vmatprep.subr.mxu0 0.0
    %2055 = vmatpush1.msra.mxu0 0.0
    %2056 = vmatprep.subr.mxu0 0.0
    %2057 = vmatpush1.msra.mxu0 0.0
    %2058 = vmatprep.subr.mxu0 0.0
    %2059 = vmatpush1.msra.mxu0 0.0
    %2060 = vmatprep.subr.mxu0 0.0
    %2061 = vmatpush1.msra.mxu0 0.0
    %2062 = vmatprep.subr.mxu0 0.0
    %2063 = vmatpush1.msra.mxu0 0.0
    %2064 = vmatprep.subr.mxu0 0.0
    %2065 = vmatpush1.msra.mxu0 0.0
    %2066 = vmatprep.subr.mxu0 0.0
    %2067 = vmatpush1.msra.mxu0 0.0
    %2068 = vmatprep.subr.mxu0 0.0
    %2069 = vmatpush1.msra.mxu0 0.0
    %2070 = vmatprep.subr.mxu0 0.0
    %2071 = vmatpush1.msra.mxu0 0.0
    %2072 = vmatprep.subr.mxu0 0.0
    %2073 = vmatpush1.msra.mxu0 0.0
    %2074 = vmatprep.subr.mxu0 0.0
    %2075 = vmatpush1.msra.mxu0 0.0
    %2076 = vmatprep.subr.mxu0 0.0
    %2077 = vmatpush1.msra.mxu0 0.0
    %2078 = vmatprep.subr.mxu0 0.0
    %2079 = vmatpush1.msra.mxu0 0.0
    %2080 = vmatprep.mubr.f32.mxu0 0.0
    %2081 = vmatmul.mubr.f32.gmra.mrb[0].mxu0 %v2011
    %v2082 = vpop.f32.mrb[0].mxu0
    %v2083 = vadd.f32 0.0, %v2082
    %v2084 = vpop.f32.mrb[0].mxu0
    %2085 = vmatprep.mubr.f32.mxu0 0.0
    %2086 = vmatmul.mubr.f32.gmra.mrb[0].mxu0 %v2014
    %v2087 = vpop.f32.mrb[0].mxu0
    %v2088 = vadd.f32 0.0, %v2087
    %v2089 = vpop.f32.mrb[0].mxu0
    %2090 = vdwg.mxu0
    %2091 = vrot.lane.b32.xlu0 %v1685, 112
    %v2092 = vpop.permute.xlu0 %2091
    %2093 = vrot.lane.b32.xlu0 %v1690, 112
    %v2094 = vpop.permute.xlu0 %2093
    %2095 = vrot.lane.b32.xlu0 %v1685, 80
    %v2096 = vpop.permute.xlu0 %2095
    %2097 = vrot.lane.b32.xlu0 %v1690, 80
    %v2098 = vpop.permute.xlu0 %2097
    %v2099 = vsel %vm244, %v2092, 0
    %v2101 = vsel %vm244, %v2094, 0
    %v2103 = vsel %vm244, %v2096, 0
    %v2105 = vsel %vm244, %v2098, 0
    %2107 = vmatprep.subr.mxu0 0.0
    %2108 = vmatpush1.xpose.msra.mxu0 %v2103
    %2109 = vmatprep.subr.mxu0 0.0
    %2110 = vmatpush1.xpose.msra.mxu0 %v2105
    %2111 = vmatprep.subr.mxu0 0.0
    %2112 = vmatpush1.xpose.msra.mxu0 0.0
    %2113 = vmatprep.subr.mxu0 0.0
    %2114 = vmatpush1.xpose.msra.mxu0 0.0
    %2115 = vmatprep.subr.mxu0 0.0
    %2116 = vmatpush1.xpose.msra.mxu0 0.0
    %2117 = vmatprep.subr.mxu0 0.0
    %2118 = vmatpush1.xpose.msra.mxu0 0.0
    %2119 = vmatprep.subr.mxu0 0.0
    %2120 = vmatpush1.xpose.msra.mxu0 0.0
    %2121 = vmatprep.subr.mxu0 0.0
    %2122 = vmatpush1.xpose.msra.mxu0 0.0
    %2123 = vmatprep.subr.mxu0 0.0
    %2124 = vmatpush1.xpose.msra.mxu0 0.0
    %2125 = vmatprep.subr.mxu0 0.0
    %2126 = vmatpush1.xpose.msra.mxu0 0.0
    %2127 = vmatprep.subr.mxu0 0.0
    %2128 = vmatpush1.xpose.msra.mxu0 0.0
    %2129 = vmatprep.subr.mxu0 0.0
    %2130 = vmatpush1.xpose.msra.mxu0 0.0
    %2131 = vmatprep.subr.mxu0 0.0
    %2132 = vmatpush1.xpose.msra.mxu0 0.0
    %2133 = vmatprep.subr.mxu0 0.0
    %2134 = vmatpush1.xpose.msra.mxu0 0.0
    %2135 = vmatprep.subr.mxu0 0.0
    %2136 = vmatpush1.xpose.msra.mxu0 0.0
    %2137 = vmatprep.subr.mxu0 0.0
    %2138 = vmatpush1.xpose.msra.mxu0 0.0
    %2139 = vmatprep.subr.mxu0 0.0
    %2140 = vmatpush1.xpose.msra.mxu0 0.0
    %2141 = vmatprep.subr.mxu0 0.0
    %2142 = vmatpush1.xpose.msra.mxu0 0.0
    %2143 = vmatprep.subr.mxu0 0.0
    %2144 = vmatpush1.xpose.msra.mxu0 0.0
    %2145 = vmatprep.subr.mxu0 0.0
    %2146 = vmatpush1.xpose.msra.mxu0 0.0
    %2147 = vmatprep.subr.mxu0 0.0
    %2148 = vmatpush1.xpose.msra.mxu0 0.0
    %2149 = vmatprep.subr.mxu0 0.0
    %2150 = vmatpush1.xpose.msra.mxu0 0.0
    %2151 = vmatprep.subr.mxu0 0.0
    %2152 = vmatpush1.xpose.msra.mxu0 0.0
    %2153 = vmatprep.subr.mxu0 0.0
    %2154 = vmatpush1.xpose.msra.mxu0 0.0
    %2155 = vmatprep.subr.mxu0 0.0
    %2156 = vmatpush1.xpose.msra.mxu0 0.0
    %2157 = vmatprep.subr.mxu0 0.0
    %2158 = vmatpush1.xpose.msra.mxu0 0.0
    %2159 = vmatprep.subr.mxu0 0.0
    %2160 = vmatpush1.xpose.msra.mxu0 0.0
    %2161 = vmatprep.subr.mxu0 0.0
    %2162 = vmatpush1.xpose.msra.mxu0 0.0
    %2163 = vmatprep.subr.mxu0 0.0
    %2164 = vmatpush1.xpose.msra.mxu0 0.0
    %2165 = vmatprep.subr.mxu0 0.0
    %2166 = vmatpush1.xpose.msra.mxu0 0.0
    %2167 = vmatprep.subr.mxu0 0.0
    %2168 = vmatpush1.xpose.msra.mxu0 0.0
    %2169 = vmatprep.subr.mxu0 0.0
    %2170 = vmatpush1.xpose.msra.mxu0 0.0
    %2171 = vmatprep.mubr.f32.mxu0 0.0
    %2172 = vmatmul.mubr.f32.gmra.mrb[0].mxu0 %v2099
    %v2173 = vpop.f32.mrb[0].mxu0
    %v2174 = vadd.f32 %v132, %v2173
    %v2175 = vpop.f32.mrb[0].mxu0
    %2176 = vmatprep.mubr.f32.mxu0 0.0
    %2177 = vmatmul.mubr.f32.gmra.mrb[0].mxu0 %v2101
    %v2178 = vpop.f32.mrb[0].mxu0
    %v2179 = vadd.f32 %v133, %v2178
    %v2180 = vpop.f32.mrb[0].mxu0
    %2181 = vdwg.mxu0
    %v2182 = vsel %vm328, %v2174, -inf
    %2183 = vmax.xlane.f32.xlu0 %v2182
    %v2184 = vpop.xlane.xlu0 %2183
    %v2185 = vsel %vm328, %v2179, -inf
    %2186 = vmax.xlane.f32.xlu0 %v2185
    %v2187 = vpop.xlane.xlu0 %2186
    %v2188 = vsub.f32 %v2174, %v2184
    %v2189 = vsub.f32 %v2179, %v2187
    %v2190 = vmul.f32 %v2188, 1.442695
    %v2191 = vpow.pop %v2190
    %v2192 = vmul.f32 %v2189, 1.442695
    %v2193 = vpow.pop %v2192
    %v2194 = vsel %vm328, %v2191, 0.0
    %2195 = vadd.xlane.f32.xlu0 %v2194
    %v2196 = vpop.xlane.xlu0 %2195
    %v2197 = vsel %vm328, %v2193, 0.0
    %2198 = vadd.xlane.f32.xlu0 %v2197
    %v2199 = vpop.xlane.xlu0 %2198
    %v2200 = vrcp.pop %v2196
    %v2201 = vrcp.pop %v2199
    %v2202 = vmul.f32 %v2191, %v2200
    %v2203 = vmul.f32 %v2193, %v2201
    %2204 = vrot.lane.b32.xlu0 %v1685, 48
    %v2205 = vpop.permute.xlu0 %2204
    %2206 = vrot.lane.b32.xlu0 %v1690, 48
    %v2207 = vpop.permute.xlu0 %2206
    %v2211 = vsel %vm328, %v2202, 0
    %v2214 = vsel %vm328, %v2203, 0
    %2216 = vmatprep.subr.mxu0 0.0
    %2217 = vmatpush1.msra.mxu0 %v2205
    %2218 = vmatprep.subr.mxu0 0.0
    %2219 = vmatpush1.msra.mxu0 %v2207
    %2220 = vmatprep.subr.mxu0 0.0
    %2221 = vmatpush1.msra.mxu0 0.0
    %2222 = vmatprep.subr.mxu0 0.0
    %2223 = vmatpush1.msra.mxu0 0.0
    %2224 = vmatprep.subr.mxu0 0.0
    %2225 = vmatpush1.msra.mxu0 0.0
    %2226 = vmatprep.subr.mxu0 0.0
    %2227 = vmatpush1.msra.mxu0 0.0
    %2228 = vmatprep.subr.mxu0 0.0
    %2229 = vmatpush1.msra.mxu0 0.0
    %2230 = vmatprep.subr.mxu0 0.0
    %2231 = vmatpush1.msra.mxu0 0.0
    %2232 = vmatprep.subr.mxu0 0.0
    %2233 = vmatpush1.msra.mxu0 0.0
    %2234 = vmatprep.subr.mxu0 0.0
    %2235 = vmatpush1.msra.mxu0 0.0
    %2236 = vmatprep.subr.mxu0 0.0
    %2237 = vmatpush1.msra.mxu0 0.0
    %2238 = vmatprep.subr.mxu0 0.0
    %2239 = vmatpush1.msra.mxu0 0.0
    %2240 = vmatprep.subr.mxu0 0.0
    %2241 = vmatpush1.msra.mxu0 0.0
    %2242 = vmatprep.subr.mxu0 0.0
    %2243 = vmatpush1.msra.mxu0 0.0
    %2244 = vmatprep.subr.mxu0 0.0
    %2245 = vmatpush1.msra.mxu0 0.0
    %2246 = vmatprep.subr.mxu0 0.0
    %2247 = vmatpush1.msra.mxu0 0.0
    %2248 = vmatprep.subr.mxu0 0.0
    %2249 = vmatpush1.msra.mxu0 0.0
    %2250 = vmatprep.subr.mxu0 0.0
    %2251 = vmatpush1.msra.mxu0 0.0
    %2252 = vmatprep.subr.mxu0 0.0
    %2253 = vmatpush1.msra.mxu0 0.0
    %2254 = vmatprep.subr.mxu0 0.0
    %2255 = vmatpush1.msra.mxu0 0.0
    %2256 = vmatprep.subr.mxu0 0.0
    %2257 = vmatpush1.msra.mxu0 0.0
    %2258 = vmatprep.subr.mxu0 0.0
    %2259 = vmatpush1.msra.mxu0 0.0
    %2260 = vmatprep.subr.mxu0 0.0
    %2261 = vmatpush1.msra.mxu0 0.0
    %2262 = vmatprep.subr.mxu0 0.0
    %2263 = vmatpush1.msra.mxu0 0.0
    %2264 = vmatprep.subr.mxu0 0.0
    %2265 = vmatpush1.msra.mxu0 0.0
    %2266 = vmatprep.subr.mxu0 0.0
    %2267 = vmatpush1.msra.mxu0 0.0
    %2268 = vmatprep.subr.mxu0 0.0
    %2269 = vmatpush1.msra.mxu0 0.0
    %2270 = vmatprep.subr.mxu0 0.0
    %2271 = vmatpush1.msra.mxu0 0.0
    %2272 = vmatprep.subr.mxu0 0.0
    %2273 = vmatpush1.msra.mxu0 0.0
    %2274 = vmatprep.subr.mxu0 0.0
    %2275 = vmatpush1.msra.mxu0 0.0
    %2276 = vmatprep.subr.mxu0 0.0
    %2277 = vmatpush1.msra.mxu0 0.0
    %2278 = vmatprep.subr.mxu0 0.0
    %2279 = vmatpush1.msra.mxu0 0.0
    %2280 = vmatprep.mubr.f32.mxu0 0.0
    %2281 = vmatmul.mubr.f32.gmra.mrb[0].mxu0 %v2211
    %v2282 = vpop.f32.mrb[0].mxu0
    %v2283 = vadd.f32 0.0, %v2282
    %v2284 = vpop.f32.mrb[0].mxu0
    %2285 = vmatprep.mubr.f32.mxu0 0.0
    %2286 = vmatmul.mubr.f32.gmra.mrb[0].mxu0 %v2214
    %v2287 = vpop.f32.mrb[0].mxu0
    %v2288 = vadd.f32 0.0, %v2287
    %v2289 = vpop.f32.mrb[0].mxu0
    %2290 = vdwg.mxu0
    %2291 = vrot.lane.b32.xlu0 %v1685, 104
    %v2292 = vpop.permute.xlu0 %2291
    %2293 = vrot.lane.b32.xlu0 %v1690, 104
    %v2294 = vpop.permute.xlu0 %2293
    %2295 = vrot.lane.b32.xlu0 %v1685, 72
    %v2296 = vpop.permute.xlu0 %2295
    %2297 = vrot.lane.b32.xlu0 %v1690, 72
    %v2298 = vpop.permute.xlu0 %2297
    %v2299 = vsel %vm244, %v2292, 0
    %v2301 = vsel %vm244, %v2294, 0
    %v2303 = vsel %vm244, %v2296, 0
    %v2305 = vsel %vm244, %v2298, 0
    %2307 = vmatprep.subr.mxu0 0.0
    %2308 = vmatpush1.xpose.msra.mxu0 %v2303
    %2309 = vmatprep.subr.mxu0 0.0
    %2310 = vmatpush1.xpose.msra.mxu0 %v2305
    %2311 = vmatprep.subr.mxu0 0.0
    %2312 = vmatpush1.xpose.msra.mxu0 0.0
    %2313 = vmatprep.subr.mxu0 0.0
    %2314 = vmatpush1.xpose.msra.mxu0 0.0
    %2315 = vmatprep.subr.mxu0 0.0
    %2316 = vmatpush1.xpose.msra.mxu0 0.0
    %2317 = vmatprep.subr.mxu0 0.0
    %2318 = vmatpush1.xpose.msra.mxu0 0.0
    %2319 = vmatprep.subr.mxu0 0.0
    %2320 = vmatpush1.xpose.msra.mxu0 0.0
    %2321 = vmatprep.subr.mxu0 0.0
    %2322 = vmatpush1.xpose.msra.mxu0 0.0
    %2323 = vmatprep.subr.mxu0 0.0
    %2324 = vmatpush1.xpose.msra.mxu0 0.0
    %2325 = vmatprep.subr.mxu0 0.0
    %2326 = vmatpush1.xpose.msra.mxu0 0.0
    %2327 = vmatprep.subr.mxu0 0.0
    %2328 = vmatpush1.xpose.msra.mxu0 0.0
    %2329 = vmatprep.subr.mxu0 0.0
    %2330 = vmatpush1.xpose.msra.mxu0 0.0
    %2331 = vmatprep.subr.mxu0 0.0
    %2332 = vmatpush1.xpose.msra.mxu0 0.0
    %2333 = vmatprep.subr.mxu0 0.0
    %2334 = vmatpush1.xpose.msra.mxu0 0.0
    %2335 = vmatprep.subr.mxu0 0.0
    %2336 = vmatpush1.xpose.msra.mxu0 0.0
    %2337 = vmatprep.subr.mxu0 0.0
    %2338 = vmatpush1.xpose.msra.mxu0 0.0
    %2339 = vmatprep.subr.mxu0 0.0
    %2340 = vmatpush1.xpose.msra.mxu0 0.0
    %2341 = vmatprep.subr.mxu0 0.0
    %2342 = vmatpush1.xpose.msra.mxu0 0.0
    %2343 = vmatprep.subr.mxu0 0.0
    %2344 = vmatpush1.xpose.msra.mxu0 0.0
    %2345 = vmatprep.subr.mxu0 0.0
    %2346 = vmatpush1.xpose.msra.mxu0 0.0
    %2347 = vmatprep.subr.mxu0 0.0
    %2348 = vmatpush1.xpose.msra.mxu0 0.0
    %2349 = vmatprep.subr.mxu0 0.0
    %2350 = vmatpush1.xpose.msra.mxu0 0.0
    %2351 = vmatprep.subr.mxu0 0.0
    %2352 = vmatpush1.xpose.msra.mxu0 0.0
    %2353 = vmatprep.subr.mxu0 0.0
    %2354 = vmatpush1.xpose.msra.mxu0 0.0
    %2355 = vmatprep.subr.mxu0 0.0
    %2356 = vmatpush1.xpose.msra.mxu0 0.0
    %2357 = vmatprep.subr.mxu0 0.0
    %2358 = vmatpush1.xpose.msra.mxu0 0.0
    %2359 = vmatprep.subr.mxu0 0.0
    %2360 = vmatpush1.xpose.msra.mxu0 0.0
    %2361 = vmatprep.subr.mxu0 0.0
    %2362 = vmatpush1.xpose.msra.mxu0 0.0
    %2363 = vmatprep.subr.mxu0 0.0
    %2364 = vmatpush1.xpose.msra.mxu0 0.0
    %2365 = vmatprep.subr.mxu0 0.0
    %2366 = vmatpush1.xpose.msra.mxu0 0.0
    %2367 = vmatprep.subr.mxu0 0.0
    %2368 = vmatpush1.xpose.msra.mxu0 0.0
    %2369 = vmatprep.subr.mxu0 0.0
    %2370 = vmatpush1.xpose.msra.mxu0 0.0
    %2371 = vmatprep.mubr.f32.mxu0 0.0
    %2372 = vmatmul.mubr.f32.gmra.mrb[0].mxu0 %v2299
    %v2373 = vpop.f32.mrb[0].mxu0
    %v2374 = vadd.f32 %v132, %v2373
    %v2375 = vpop.f32.mrb[0].mxu0
    %2376 = vmatprep.mubr.f32.mxu0 0.0
    %2377 = vmatmul.mubr.f32.gmra.mrb[0].mxu0 %v2301
    %v2378 = vpop.f32.mrb[0].mxu0
    %v2379 = vadd.f32 %v133, %v2378
    %v2380 = vpop.f32.mrb[0].mxu0
    %2381 = vdwg.mxu0
    %v2382 = vsel %vm328, %v2374, -inf
    %2383 = vmax.xlane.f32.xlu0 %v2382
    %v2384 = vpop.xlane.xlu0 %2383
    %v2385 = vsel %vm328, %v2379, -inf
    %2386 = vmax.xlane.f32.xlu0 %v2385
    %v2387 = vpop.xlane.xlu0 %2386
    %v2388 = vsub.f32 %v2374, %v2384
    %v2389 = vsub.f32 %v2379, %v2387
    %v2390 = vmul.f32 %v2388, 1.442695
    %v2391 = vpow.pop %v2390
    %v2392 = vmul.f32 %v2389, 1.442695
    %v2393 = vpow.pop %v2392
    %v2394 = vsel %vm328, %v2391, 0.0
    %2395 = vadd.xlane.f32.xlu0 %v2394
    %v2396 = vpop.xlane.xlu0 %2395
    %v2397 = vsel %vm328, %v2393, 0.0
    %2398 = vadd.xlane.f32.xlu0 %v2397
    %v2399 = vpop.xlane.xlu0 %2398
    %v2400 = vrcp.pop %v2396
    %v2401 = vrcp.pop %v2399
    %v2402 = vmul.f32 %v2391, %v2400
    %v2403 = vmul.f32 %v2393, %v2401
    %2404 = vrot.lane.b32.xlu0 %v1685, 40
    %v2405 = vpop.permute.xlu0 %2404
    %2406 = vrot.lane.b32.xlu0 %v1690, 40
    %v2407 = vpop.permute.xlu0 %2406
    %v2411 = vsel %vm328, %v2402, 0
    %v2414 = vsel %vm328, %v2403, 0
    %2416 = vmatprep.subr.mxu0 0.0
    %2417 = vmatpush1.msra.mxu0 %v2405
    %2418 = vmatprep.subr.mxu0 0.0
    %2419 = vmatpush1.msra.mxu0 %v2407
    %2420 = vmatprep.subr.mxu0 0.0
    %2421 = vmatpush1.msra.mxu0 0.0
    %2422 = vmatprep.subr.mxu0 0.0
    %2423 = vmatpush1.msra.mxu0 0.0
    %2424 = vmatprep.subr.mxu0 0.0
    %2425 = vmatpush1.msra.mxu0 0.0
    %2426 = vmatprep.subr.mxu0 0.0
    %2427 = vmatpush1.msra.mxu0 0.0
    %2428 = vmatprep.subr.mxu0 0.0
    %2429 = vmatpush1.msra.mxu0 0.0
    %2430 = vmatprep.subr.mxu0 0.0
    %2431 = vmatpush1.msra.mxu0 0.0
    %2432 = vmatprep.subr.mxu0 0.0
    %2433 = vmatpush1.msra.mxu0 0.0
    %2434 = vmatprep.subr.mxu0 0.0
    %2435 = vmatpush1.msra.mxu0 0.0
    %2436 = vmatprep.subr.mxu0 0.0
    %2437 = vmatpush1.msra.mxu0 0.0
    %2438 = vmatprep.subr.mxu0 0.0
    %2439 = vmatpush1.msra.mxu0 0.0
    %2440 = vmatprep.subr.mxu0 0.0
    %2441 = vmatpush1.msra.mxu0 0.0
    %2442 = vmatprep.subr.mxu0 0.0
    %2443 = vmatpush1.msra.mxu0 0.0
    %2444 = vmatprep.subr.mxu0 0.0
    %2445 = vmatpush1.msra.mxu0 0.0
    %2446 = vmatprep.subr.mxu0 0.0
    %2447 = vmatpush1.msra.mxu0 0.0
    %2448 = vmatprep.subr.mxu0 0.0
    %2449 = vmatpush1.msra.mxu0 0.0
    %2450 = vmatprep.subr.mxu0 0.0
    %2451 = vmatpush1.msra.mxu0 0.0
    %2452 = vmatprep.subr.mxu0 0.0
    %2453 = vmatpush1.msra.mxu0 0.0
    %2454 = vmatprep.subr.mxu0 0.0
    %2455 = vmatpush1.msra.mxu0 0.0
    %2456 = vmatprep.subr.mxu0 0.0
    %2457 = vmatpush1.msra.mxu0 0.0
    %2458 = vmatprep.subr.mxu0 0.0
    %2459 = vmatpush1.msra.mxu0 0.0
    %2460 = vmatprep.subr.mxu0 0.0
    %2461 = vmatpush1.msra.mxu0 0.0
    %2462 = vmatprep.subr.mxu0 0.0
    %2463 = vmatpush1.msra.mxu0 0.0
    %2464 = vmatprep.subr.mxu0 0.0
    %2465 = vmatpush1.msra.mxu0 0.0
    %2466 = vmatprep.subr.mxu0 0.0
    %2467 = vmatpush1.msra.mxu0 0.0
    %2468 = vmatprep.subr.mxu0 0.0
    %2469 = vmatpush1.msra.mxu0 0.0
    %2470 = vmatprep.subr.mxu0 0.0
    %2471 = vmatpush1.msra.mxu0 0.0
    %2472 = vmatprep.subr.mxu0 0.0
    %2473 = vmatpush1.msra.mxu0 0.0
    %2474 = vmatprep.subr.mxu0 0.0
    %2475 = vmatpush1.msra.mxu0 0.0
    %2476 = vmatprep.subr.mxu0 0.0
    %2477 = vmatpush1.msra.mxu0 0.0
    %2478 = vmatprep.subr.mxu0 0.0
    %2479 = vmatpush1.msra.mxu0 0.0
    %2480 = vmatprep.mubr.f32.mxu0 0.0
    %2481 = vmatmul.mubr.f32.gmra.mrb[0].mxu0 %v2411
    %v2482 = vpop.f32.mrb[0].mxu0
    %v2483 = vadd.f32 0.0, %v2482
    %v2484 = vpop.f32.mrb[0].mxu0
    %2485 = vmatprep.mubr.f32.mxu0 0.0
    %2486 = vmatmul.mubr.f32.gmra.mrb[0].mxu0 %v2414
    %v2487 = vpop.f32.mrb[0].mxu0
    %v2488 = vadd.f32 0.0, %v2487
    %v2489 = vpop.f32.mrb[0].mxu0
    %2490 = vdwg.mxu0
    %2493 = vrot.lane.b32.xlu0 %v2083, 8
    %v2494 = vpop.permute.xlu0 %2493
    %2495 = vrot.lane.b32.xlu0 %v2088, 8
    %v2496 = vpop.permute.xlu0 %2495
    %2501 = vrot.lane.b32.xlu0 %v2283, 16
    %v2502 = vpop.permute.xlu0 %2501
    %2503 = vrot.lane.b32.xlu0 %v2288, 16
    %v2504 = vpop.permute.xlu0 %2503
    %2509 = vrot.lane.b32.xlu0 %v2483, 24
    %v2510 = vpop.permute.xlu0 %2509
    %2511 = vrot.lane.b32.xlu0 %v2488, 24
    %v2512 = vpop.permute.xlu0 %2511
    %v2515 = vsel %vm244, %v1883, %v2494
    %v2516 = vsel %vm244, %v1888, %v2496
    %v2517 = vsel %vm328, %v2515, %v2502
    %v2518 = vsel %vm328, %v2516, %v2504
    %v2519 = vsel %vm1066, %v2517, %v2510
    %v2520 = vsel %vm1066, %v2518, %v2512
    %v2521 = vlaneseq
    %v2522 = vshrl.u32 %v2521, 7
    %v2523 = vsub.s32 0, %v2522
    %v2524 = vrot.slane %v1610, %v2523
    %v2526 = vsel %vm156, %v2519, 0
    %v2529 = vsel %vm156, %v2520, 0
    %2531 = vmatprep.subr.mxu0 0.0
    %2532 = vmatpush1.msra.mxu0 %v1594
    %2533 = vmatprep.subr.mxu0 0.0
    %2534 = vmatpush1.msra.mxu0 %v1595
    %2535 = vmatprep.subr.mxu0 0.0
    %2536 = vmatpush1.msra.mxu0 %v1596
    %2537 = vmatprep.subr.mxu0 0.0
    %2538 = vmatpush1.msra.mxu0 %v1597
    %2539 = vmatprep.subr.mxu0 0.0
    %2540 = vmatpush1.msra.mxu0 0.0
    %2541 = vmatprep.subr.mxu0 0.0
    %2542 = vmatpush1.msra.mxu0 0.0
    %2543 = vmatprep.subr.mxu0 0.0
    %2544 = vmatpush1.msra.mxu0 0.0
    %2545 = vmatprep.subr.mxu0 0.0
    %2546 = vmatpush1.msra.mxu0 0.0
    %2547 = vmatprep.subr.mxu0 0.0
    %2548 = vmatpush1.msra.mxu0 0.0
    %2549 = vmatprep.subr.mxu0 0.0
    %2550 = vmatpush1.msra.mxu0 0.0
    %2551 = vmatprep.subr.mxu0 0.0
    %2552 = vmatpush1.msra.mxu0 0.0
    %2553 = vmatprep.subr.mxu0 0.0
    %2554 = vmatpush1.msra.mxu0 0.0
    %2555 = vmatprep.subr.mxu0 0.0
    %2556 = vmatpush1.msra.mxu0 0.0
    %2557 = vmatprep.subr.mxu0 0.0
    %2558 = vmatpush1.msra.mxu0 0.0
    %2559 = vmatprep.subr.mxu0 0.0
    %2560 = vmatpush1.msra.mxu0 0.0
    %2561 = vmatprep.subr.mxu0 0.0
    %2562 = vmatpush1.msra.mxu0 0.0
    %2563 = vmatprep.subr.mxu0 0.0
    %2564 = vmatpush1.msra.mxu0 0.0
    %2565 = vmatprep.subr.mxu0 0.0
    %2566 = vmatpush1.msra.mxu0 0.0
    %2567 = vmatprep.subr.mxu0 0.0
    %2568 = vmatpush1.msra.mxu0 0.0
    %2569 = vmatprep.subr.mxu0 0.0
    %2570 = vmatpush1.msra.mxu0 0.0
    %2571 = vmatprep.subr.mxu0 0.0
    %2572 = vmatpush1.msra.mxu0 0.0
    %2573 = vmatprep.subr.mxu0 0.0
    %2574 = vmatpush1.msra.mxu0 0.0
    %2575 = vmatprep.subr.mxu0 0.0
    %2576 = vmatpush1.msra.mxu0 0.0
    %2577 = vmatprep.subr.mxu0 0.0
    %2578 = vmatpush1.msra.mxu0 0.0
    %2579 = vmatprep.subr.mxu0 0.0
    %2580 = vmatpush1.msra.mxu0 0.0
    %2581 = vmatprep.subr.mxu0 0.0
    %2582 = vmatpush1.msra.mxu0 0.0
    %2583 = vmatprep.subr.mxu0 0.0
    %2584 = vmatpush1.msra.mxu0 0.0
    %2585 = vmatprep.subr.mxu0 0.0
    %2586 = vmatpush1.msra.mxu0 0.0
    %2587 = vmatprep.subr.mxu0 0.0
    %2588 = vmatpush1.msra.mxu0 0.0
    %2589 = vmatprep.subr.mxu0 0.0
    %2590 = vmatpush1.msra.mxu0 0.0
    %2591 = vmatprep.subr.mxu0 0.0
    %2592 = vmatpush1.msra.mxu0 0.0
    %2593 = vmatprep.subr.mxu0 0.0
    %2594 = vmatpush1.msra.mxu0 0.0
    %2595 = vmatprep.mubr.f32.mxu0 0.0
    %2596 = vmatmul.mubr.f32.gmra.mrb[0].mxu0 %v2526
    %v2597 = vpop.f32.mrb[0].mxu0
    %v2598 = vadd.f32 %v2524, %v2597
    %v2599 = vpop.f32.mrb[0].mxu0
    %2600 = vmatprep.mubr.f32.mxu0 0.0
    %2601 = vmatmul.mubr.f32.gmra.mrb[0].mxu0 %v2529
    %v2602 = vpop.f32.mrb[0].mxu0
    %v2603 = vadd.f32 %v2524, %v2602
    %v2604 = vpop.f32.mrb[0].mxu0
    %2605 = vdwg.mxu0
    %v2606 = vadd.f32 %v2598, %v1588
    %v2607 = vadd.f32 %v2603, %v1589
    %v2608 = vsel %vm156, %v2606, 0.0
    %2609 = vadd.xlane.f32.xlu0 %v2608
    %v2610 = vpop.xlane.xlu0 %2609
    %v2611 = vsel %vm156, %v2607, 0.0
    %2612 = vadd.xlane.f32.xlu0 %v2611
    %v2613 = vpop.xlane.xlu0 %2612
    %v2614 = vmul.f32 %v2610, %v1162
    %v2615 = vmul.f32 %v2613, %v1162
    %v2616 = vsub.f32 %v2606, %v2614
    %v2617 = vsub.f32 %v2607, %v2615
    %v2618 = vmul.f32 %v2616, %v2616
    %v2619 = vmul.f32 %v2617, %v2617
    %v2620 = vsel %vm156, %v2618, 0.0
    %2621 = vadd.xlane.f32.xlu0 %v2620
    %v2622 = vpop.xlane.xlu0 %2621
    %v2623 = vsel %vm156, %v2619, 0.0
    %2624 = vadd.xlane.f32.xlu0 %v2623
    %v2625 = vpop.xlane.xlu0 %2624
    %v2626 = vmul.f32 %v2622, %v1162
    %v2627 = vmul.f32 %v2625, %v1162
    %v2628 = vadd.f32 %v2626, 1e-05
    %v2629 = vadd.f32 %v2627, 1e-05
    %v2630 = vrsqrt.pop %v2628
    %v2631 = vrsqrt.pop %v2629
    %v2632 = vmul.f32 %v2616, %v2630
    %v2633 = vmul.f32 %v2617, %v2631
    %v2634 = vlaneseq
    %v2635 = vshrl.u32 %v2634, 7
    %v2636 = vsub.s32 1, %v2635
    %v2637 = vrot.slane %v1610, %v2636
    %v2638 = vmul.f32 %v2632, %v2637
    %v2639 = vmul.f32 %v2633, %v2637
    %v2640 = vlaneseq
    %v2641 = vshrl.u32 %v2640, 7
    %v2642 = vsub.s32 2, %v2641
    %v2643 = vrot.slane %v1610, %v2642
    %v2644 = vadd.f32 %v2638, %v2643
    %v2645 = vadd.f32 %v2639, %v2643
    %v2646 = vmul.f32 %v2644, 0.5
    %v2647 = vmul.f32 %v2645, 0.5
    %v2648 = vmul.f32 %v2644, 0.70710677
    %v2649 = vmul.f32 %v2645, 0.70710677
    %vm2650 = vcmp.ge.f32.partialorder %v2648, 0.0
    %vm2651 = vcmp.ge.f32.partialorder %v2649, 0.0
    %v2652 = vsel %vm2650, 1.0, -1.0
    %v2653 = vsel %vm2651, 1.0, -1.0
    %v2654 = vand.u32 2147483647, %v2648
    %v2655 = vand.u32 2147483647, %v2649
    %v2656 = vmul.f32 %v2654, 0.3275911
    %v2657 = vmul.f32 %v2655, 0.3275911
    %v2658 = vadd.f32 %v2656, 1.0
    %v2659 = vadd.f32 %v2657, 1.0
    %v2660 = vrcp.pop %v2658
    %v2661 = vmul.f32 1.0, %v2660
    %v2662 = vrcp.pop %v2659
    %v2663 = vmul.f32 1.0, %v2662
    %v2664 = vmul.f32 %v2661, 1.0614054
    %v2665 = vmul.f32 %v2663, 1.0614054
    %v2666 = vadd.f32 %v2664, -1.4531521
    %v2667 = vadd.f32 %v2665, -1.4531521
    %v2668 = vmul.f32 %v2666, %v2661
    %v2669 = vmul.f32 %v2667, %v2663
    %v2670 = vadd.f32 %v2668, 1.4214138
    %v2671 = vadd.f32 %v2669, 1.4214138
    %v2672 = vmul.f32 %v2670, %v2661
    %v2673 = vmul.f32 %v2671, %v2663
    %v2674 = vadd.f32 %v2672, -0.28449672
    %v2675 = vadd.f32 %v2673, -0.28449672
    %v2676 = vmul.f32 %v2674, %v2661
    %v2677 = vmul.f32 %v2675, %v2663
    %v2678 = vadd.f32 %v2676, 0.2548296
    %v2679 = vadd.f32 %v2677, 0.2548296
    %v2680 = vmul.f32 %v2678, %v2661
    %v2681 = vmul.f32 %v2679, %v2663
    %v2682 = vsub.f32 0.0, %v2654
    %v2683 = vsub.f32 0.0, %v2655
    %v2684 = vmul.f32 %v2682, %v2654
    %v2685 = vmul.f32 %v2683, %v2655
    %v2686 = vmul.f32 %v2684, 1.442695
    %v2687 = vpow.pop %v2686
    %v2688 = vmul.f32 %v2685, 1.442695
    %v2689 = vpow.pop %v2688
    %v2690 = vmul.f32 %v2680, %v2687
    %v2691 = vmul.f32 %v2681, %v2689
    %v2692 = vsub.f32 1.0, %v2690
    %v2693 = vsub.f32 1.0, %v2691
    %v2694 = vmul.f32 %v2652, %v2692
    %v2695 = vmul.f32 %v2653, %v2693
    %v2696 = vadd.f32 %v2694, 1.0
    %v2697 = vadd.f32 %v2695, 1.0
    %v2698 = vmul.f32 %v2646, %v2696
    %v2699 = vmul.f32 %v2647, %v2697
    %v2700 = vsel %vm156, %v2698, 0.0
    %2701 = vadd.xlane.f32.xlu0 %v2700
    %v2702 = vpop.xlane.xlu0 %2701
    %v2703 = vsel %vm156, %v2699, 0.0
    %2704 = vadd.xlane.f32.xlu0 %v2703
    %v2705 = vpop.xlane.xlu0 %2704
    %v2706 = vmul.f32 %v2702, %v1162
    %v2707 = vmul.f32 %v2705, %v1162
    %v2708 = vsub.f32 %v2698, %v2706
    %v2709 = vsub.f32 %v2699, %v2707
    %v2710 = vmul.f32 %v2708, %v2708
    %v2711 = vmul.f32 %v2709, %v2709
    %v2712 = vsel %vm156, %v2710, 0.0
    %2713 = vadd.xlane.f32.xlu0 %v2712
    %v2714 = vpop.xlane.xlu0 %2713
    %v2715 = vsel %vm156, %v2711, 0.0
    %2716 = vadd.xlane.f32.xlu0 %v2715
    %v2717 = vpop.xlane.xlu0 %2716
    %v2718 = vmul.f32 %v2714, %v1162
    %v2719 = vmul.f32 %v2717, %v1162
    %v2720 = vadd.f32 %v2718, 1e-05
    %v2721 = vadd.f32 %v2719, 1e-05
    %v2722 = vrsqrt.pop %v2720
    %v2723 = vrsqrt.pop %v2721
    %v2724 = vmul.f32 %v2708, %v2722
    %v2725 = vmul.f32 %v2709, %v2723
    %v2726 = vlaneseq
    %v2727 = vshrl.u32 %v2726, 7
    %v2728 = vsub.s32 3, %v2727
    %v2729 = vrot.slane %v1610, %v2728
    %v2730 = vmul.f32 %v2724, %v2729
    %v2731 = vmul.f32 %v2725, %v2729
    %v2732 = vlaneseq
    %v2733 = vshrl.u32 %v2732, 7
    %v2734 = vsub.s32 4, %v2733
    %v2735 = vrot.slane %v1610, %v2734
    %v2736 = vadd.f32 %v2730, %v2735
    %v2737 = vadd.f32 %v2731, %v2735
    %v2738 = vlaneseq
    %v2739 = vshrl.u32 %v2738, 7
    %v2740 = vsub.s32 5, %v2739
    %v2741 = vrot.slane %v1610, %v2740
    %v2743 = vsel %vm156, %v2736, 0
    %v2746 = vsel %vm156, %v2737, 0
    %2748 = vmatprep.subr.mxu0 0.0
    %2749 = vmatpush1.msra.mxu0 %v1598
    %2750 = vmatprep.subr.mxu0 0.0
    %2751 = vmatpush1.msra.mxu0 %v1599
    %2752 = vmatprep.subr.mxu0 0.0
    %2753 = vmatpush1.msra.mxu0 %v1600
    %2754 = vmatprep.subr.mxu0 0.0
    %2755 = vmatpush1.msra.mxu0 %v1601
    %2756 = vmatprep.subr.mxu0 0.0
    %2757 = vmatpush1.msra.mxu0 0.0
    %2758 = vmatprep.subr.mxu0 0.0
    %2759 = vmatpush1.msra.mxu0 0.0
    %2760 = vmatprep.subr.mxu0 0.0
    %2761 = vmatpush1.msra.mxu0 0.0
    %2762 = vmatprep.subr.mxu0 0.0
    %2763 = vmatpush1.msra.mxu0 0.0
    %2764 = vmatprep.subr.mxu0 0.0
    %2765 = vmatpush1.msra.mxu0 0.0
    %2766 = vmatprep.subr.mxu0 0.0
    %2767 = vmatpush1.msra.mxu0 0.0
    %2768 = vmatprep.subr.mxu0 0.0
    %2769 = vmatpush1.msra.mxu0 0.0
    %2770 = vmatprep.subr.mxu0 0.0
    %2771 = vmatpush1.msra.mxu0 0.0
    %2772 = vmatprep.subr.mxu0 0.0
    %2773 = vmatpush1.msra.mxu0 0.0
    %2774 = vmatprep.subr.mxu0 0.0
    %2775 = vmatpush1.msra.mxu0 0.0
    %2776 = vmatprep.subr.mxu0 0.0
    %2777 = vmatpush1.msra.mxu0 0.0
    %2778 = vmatprep.subr.mxu0 0.0
    %2779 = vmatpush1.msra.mxu0 0.0
    %2780 = vmatprep.subr.mxu0 0.0
    %2781 = vmatpush1.msra.mxu0 0.0
    %2782 = vmatprep.subr.mxu0 0.0
    %2783 = vmatpush1.msra.mxu0 0.0
    %2784 = vmatprep.subr.mxu0 0.0
    %2785 = vmatpush1.msra.mxu0 0.0
    %2786 = vmatprep.subr.mxu0 0.0
    %2787 = vmatpush1.msra.mxu0 0.0
    %2788 = vmatprep.subr.mxu0 0.0
    %2789 = vmatpush1.msra.mxu0 0.0
    %2790 = vmatprep.subr.mxu0 0.0
    %2791 = vmatpush1.msra.mxu0 0.0
    %2792 = vmatprep.subr.mxu0 0.0
    %2793 = vmatpush1.msra.mxu0 0.0
    %2794 = vmatprep.subr.mxu0 0.0
    %2795 = vmatpush1.msra.mxu0 0.0
    %2796 = vmatprep.subr.mxu0 0.0
    %2797 = vmatpush1.msra.mxu0 0.0
    %2798 = vmatprep.subr.mxu0 0.0
    %2799 = vmatpush1.msra.mxu0 0.0
    %2800 = vmatprep.subr.mxu0 0.0
    %2801 = vmatpush1.msra.mxu0 0.0
    %2802 = vmatprep.subr.mxu0 0.0
    %2803 = vmatpush1.msra.mxu0 0.0
    %2804 = vmatprep.subr.mxu0 0.0
    %2805 = vmatpush1.msra.mxu0 0.0
    %2806 = vmatprep.subr.mxu0 0.0
    %2807 = vmatpush1.msra.mxu0 0.0
    %2808 = vmatprep.subr.mxu0 0.0
    %2809 = vmatpush1.msra.mxu0 0.0
    %2810 = vmatprep.subr.mxu0 0.0
    %2811 = vmatpush1.msra.mxu0 0.0
    %2812 = vmatprep.mubr.f32.mxu0 0.0
    %2813 = vmatmul.mubr.f32.gmra.mrb[0].mxu0 %v2743
    %v2814 = vpop.f32.mrb[0].mxu0
    %v2815 = vadd.f32 %v2741, %v2814
    %v2816 = vpop.f32.mrb[0].mxu0
    %2817 = vmatprep.mubr.f32.mxu0 0.0
    %2818 = vmatmul.mubr.f32.gmra.mrb[0].mxu0 %v2746
    %v2819 = vpop.f32.mrb[0].mxu0
    %v2820 = vadd.f32 %v2741, %v2819
    %v2821 = vpop.f32.mrb[0].mxu0
    %2822 = vdwg.mxu0
    %v2823 = vmul.f32 %v2815, 0.5
    %v2824 = vmul.f32 %v2820, 0.5
    %v2825 = vmul.f32 %v2815, 0.70710677
    %v2826 = vmul.f32 %v2820, 0.70710677
    %vm2827 = vcmp.ge.f32.partialorder %v2825, 0.0
    %vm2828 = vcmp.ge.f32.partialorder %v2826, 0.0
    %v2829 = vsel %vm2827, 1.0, -1.0
    %v2830 = vsel %vm2828, 1.0, -1.0
    %v2831 = vand.u32 2147483647, %v2825
    %v2832 = vand.u32 2147483647, %v2826
    %v2833 = vmul.f32 %v2831, 0.3275911
    %v2834 = vmul.f32 %v2832, 0.3275911
    %v2835 = vadd.f32 %v2833, 1.0
    %v2836 = vadd.f32 %v2834, 1.0
    %v2837 = vrcp.pop %v2835
    %v2838 = vmul.f32 1.0, %v2837
    %v2839 = vrcp.pop %v2836
    %v2840 = vmul.f32 1.0, %v2839
    %v2841 = vmul.f32 %v2838, 1.0614054
    %v2842 = vmul.f32 %v2840, 1.0614054
    %v2843 = vadd.f32 %v2841, -1.4531521
    %v2844 = vadd.f32 %v2842, -1.4531521
    %v2845 = vmul.f32 %v2843, %v2838
    %v2846 = vmul.f32 %v2844, %v2840
    %v2847 = vadd.f32 %v2845, 1.4214138
    %v2848 = vadd.f32 %v2846, 1.4214138
    %v2849 = vmul.f32 %v2847, %v2838
    %v2850 = vmul.f32 %v2848, %v2840
    %v2851 = vadd.f32 %v2849, -0.28449672
    %v2852 = vadd.f32 %v2850, -0.28449672
    %v2853 = vmul.f32 %v2851, %v2838
    %v2854 = vmul.f32 %v2852, %v2840
    %v2855 = vadd.f32 %v2853, 0.2548296
    %v2856 = vadd.f32 %v2854, 0.2548296
    %v2857 = vmul.f32 %v2855, %v2838
    %v2858 = vmul.f32 %v2856, %v2840
    %v2859 = vsub.f32 0.0, %v2831
    %v2860 = vsub.f32 0.0, %v2832
    %v2861 = vmul.f32 %v2859, %v2831
    %v2862 = vmul.f32 %v2860, %v2832
    %v2863 = vmul.f32 %v2861, 1.442695
    %v2864 = vpow.pop %v2863
    %v2865 = vmul.f32 %v2862, 1.442695
    %v2866 = vpow.pop %v2865
    %v2867 = vmul.f32 %v2857, %v2864
    %v2868 = vmul.f32 %v2858, %v2866
    %v2869 = vsub.f32 1.0, %v2867
    %v2870 = vsub.f32 1.0, %v2868
    %v2871 = vmul.f32 %v2829, %v2869
    %v2872 = vmul.f32 %v2830, %v2870
    %v2873 = vadd.f32 %v2871, 1.0
    %v2874 = vadd.f32 %v2872, 1.0
    %v2875 = vmul.f32 %v2823, %v2873
    %v2876 = vmul.f32 %v2824, %v2874
    %v2877 = vsel %vm50, %v2875, 0.0
    %2878 = vadd.xlane.f32.xlu0 %v2877
    %v2879 = vpop.xlane.xlu0 %2878
    %v2880 = vsel %vm50, %v2876, 0.0
    %2881 = vadd.xlane.f32.xlu0 %v2880
    %v2882 = vpop.xlane.xlu0 %2881
    %v2883 = vmul.f32 %v2879, %v1432
    %v2884 = vmul.f32 %v2882, %v1432
    %v2885 = vsub.f32 %v2875, %v2883
    %v2886 = vsub.f32 %v2876, %v2884
    %v2887 = vmul.f32 %v2885, %v2885
    %v2888 = vmul.f32 %v2886, %v2886
    %v2889 = vsel %vm50, %v2887, 0.0
    %2890 = vadd.xlane.f32.xlu0 %v2889
    %v2891 = vpop.xlane.xlu0 %2890
    %v2892 = vsel %vm50, %v2888, 0.0
    %2893 = vadd.xlane.f32.xlu0 %v2892
    %v2894 = vpop.xlane.xlu0 %2893
    %v2895 = vmul.f32 %v2891, %v1432
    %v2896 = vmul.f32 %v2894, %v1432
    %v2897 = vadd.f32 %v2895, 1e-05
    %v2898 = vadd.f32 %v2896, 1e-05
    %v2899 = vrsqrt.pop %v2897
    %v2900 = vrsqrt.pop %v2898
    %v2901 = vmul.f32 %v2885, %v2899
    %v2902 = vmul.f32 %v2886, %v2900
    %v2903 = vlaneseq
    %v2904 = vshrl.u32 %v2903, 7
    %v2905 = vsub.s32 6, %v2904
    %v2906 = vrot.slane %v1610, %v2905
    %v2907 = vmul.f32 %v2901, %v2906
    %v2908 = vmul.f32 %v2902, %v2906
    %v2909 = vlaneseq
    %v2910 = vshrl.u32 %v2909, 7
    %v2911 = vsub.s32 7, %v2910
    %v2912 = vrot.slane %v1610, %v2911
    %v2913 = vadd.f32 %v2907, %v2912
    %v2914 = vadd.f32 %v2908, %v2912
    %v2915 = vlaneseq
    %v2916 = vshrl.u32 %v2915, 7
    %v2917 = vsub.s32 0, %v2916
    %v2918 = vrot.slane %v1611, %v2917
    %v2920 = vsel %vm50, %v2913, 0
    %v2923 = vsel %vm50, %v2914, 0
    %2925 = vmatprep.subr.mxu0 0.0
    %2926 = vmatpush1.msra.mxu0 %v1602
    %2927 = vmatprep.subr.mxu0 0.0
    %2928 = vmatpush1.msra.mxu0 %v1603
    %2929 = vmatprep.subr.mxu0 0.0
    %2930 = vmatpush1.msra.mxu0 %v1604
    %2931 = vmatprep.subr.mxu0 0.0
    %2932 = vmatpush1.msra.mxu0 %v1605
    %2933 = vmatprep.subr.mxu0 0.0
    %2934 = vmatpush1.msra.mxu0 %v1606
    %2935 = vmatprep.subr.mxu0 0.0
    %2936 = vmatpush1.msra.mxu0 %v1607
    %2937 = vmatprep.subr.mxu0 0.0
    %2938 = vmatpush1.msra.mxu0 %v1608
    %2939 = vmatprep.subr.mxu0 0.0
    %2940 = vmatpush1.msra.mxu0 %v1609
    %2941 = vmatprep.subr.mxu0 0.0
    %2942 = vmatpush1.msra.mxu0 0.0
    %2943 = vmatprep.subr.mxu0 0.0
    %2944 = vmatpush1.msra.mxu0 0.0
    %2945 = vmatprep.subr.mxu0 0.0
    %2946 = vmatpush1.msra.mxu0 0.0
    %2947 = vmatprep.subr.mxu0 0.0
    %2948 = vmatpush1.msra.mxu0 0.0
    %2949 = vmatprep.subr.mxu0 0.0
    %2950 = vmatpush1.msra.mxu0 0.0
    %2951 = vmatprep.subr.mxu0 0.0
    %2952 = vmatpush1.msra.mxu0 0.0
    %2953 = vmatprep.subr.mxu0 0.0
    %2954 = vmatpush1.msra.mxu0 0.0
    %2955 = vmatprep.subr.mxu0 0.0
    %2956 = vmatpush1.msra.mxu0 0.0
    %2957 = vmatprep.subr.mxu0 0.0
    %2958 = vmatpush1.msra.mxu0 0.0
    %2959 = vmatprep.subr.mxu0 0.0
    %2960 = vmatpush1.msra.mxu0 0.0
    %2961 = vmatprep.subr.mxu0 0.0
    %2962 = vmatpush1.msra.mxu0 0.0
    %2963 = vmatprep.subr.mxu0 0.0
    %2964 = vmatpush1.msra.mxu0 0.0
    %2965 = vmatprep.subr.mxu0 0.0
    %2966 = vmatpush1.msra.mxu0 0.0
    %2967 = vmatprep.subr.mxu0 0.0
    %2968 = vmatpush1.msra.mxu0 0.0
    %2969 = vmatprep.subr.mxu0 0.0
    %2970 = vmatpush1.msra.mxu0 0.0
    %2971 = vmatprep.subr.mxu0 0.0
    %2972 = vmatpush1.msra.mxu0 0.0
    %2973 = vmatprep.subr.mxu0 0.0
    %2974 = vmatpush1.msra.mxu0 0.0
    %2975 = vmatprep.subr.mxu0 0.0
    %2976 = vmatpush1.msra.mxu0 0.0
    %2977 = vmatprep.subr.mxu0 0.0
    %2978 = vmatpush1.msra.mxu0 0.0
    %2979 = vmatprep.subr.mxu0 0.0
    %2980 = vmatpush1.msra.mxu0 0.0
    %2981 = vmatprep.subr.mxu0 0.0
    %2982 = vmatpush1.msra.mxu0 0.0
    %2983 = vmatprep.subr.mxu0 0.0
    %2984 = vmatpush1.msra.mxu0 0.0
    %2985 = vmatprep.subr.mxu0 0.0
    %2986 = vmatpush1.msra.mxu0 0.0
    %2987 = vmatprep.subr.mxu0 0.0
    %2988 = vmatpush1.msra.mxu0 0.0
    %2989 = vmatprep.mubr.f32.mxu0 0.0
    %2990 = vmatmul.mubr.f32.gmra.mrb[0].mxu0 %v2920
    %v2991 = vpop.f32.mrb[0].mxu0
    %v2992 = vadd.f32 %v2918, %v2991
    %v2993 = vpop.f32.mrb[0].mxu0
    %2994 = vmatprep.mubr.f32.mxu0 0.0
    %2995 = vmatmul.mubr.f32.gmra.mrb[0].mxu0 %v2923
    %v2996 = vpop.f32.mrb[0].mxu0
    %v2997 = vadd.f32 %v2918, %v2996
    %v2998 = vpop.f32.mrb[0].mxu0
    %2999 = vdwg.mxu0
    %v3000 = vadd.f32 %v2992, %v1588
    %v3001 = vadd.f32 %v2997, %v1589
    %v3002 = vsel %vm156, %v3000, 0.0
    %3003 = vadd.xlane.f32.xlu0 %v3002
    %v3004 = vpop.xlane.xlu0 %3003
    %v3005 = vsel %vm156, %v3001, 0.0
    %3006 = vadd.xlane.f32.xlu0 %v3005
    %v3007 = vpop.xlane.xlu0 %3006
    %v3008 = vmul.f32 %v3004, %v1162
    %v3009 = vmul.f32 %v3007, %v1162
    %v3010 = vsub.f32 %v3000, %v3008
    %v3011 = vsub.f32 %v3001, %v3009
    %v3012 = vmul.f32 %v3010, %v3010
    %v3013 = vmul.f32 %v3011, %v3011
    %v3014 = vsel %vm156, %v3012, 0.0
    %3015 = vadd.xlane.f32.xlu0 %v3014
    %v3016 = vpop.xlane.xlu0 %3015
    %v3017 = vsel %vm156, %v3013, 0.0
    %3018 = vadd.xlane.f32.xlu0 %v3017
    %v3019 = vpop.xlane.xlu0 %3018
    %v3020 = vmul.f32 %v3016, %v1162
    %v3021 = vmul.f32 %v3019, %v1162
    %v3022 = vadd.f32 %v3020, 1e-05
    %v3023 = vadd.f32 %v3021, 1e-05
    %v3024 = vrsqrt.pop %v3022
    %v3025 = vrsqrt.pop %v3023
    %v3026 = vmul.f32 %v3010, %v3024
    %v3027 = vmul.f32 %v3011, %v3025
    %v3028 = vlaneseq
    %v3029 = vshrl.u32 %v3028, 7
    %v3030 = vsub.s32 1, %v3029
    %v3031 = vrot.slane %v1611, %v3030
    %v3032 = vmul.f32 %v3026, %v3031
    %v3033 = vmul.f32 %v3027, %v3031
    %v3034 = vlaneseq
    %v3035 = vshrl.u32 %v3034, 7
    %v3036 = vsub.s32 2, %v3035
    %v3037 = vrot.slane %v1611, %v3036
    %v3038 = vadd.f32 %v3032, %v3037
    %v3039 = vadd.f32 %v3033, %v3037
    %v3040 = vld [vmem:[#allocation2 + $0x68] sm:$0xff]
    %v3041 = vld [vmem:[#allocation2 + $0x70] sm:$0xff]
    %v3042 = vld [vmem:[#allocation2 + $0x78] sm:$0xff]
    %v3043 = vld [vmem:[#allocation2 + $0x80] sm:$0xff]
    %v3044 = vld [vmem:[#allocation2 + $0x88] sm:$0x1]
    %v3045 = vlaneseq
    %v3046 = vshrl.u32 %v3045, 7
    %v3047 = vsub.s32 0, %v3046
    %v3048 = vrot.slane %v3044, %v3047
    %v3050 = vsel %vm156, %v3038, 0
    %v3053 = vsel %vm156, %v3039, 0
    %3055 = vmatprep.subr.mxu0 0.0
    %3056 = vmatpush1.msra.mxu0 %v3040
    %3057 = vmatprep.subr.mxu0 0.0
    %3058 = vmatpush1.msra.mxu0 %v3041
    %3059 = vmatprep.subr.mxu0 0.0
    %3060 = vmatpush1.msra.mxu0 %v3042
    %3061 = vmatprep.subr.mxu0 0.0
    %3062 = vmatpush1.msra.mxu0 %v3043
    %3063 = vmatprep.subr.mxu0 0.0
    %3064 = vmatpush1.msra.mxu0 0.0
    %3065 = vmatprep.subr.mxu0 0.0
    %3066 = vmatpush1.msra.mxu0 0.0
    %3067 = vmatprep.subr.mxu0 0.0
    %3068 = vmatpush1.msra.mxu0 0.0
    %3069 = vmatprep.subr.mxu0 0.0
    %3070 = vmatpush1.msra.mxu0 0.0
    %3071 = vmatprep.subr.mxu0 0.0
    %3072 = vmatpush1.msra.mxu0 0.0
    %3073 = vmatprep.subr.mxu0 0.0
    %3074 = vmatpush1.msra.mxu0 0.0
    %3075 = vmatprep.subr.mxu0 0.0
    %3076 = vmatpush1.msra.mxu0 0.0
    %3077 = vmatprep.subr.mxu0 0.0
    %3078 = vmatpush1.msra.mxu0 0.0
    %3079 = vmatprep.subr.mxu0 0.0
    %3080 = vmatpush1.msra.mxu0 0.0
    %3081 = vmatprep.subr.mxu0 0.0
    %3082 = vmatpush1.msra.mxu0 0.0
    %3083 = vmatprep.subr.mxu0 0.0
    %3084 = vmatpush1.msra.mxu0 0.0
    %3085 = vmatprep.subr.mxu0 0.0
    %3086 = vmatpush1.msra.mxu0 0.0
    %3087 = vmatprep.subr.mxu0 0.0
    %3088 = vmatpush1.msra.mxu0 0.0
    %3089 = vmatprep.subr.mxu0 0.0
    %3090 = vmatpush1.msra.mxu0 0.0
    %3091 = vmatprep.subr.mxu0 0.0
    %3092 = vmatpush1.msra.mxu0 0.0
    %3093 = vmatprep.subr.mxu0 0.0
    %3094 = vmatpush1.msra.mxu0 0.0
    %3095 = vmatprep.subr.mxu0 0.0
    %3096 = vmatpush1.msra.mxu0 0.0
    %3097 = vmatprep.subr.mxu0 0.0
    %3098 = vmatpush1.msra.mxu0 0.0
    %3099 = vmatprep.subr.mxu0 0.0
    %3100 = vmatpush1.msra.mxu0 0.0
    %3101 = vmatprep.subr.mxu0 0.0
    %3102 = vmatpush1.msra.mxu0 0.0
    %3103 = vmatprep.subr.mxu0 0.0
    %3104 = vmatpush1.msra.mxu0 0.0
    %3105 = vmatprep.subr.mxu0 0.0
    %3106 = vmatpush1.msra.mxu0 0.0
    %3107 = vmatprep.subr.mxu0 0.0
    %3108 = vmatpush1.msra.mxu0 0.0
    %3109 = vmatprep.subr.mxu0 0.0
    %3110 = vmatpush1.msra.mxu0 0.0
    %3111 = vmatprep.subr.mxu0 0.0
    %3112 = vmatpush1.msra.mxu0 0.0
    %3113 = vmatprep.subr.mxu0 0.0
    %3114 = vmatpush1.msra.mxu0 0.0
    %3115 = vmatprep.subr.mxu0 0.0
    %3116 = vmatpush1.msra.mxu0 0.0
    %3117 = vmatprep.subr.mxu0 0.0
    %3118 = vmatpush1.msra.mxu0 0.0
    %3119 = vmatprep.mubr.f32.mxu0 0.0
    %3120 = vmatmul.mubr.f32.gmra.mrb[0].mxu0 %v3050
    %v3121 = vpop.f32.mrb[0].mxu0
    %v3122 = vadd.f32 %v3048, %v3121
    %v3123 = vpop.f32.mrb[0].mxu0
    %3124 = vmatprep.mubr.f32.mxu0 0.0
    %3125 = vmatmul.mubr.f32.gmra.mrb[0].mxu0 %v3053
    %v3126 = vpop.f32.mrb[0].mxu0
    %v3127 = vadd.f32 %v3048, %v3126
    %v3128 = vpop.f32.mrb[0].mxu0
    %3129 = vdwg.mxu0
    %v3130 = vld [vmem:[#allocation2 + $0x60] sm:$0x3]
    %v3132 = vsel %vm328, %v3130, 0
    %3134 = vmatprep.subr.mxu0 0.0
    %3135 = vmatpush1.msra.mxu0 %v3122
    %3136 = vmatprep.subr.mxu0 0.0
    %3137 = vmatpush1.msra.mxu0 %v3127
    %3138 = vmatprep.subr.mxu0 0.0
    %3139 = vmatpush1.msra.mxu0 0.0
    %3140 = vmatprep.subr.mxu0 0.0
    %3141 = vmatpush1.msra.mxu0 0.0
    %3142 = vmatprep.subr.mxu0 0.0
    %3143 = vmatpush1.msra.mxu0 0.0
    %3144 = vmatprep.subr.mxu0 0.0
    %3145 = vmatpush1.msra.mxu0 0.0
    %3146 = vmatprep.subr.mxu0 0.0
    %3147 = vmatpush1.msra.mxu0 0.0
    %3148 = vmatprep.subr.mxu0 0.0
    %3149 = vmatpush1.msra.mxu0 0.0
    %3150 = vmatprep.subr.mxu0 0.0
    %3151 = vmatpush1.msra.mxu0 0.0
    %3152 = vmatprep.subr.mxu0 0.0
    %3153 = vmatpush1.msra.mxu0 0.0
    %3154 = vmatprep.subr.mxu0 0.0
    %3155 = vmatpush1.msra.mxu0 0.0
    %3156 = vmatprep.subr.mxu0 0.0
    %3157 = vmatpush1.msra.mxu0 0.0
    %3158 = vmatprep.subr.mxu0 0.0
    %3159 = vmatpush1.msra.mxu0 0.0
    %3160 = vmatprep.subr.mxu0 0.0
    %3161 = vmatpush1.msra.mxu0 0.0
    %3162 = vmatprep.subr.mxu0 0.0
    %3163 = vmatpush1.msra.mxu0 0.0
    %3164 = vmatprep.subr.mxu0 0.0
    %3165 = vmatpush1.msra.mxu0 0.0
    %3166 = vmatprep.subr.mxu0 0.0
    %3167 = vmatpush1.msra.mxu0 0.0
    %3168 = vmatprep.subr.mxu0 0.0
    %3169 = vmatpush1.msra.mxu0 0.0
    %3170 = vmatprep.subr.mxu0 0.0
    %3171 = vmatpush1.msra.mxu0 0.0
    %3172 = vmatprep.subr.mxu0 0.0
    %3173 = vmatpush1.msra.mxu0 0.0
    %3174 = vmatprep.subr.mxu0 0.0
    %3175 = vmatpush1.msra.mxu0 0.0
    %3176 = vmatprep.subr.mxu0 0.0
    %3177 = vmatpush1.msra.mxu0 0.0
    %3178 = vmatprep.subr.mxu0 0.0
    %3179 = vmatpush1.msra.mxu0 0.0
    %3180 = vmatprep.subr.mxu0 0.0
    %3181 = vmatpush1.msra.mxu0 0.0
    %3182 = vmatprep.subr.mxu0 0.0
    %3183 = vmatpush1.msra.mxu0 0.0
    %3184 = vmatprep.subr.mxu0 0.0
    %3185 = vmatpush1.msra.mxu0 0.0
    %3186 = vmatprep.subr.mxu0 0.0
    %3187 = vmatpush1.msra.mxu0 0.0
    %3188 = vmatprep.subr.mxu0 0.0
    %3189 = vmatpush1.msra.mxu0 0.0
    %3190 = vmatprep.subr.mxu0 0.0
    %3191 = vmatpush1.msra.mxu0 0.0
    %3192 = vmatprep.subr.mxu0 0.0
    %3193 = vmatpush1.msra.mxu0 0.0
    %3194 = vmatprep.subr.mxu0 0.0
    %3195 = vmatpush1.msra.mxu0 0.0
    %3196 = vmatprep.subr.mxu0 0.0
    %3197 = vmatpush1.msra.mxu0 0.0
    %3198 = vmatprep.mubr.f32.mxu0 0.0
    %3199 = vmatmul.mubr.f32.gmra.mrb[0].mxu0 %v3132
    %v3200 = vpop.f32.mrb[0].mxu0
    %v3201 = vadd.f32 0.0, %v3200
    %v3202 = vpop.f32.mrb[0].mxu0
    %3203 = vdwg.mxu0
    %vm3204 = vcmask 517120
    %3205 = vst.msk [vmem:[#allocation5] sm:$0x3] %vm3204, %v3201
    // Predicated region
    $region14: #{forward.1} parent=1 // pred_check
      _
    $region15: #{forward.1} parent=1 // pred_check_branch
      %3207 = sbr.rel (0) target = $region17
    $region16: #{forward.1} parent=1 // pred_region
      %s3209 = ssub.s32 32, 32
      %3210 = vsyncadd [#allocation4], %s3209
      %s3212 = sshll.u32 [#allocation5], 4
      %s3213 = int_to_ptr.vmem [resolvable:$true] %s3212
      %3215 = dma.vmem_to_hbm [thread:$0]  %s3213, 32, %s2, [#allocation4]
    $region17: #{forward.1} parent=1 // pred_fallthru
      _
    // Predicated region
    $region18: #{forward.1} parent=1 // pred_check
      _
    $region19: #{forward.1} parent=1 // pred_check_branch
      %3217 = sbr.rel (0) target = $region21
    $region20: #{forward.1} parent=1 // pred_region
      %3218 = dma.done [#allocation4], 32
    $region21: #{forward.1} parent=1 // pred_fallthru
      _
    %3219 = vsyncpa [#allocation3], 1
    %3220 = vsyncpa [#allocation4], 1

</llo_original>
